<compile_context>
chip_gen: v7x
topology: tpu7x:2x2x1
jax: 0.10.0
libtpu: 0.0.40
codegen_flags: <defaults>
</compile_context>

<pallas_src>
import jax
import jax.numpy as jnp
from jax.experimental import pallas as pl
from jax.experimental.pallas import tpu as pltpu


# ----------------------------------------------------------------------------
# Kernel 1: hoisted input projection (one big GEMM for both directions).
#   layer 0 : x (M, E)      -> G (2, M, 4H) = x @ W[d] + b[d]
#   layer >0: y (2, M, H)   -> G (2, M, 4H) = y[0] @ Wlo[d] + y[1] @ Whi[d] + b[d]
# ----------------------------------------------------------------------------
def _proj_embed_kernel(x_ref, w_ref, b_ref, g_ref):
    x = x_ref[...]                                            # (TM, E) bf16
    for d in range(2):                                        # static unroll: 2 MXU GEMMs
        g_ref[d] = (jnp.dot(x, w_ref[d], preferred_element_type=jnp.float32)
                    + b_ref[d])


def _proj_hidden_kernel(y_ref, wlo_ref, whi_ref, b_ref, g_ref):
    ya = y_ref[0]                                             # (TM, H) bf16 (forward half)
    yb = y_ref[1]                                             # (TM, H) bf16 (backward half)
    for d in range(2):
        g_ref[d] = (jnp.dot(ya, wlo_ref[d], preferred_element_type=jnp.float32)
                    + jnp.dot(yb, whi_ref[d], preferred_element_type=jnp.float32)
                    + b_ref[d])


def _pick_row_tile(m):
    for cand in (512, 256, 128, 64, 32, 16, 8):
        if m % cand == 0:
            return cand
    return m                                                  # full block (always legal)


def input_proj_embed(x, w, b):
    """x: (M, E) bf16, w: (2, E, 4H) bf16, b: (2, 1, 4H) f32 -> (2, M, 4H) f32."""
    M, E = x.shape
    H4 = w.shape[-1]
    TM = _pick_row_tile(M)
    return pl.pallas_call(
        _proj_embed_kernel,
        out_shape=jax.ShapeDtypeStruct((2, M, H4), jnp.float32),
        grid_spec=pltpu.PrefetchScalarGridSpec(
            num_scalar_prefetch=0,
            grid=(M // TM,),
            in_specs=[
                pl.BlockSpec((TM, E), lambda m: (m, 0)),
                pl.BlockSpec((2, E, H4), lambda m: (0, 0, 0)),   # weights resident
                pl.BlockSpec((2, 1, H4), lambda m: (0, 0, 0)),   # bias resident
            ],
            out_specs=pl.BlockSpec((2, TM, H4), lambda m: (0, m, 0)),
        ),
        compiler_params=pltpu.CompilerParams(dimension_semantics=("parallel",)),
    )(x, w, b)


def input_proj_hidden(y, wlo, whi, b):
    """y: (2, M, H) bf16, wlo/whi: (2, H, 4H) bf16, b: (2, 1, 4H) f32 -> (2, M, 4H) f32."""
    _, M, H = y.shape
    H4 = wlo.shape[-1]
    TM = _pick_row_tile(M)
    return pl.pallas_call(
        _proj_hidden_kernel,
        out_shape=jax.ShapeDtypeStruct((2, M, H4), jnp.float32),
        grid_spec=pltpu.PrefetchScalarGridSpec(
            num_scalar_prefetch=0,
            grid=(M // TM,),
            in_specs=[
                pl.BlockSpec((2, TM, H), lambda m: (0, m, 0)),
                pl.BlockSpec((2, H, H4), lambda m: (0, 0, 0)),
                pl.BlockSpec((2, H, H4), lambda m: (0, 0, 0)),
                pl.BlockSpec((2, 1, H4), lambda m: (0, 0, 0)),
            ],
            out_specs=pl.BlockSpec((2, TM, H4), lambda m: (0, m, 0)),
        ),
        compiler_params=pltpu.CompilerParams(dimension_semantics=("parallel",)),
    )(y, wlo, whi, b)


# ----------------------------------------------------------------------------
# Kernel 2: fused bidirectional recurrence for one layer.
#   grid = (direction, time_block); backward direction is handled by reversed
#   index_maps for G and y, so both directions share one kernel body.
# ----------------------------------------------------------------------------
def _bilstm_kernel(len_ref, g_ref, whh_ref, y_ref, hout_ref, h_scr, c_scr):
    d = pl.program_id(0)                 # 0 = forward, 1 = backward
    tb = pl.program_id(1)                # time-block index (per direction)
    n_tb = pl.num_programs(1)
    TT = g_ref.shape[0]                  # time steps per block (static)
    H = whh_ref.shape[0]

    @pl.when(tb == 0)
    def _():
        h_scr[...] = jnp.zeros_like(h_scr)
        c_scr[...] = jnp.zeros_like(c_scr)

    lengths = len_ref[...]               # (B, 1) int32, resident
    w_hh = whh_ref[...]                  # (H, 4H) bf16, resident (hoisted out of the step loop)

    # Actual time-block this grid step maps to (must match the index_maps below):
    #   forward: tb ; backward: n_tb - 1 - tb
    blk = tb + d * (n_tb - 1 - 2 * tb)
    t0 = blk * TT

    for s in range(TT):                  # static unroll; serialized by the h/c carry
        # local index inside the block: forward walks 0..TT-1, backward TT-1..0
        j = s + d * (TT - 1 - 2 * s)
        g = g_ref[j]                     # (B, 4H) f32 pre-activation (x@W_ih + b)
        h = h_scr[...]
        c = c_scr[...]

        gates = g + jnp.dot(h.astype(w_hh.dtype), w_hh,
                            preferred_element_type=jnp.float32)
        i_g = jax.nn.sigmoid(gates[:, 0 * H:1 * H])     # EUP transcendentals
        f_g = jax.nn.sigmoid(gates[:, 1 * H:2 * H])
        g_g = jnp.tanh(gates[:, 2 * H:3 * H])
        o_g = jax.nn.sigmoid(gates[:, 3 * H:4 * H])
        c_new = f_g * c + i_g * g_g
        h_new = o_g * jnp.tanh(c_new)

        valid = (t0 + j) < lengths       # (B, 1) bool: packed-sequence mask
        h_scr[...] = jnp.where(valid, h_new, h)
        c_scr[...] = jnp.where(valid, c_new, c)
        y_ref[j] = jnp.where(valid, h_new, 0.0).astype(y_ref.dtype)

    @pl.when(tb == n_tb - 1)
    def _():
        hout_ref[...] = h_scr[...]       # final hidden of this direction


def bilstm_layer(g, whh, lengths, time_block):
    """g: (2, T, B, 4H) f32, whh: (2, H, 4H) bf16, lengths: (B, 1) int32.
    Returns y: (2, T, B, H) bf16 (time-ordered for both dirs), h_final: (2, B, H) f32."""
    _, T, B, H4 = g.shape
    H = whh.shape[1]
    TT = time_block
    n_tb = T // TT

    def fwd_bwd_time(d, t):              # forward: t ; backward: n_tb-1-t
        return t + d * (n_tb - 1 - 2 * t)

    return pl.pallas_call(
        _bilstm_kernel,
        out_shape=(jax.ShapeDtypeStruct((2, T, B, H), jnp.bfloat16),
                   jax.ShapeDtypeStruct((2, B, H), jnp.float32)),
        grid_spec=pltpu.PrefetchScalarGridSpec(
            num_scalar_prefetch=0,
            grid=(2, n_tb),
            in_specs=[
                pl.BlockSpec((B, 1), lambda d, t: (0, 0)),                       # lengths (resident)
                pl.BlockSpec((None, TT, B, H4), lambda d, t: (d, fwd_bwd_time(d, t), 0, 0)),  # G
                pl.BlockSpec((None, H, H4), lambda d, t: (d, 0, 0)),             # W_hh (resident per dir)
            ],
            out_specs=(
                pl.BlockSpec((None, TT, B, H), lambda d, t: (d, fwd_bwd_time(d, t), 0, 0)),   # y
                pl.BlockSpec((None, B, H), lambda d, t: (d, 0, 0)),              # final hidden
            ),
            scratch_shapes=[pltpu.VMEM((B, H), jnp.float32),                     # h carry
                            pltpu.VMEM((B, H), jnp.float32)],                    # c carry
        ),
        compiler_params=pltpu.CompilerParams(
            dimension_semantics=("parallel", "arbitrary")),
    )(lengths, g, whh)


# ----------------------------------------------------------------------------
# Kernel 3: final Linear on the stacked (2, B, H) final hiddens (no host concat).
# ----------------------------------------------------------------------------
def _fc_kernel(h_ref, wlo_ref, whi_ref, b_ref, o_ref):
    o_ref[...] = (jnp.dot(h_ref[0], wlo_ref[...], preferred_element_type=jnp.float32)
                  + jnp.dot(h_ref[1], whi_ref[...], preferred_element_type=jnp.float32)
                  + b_ref[...])


def fc_head(h, w_lo, w_hi, b):
    B = h.shape[1]
    O = w_lo.shape[1]
    vmem_spec = lambda: pl.BlockSpec(memory_space=pltpu.MemorySpace.VMEM)
    return pl.pallas_call(
        _fc_kernel,
        out_shape=jax.ShapeDtypeStruct((B, O), jnp.float32),
        in_specs=[vmem_spec() for _ in range(4)],
        out_specs=vmem_spec(),
    )(h, w_lo, w_hi, b)


# ----------------------------------------------------------------------------
# Model forward: embedding gather (JAX glue) -> per-layer [proj GEMM + fused
# bidirectional recurrence] -> fc head.
# ----------------------------------------------------------------------------
def bidirectional_lstm_forward(params, text, text_lengths, *, time_block=8):
    T, B = text.shape
    TT = time_block
    T_pad = -(-T // TT) * TT
    if T_pad != T:
        text = jnp.pad(text, ((0, T_pad - T), (0, 0)))            # pad with pad_idx=0 tokens

    embedded = params['embedding'][text]                          # (T_pad, B, E); dropout = identity
    lengths = text_lengths.astype(jnp.int32).reshape(B, 1)

    x = embedded.astype(jnp.bfloat16).reshape(T_pad * B, -1)      # bf16 MXU operand, flattened rows
    y = None
    h_last = None
    for li, lp in enumerate(params['lstm']):
        H = lp['w_hh_f'].shape[0]
        b = jnp.stack([lp['b_f'], lp['b_b']])                     # (2, 1, 4H) f32
        if li == 0:
            w = jnp.stack([lp['w_ih_f'], lp['w_ih_b']]).astype(jnp.bfloat16)      # (2, E, 4H)
            g = input_proj_embed(x, w, b)                         # (2, T_pad*B, 4H) f32
        else:
            wlo = jnp.stack([lp['w_ih_f'][:H], lp['w_ih_b'][:H]]).astype(jnp.bfloat16)
            whi = jnp.stack([lp['w_ih_f'][H:], lp['w_ih_b'][H:]]).astype(jnp.bfloat16)
            g = input_proj_hidden(y, wlo, whi, b)                 # (2, T_pad*B, 4H) f32
        g = g.reshape(2, T_pad, B, 4 * H)
        whh = jnp.stack([lp['w_hh_f'], lp['w_hh_b']]).astype(jnp.bfloat16)        # (2, H, 4H)
        y4, h_last = bilstm_layer(g, whh, lengths, TT)            # y4: (2,T_pad,B,H) bf16
        y = y4.reshape(2, T_pad * B, H)                           # inter-layer dropout = identity

    H = h_last.shape[-1]
    return fc_head(h_last, params['fc_w'][:H], params['fc_w'][H:], params['fc_b'])


# ----------------------------------------------------------------------------
# Pure-JAX reference mirroring the kernel math (bf16 MXU operands, f32 carries).
# ----------------------------------------------------------------------------
def _ref_forward(params, text, text_lengths):
    T, B = text.shape
    embedded = params['embedding'][text]
    lengths = text_lengths.astype(jnp.int32)

    def run_dir(g, w_hh, reverse):
        Hh = w_hh.shape[0]
        w_bf = w_hh.astype(jnp.bfloat16)
        h = jnp.zeros((B, Hh), jnp.float32)
        c = jnp.zeros((B, Hh), jnp.float32)
        ys = [None] * T
        order = range(T - 1, -1, -1) if reverse else range(T)
        for t in order:
            gates = g[t] + jnp.dot(h.astype(jnp.bfloat16), w_bf,
                                   preferred_element_type=jnp.float32)
            i = jax.nn.sigmoid(gates[:, :Hh])
            f = jax.nn.sigmoid(gates[:, Hh:2 * Hh])
            gg = jnp.tanh(gates[:, 2 * Hh:3 * Hh])
            o = jax.nn.sigmoid(gates[:, 3 * Hh:])
            c_new = f * c + i * gg
            h_new = o * jnp.tanh(c_new)
            valid = (t < lengths)[:, None]
            h = jnp.where(valid, h_new, h)
            c = jnp.where(valid, c_new, c)
            ys[t] = jnp.where(valid, h_new, 0.0).astype(jnp.bfloat16)
        return jnp.stack(ys), h

    x_bf = embedded.astype(jnp.bfloat16)
    yf = yb = hf = hb = None
    for li, lp in enumerate(params['lstm']):
        H = lp['w_hh_f'].shape[0]
        gs = []
        for dname in ('f', 'b'):
            w = lp[f'w_ih_{dname}'].astype(jnp.bfloat16)
            bb = lp[f'b_{dname}']
            if li == 0:
                g = jnp.dot(x_bf, w, preferred_element_type=jnp.float32) + bb
            else:
                g = (jnp.dot(yf, w[:H], preferred_element_type=jnp.float32)
                     + jnp.dot(yb, w[H:], preferred_element_type=jnp.float32) + bb)
            gs.append(g)
        yf, hf = run_dir(gs[0], lp['w_hh_f'], reverse=False)
        yb, hb = run_dir(gs[1], lp['w_hh_b'], reverse=True)

    H = hf.shape[-1]
    return hf @ params['fc_w'][:H] + hb @ params['fc_w'][H:] + params['fc_b']


# ----------------------------------------------------------------------------
# Deterministic parameter initialization (matches nn.Module shapes, transposed weights).
# ----------------------------------------------------------------------------
def init_params(key, vocab_size, embedding_dim, hidden_dim, n_layers=2, output_dim=1, pad_idx=0):
    keys = iter(jax.random.split(key, 64))

    def nrm(shape, scale=0.1):
        return scale * jax.random.normal(next(keys), shape, dtype=jnp.float32)

    emb = nrm((vocab_size, embedding_dim))
    emb = emb.at[pad_idx].set(0.0)                       # padding_idx -> zero row

    lstm = []
    d_in = embedding_dim
    for _ in range(n_layers):
        layer = {}
        for d in ('f', 'b'):
            layer[f'w_ih_{d}'] = nrm((d_in, 4 * hidden_dim))
            layer[f'w_hh_{d}'] = nrm((hidden_dim, 4 * hidden_dim))
            layer[f'b_{d}'] = nrm((1, 4 * hidden_dim))   # b_ih + b_hh fused
        lstm.append(layer)
        d_in = 2 * hidden_dim                            # bidirectional concat feeds next layer

    fc_w = nrm((2 * hidden_dim, output_dim))
    fc_b = nrm((1, output_dim))
    return dict(embedding=emb, lstm=lstm, fc_w=fc_w, fc_b=fc_b)


if __name__ == "__main__":
    VOCAB, EMB, HID, OUT = 50, 16, 32, 1
    T, B = 8, 2

    key = jax.random.PRNGKey(0)
    k_param, k_text = jax.random.split(key)
    params = init_params(k_param, VOCAB, EMB, HID, n_layers=2, output_dim=OUT, pad_idx=0)

    # Padded token batch (seq-major), lengths sorted descending (enforce_sorted=True).
    text_lengths = jnp.array([8, 5], dtype=jnp.int32)
    text = jax.random.randint(k_text, (T, B), 1, VOCAB, dtype=jnp.int32)
    valid = jnp.arange(T)[:, None] < text_lengths[None, :]
    text = jnp.where(valid, text, 0)                     # pad_idx = 0

    fwd = jax.jit(bidirectional_lstm_forward)
    out = jax.block_until_ready(fwd(params, text, text_lengths))

    ref = jax.block_until_ready(_ref_forward(params, text, text_lengths))
    assert out.shape == (B, OUT)
    assert jnp.allclose(out, ref, rtol=1e-2, atol=1e-2), (out, ref)

    print("KERNEL_OK")
</pallas_src>

<mosaic_0001>
module attributes {stable_mosaic.version = 11 : i64} {
  func.func @_proj_embed_kernel(%arg0: i32, %arg1: memref<16x16xbf16, #tpu.memory_space<vmem>>, %arg2: memref<2x16x128xbf16, #tpu.memory_space<vmem>>, %arg3: memref<2x1x128xf32, #tpu.memory_space<vmem>>, %arg4: memref<2x16x128xf32, #tpu.memory_space<vmem>>) attributes {dimension_semantics = [#tpu.dimension_semantics<parallel>], iteration_bounds = array<i64: 1>, scalar_prefetch = 0 : i64, scratch_operands = 0 : i64, tpu.core_type = #tpu.core_type<tc>, window_params = [{transform_indices = @transform_0, window_bounds = array<i64: 16, 16>}, {pipeline_mode = #tpu.pipeline_mode<synchronous>, transform_indices = @transform_1, window_bounds = array<i64: 2, 16, 128>}, {pipeline_mode = #tpu.pipeline_mode<synchronous>, transform_indices = @transform_2, window_bounds = array<i64: 2, 1, 128>}, {transform_indices = @transform_3, window_bounds = array<i64: 2, 16, 128>}]} {
    %c0 = arith.constant 0 : index
    %c0_0 = arith.constant 0 : index
    %0 = vector.load %arg1[%c0, %c0_0] : memref<16x16xbf16, #tpu.memory_space<vmem>>, vector<16x16xbf16>
    %c0_1 = arith.constant 0 : index
    %c0_2 = arith.constant 0 : index
    %c0_3 = arith.constant 0 : index
    %1 = vector.load %arg2[%c0_1, %c0_2, %c0_3] : memref<2x16x128xbf16, #tpu.memory_space<vmem>>, vector<1x16x128xbf16>
    %2 = vector.shape_cast %1 : vector<1x16x128xbf16> to vector<16x128xbf16>
    %cst = arith.constant dense<0.000000e+00> : vector<16x128xf32>
    %3 = tpu.matmul %0, %2, %cst {dimension_numbers = #tpu.dot_dimension_numbers<[1], [0], [0], [1], [0, 0, 1, 1], [], []>} : vector<16x16xbf16>, vector<16x128xbf16>, vector<16x128xf32> -> vector<16x128xf32>
    %c0_4 = arith.constant 0 : index
    %c0_5 = arith.constant 0 : index
    %c0_6 = arith.constant 0 : index
    %4 = vector.load %arg3[%c0_4, %c0_5, %c0_6] : memref<2x1x128xf32, #tpu.memory_space<vmem>>, vector<1x1x128xf32>
    %5 = vector.shape_cast %4 : vector<1x1x128xf32> to vector<1x128xf32>
    %6 = vector.broadcast %5 : vector<1x128xf32> to vector<16x128xf32>
    %7 = arith.addf %3, %6 : vector<16x128xf32>
    %c0_7 = arith.constant 0 : index
    %c0_8 = arith.constant 0 : index
    %c0_9 = arith.constant 0 : index
    %8 = vector.load %arg4[%c0_7, %c0_8, %c0_9] : memref<2x16x128xf32, #tpu.memory_space<vmem>>, vector<1x16x128xf32>
    %9 = vector.shape_cast %8 : vector<1x16x128xf32> to vector<16x128xf32>
    %10 = vector.shape_cast %7 : vector<16x128xf32> to vector<1x16x128xf32>
    tpu.vector_store %arg4[%c0_7, %c0_8, %c0_9], %10 {strides = array<i32>} : memref<2x16x128xf32, #tpu.memory_space<vmem>>, vector<1x16x128xf32>,
    %c1 = arith.constant 1 : index
    %c0_10 = arith.constant 0 : index
    %c0_11 = arith.constant 0 : index
    %11 = vector.load %arg2[%c1, %c0_10, %c0_11] : memref<2x16x128xbf16, #tpu.memory_space<vmem>>, vector<1x16x128xbf16>
    %12 = vector.shape_cast %11 : vector<1x16x128xbf16> to vector<16x128xbf16>
    %cst_12 = arith.constant dense<0.000000e+00> : vector<16x128xf32>
    %13 = tpu.matmul %0, %12, %cst_12 {dimension_numbers = #tpu.dot_dimension_numbers<[1], [0], [0], [1], [0, 0, 1, 1], [], []>} : vector<16x16xbf16>, vector<16x128xbf16>, vector<16x128xf32> -> vector<16x128xf32>
    %c1_13 = arith.constant 1 : index
    %c0_14 = arith.constant 0 : index
    %c0_15 = arith.constant 0 : index
    %14 = vector.load %arg3[%c1_13, %c0_14, %c0_15] : memref<2x1x128xf32, #tpu.memory_space<vmem>>, vector<1x1x128xf32>
    %15 = vector.shape_cast %14 : vector<1x1x128xf32> to vector<1x128xf32>
    %16 = vector.broadcast %15 : vector<1x128xf32> to vector<16x128xf32>
    %17 = arith.addf %13, %16 : vector<16x128xf32>
    %c1_16 = arith.constant 1 : index
    %c0_17 = arith.constant 0 : index
    %c0_18 = arith.constant 0 : index
    %18 = vector.load %arg4[%c1_16, %c0_17, %c0_18] : memref<2x16x128xf32, #tpu.memory_space<vmem>>, vector<1x16x128xf32>
    %19 = vector.shape_cast %18 : vector<1x16x128xf32> to vector<16x128xf32>
    %20 = vector.shape_cast %17 : vector<16x128xf32> to vector<1x16x128xf32>
    tpu.vector_store %arg4[%c1_16, %c0_17, %c0_18], %20 {strides = array<i32>} : memref<2x16x128xf32, #tpu.memory_space<vmem>>, vector<1x16x128xf32>,
    return
  }
  func.func @transform_0(%arg0: i32) -> (i32, i32) {
    %c0_i32 = arith.constant 0 : i32
    %c0_i32_0 = arith.constant 0 : i32
    return %arg0, %c0_i32 : i32, i32
  }
  func.func @transform_1(%arg0: i32) -> (i32, i32, i32) {
    %c0_i32 = arith.constant 0 : i32
    %c0_i32_0 = arith.constant 0 : i32
    %c0_i32_1 = arith.constant 0 : i32
    %c0_i32_2 = arith.constant 0 : i32
    return %c0_i32, %c0_i32_0, %c0_i32_1 : i32, i32, i32
  }
  func.func @transform_2(%arg0: i32) -> (i32, i32, i32) {
    %c0_i32 = arith.constant 0 : i32
    %c0_i32_0 = arith.constant 0 : i32
    %c0_i32_1 = arith.constant 0 : i32
    %c0_i32_2 = arith.constant 0 : i32
    return %c0_i32, %c0_i32_0, %c0_i32_1 : i32, i32, i32
  }
  func.func @transform_3(%arg0: i32) -> (i32, i32, i32) {
    %c0_i32 = arith.constant 0 : i32
    %c0_i32_0 = arith.constant 0 : i32
    %c0_i32_1 = arith.constant 0 : i32
    return %c0_i32, %arg0, %c0_i32_0 : i32, i32, i32
  }
}

module attributes {stable_mosaic.version = 11 : i64} {
  func.func @_proj_hidden_kernel(%arg0: i32, %arg1: memref<2x16x32xbf16, #tpu.memory_space<vmem>>, %arg2: memref<2x32x128xbf16, #tpu.memory_space<vmem>>, %arg3: memref<2x32x128xbf16, #tpu.memory_space<vmem>>, %arg4: memref<2x1x128xf32, #tpu.memory_space<vmem>>, %arg5: memref<2x16x128xf32, #tpu.memory_space<vmem>>) attributes {dimension_semantics = [#tpu.dimension_semantics<parallel>], iteration_bounds = array<i64: 1>, scalar_prefetch = 0 : i64, scratch_operands = 0 : i64, tpu.core_type = #tpu.core_type<tc>, window_params = [{transform_indices = @transform_0, window_bounds = array<i64: 2, 16, 32>}, {pipeline_mode = #tpu.pipeline_mode<synchronous>, transform_indices = @transform_1, window_bounds = array<i64: 2, 32, 128>}, {pipeline_mode = #tpu.pipeline_mode<synchronous>, transform_indices = @transform_2, window_bounds = array<i64: 2, 32, 128>}, {pipeline_mode = #tpu.pipeline_mode<synchronous>, transform_indices = @transform_3, window_bounds = array<i64: 2, 1, 128>}, {transform_indices = @transform_4, window_bounds = array<i64: 2, 16, 128>}]} {
    %c0 = arith.constant 0 : index
    %c0_0 = arith.constant 0 : index
    %c0_1 = arith.constant 0 : index
    %0 = vector.load %arg1[%c0, %c0_0, %c0_1] : memref<2x16x32xbf16, #tpu.memory_space<vmem>>, vector<1x16x32xbf16>
    %1 = vector.shape_cast %0 : vector<1x16x32xbf16> to vector<16x32xbf16>
    %c1 = arith.constant 1 : index
    %c0_2 = arith.constant 0 : index
    %c0_3 = arith.constant 0 : index
    %2 = vector.load %arg1[%c1, %c0_2, %c0_3] : memref<2x16x32xbf16, #tpu.memory_space<vmem>>, vector<1x16x32xbf16>
    %3 = vector.shape_cast %2 : vector<1x16x32xbf16> to vector<16x32xbf16>
    %c0_4 = arith.constant 0 : index
    %c0_5 = arith.constant 0 : index
    %c0_6 = arith.constant 0 : index
    %4 = vector.load %arg2[%c0_4, %c0_5, %c0_6] : memref<2x32x128xbf16, #tpu.memory_space<vmem>>, vector<1x32x128xbf16>
    %5 = vector.shape_cast %4 : vector<1x32x128xbf16> to vector<32x128xbf16>
    %cst = arith.constant dense<0.000000e+00> : vector<16x128xf32>
    %6 = tpu.matmul %1, %5, %cst {dimension_numbers = #tpu.dot_dimension_numbers<[1], [0], [0], [1], [0, 0, 1, 1], [], []>} : vector<16x32xbf16>, vector<32x128xbf16>, vector<16x128xf32> -> vector<16x128xf32>
    %c0_7 = arith.constant 0 : index
    %c0_8 = arith.constant 0 : index
    %c0_9 = arith.constant 0 : index
    %7 = vector.load %arg3[%c0_7, %c0_8, %c0_9] : memref<2x32x128xbf16, #tpu.memory_space<vmem>>, vector<1x32x128xbf16>
    %8 = vector.shape_cast %7 : vector<1x32x128xbf16> to vector<32x128xbf16>
    %cst_10 = arith.constant dense<0.000000e+00> : vector<16x128xf32>
    %9 = tpu.matmul %3, %8, %cst_10 {dimension_numbers = #tpu.dot_dimension_numbers<[1], [0], [0], [1], [0, 0, 1, 1], [], []>} : vector<16x32xbf16>, vector<32x128xbf16>, vector<16x128xf32> -> vector<16x128xf32>
    %10 = arith.addf %6, %9 : vector<16x128xf32>
    %c0_11 = arith.constant 0 : index
    %c0_12 = arith.constant 0 : index
    %c0_13 = arith.constant 0 : index
    %11 = vector.load %arg4[%c0_11, %c0_12, %c0_13] : memref<2x1x128xf32, #tpu.memory_space<vmem>>, vector<1x1x128xf32>
    %12 = vector.shape_cast %11 : vector<1x1x128xf32> to vector<1x128xf32>
    %13 = vector.broadcast %12 : vector<1x128xf32> to vector<16x128xf32>
    %14 = arith.addf %10, %13 : vector<16x128xf32>
    %c0_14 = arith.constant 0 : index
    %c0_15 = arith.constant 0 : index
    %c0_16 = arith.constant 0 : index
    %15 = vector.load %arg5[%c0_14, %c0_15, %c0_16] : memref<2x16x128xf32, #tpu.memory_space<vmem>>, vector<1x16x128xf32>
    %16 = vector.shape_cast %15 : vector<1x16x128xf32> to vector<16x128xf32>
    %17 = vector.shape_cast %14 : vector<16x128xf32> to vector<1x16x128xf32>
    tpu.vector_store %arg5[%c0_14, %c0_15, %c0_16], %17 {strides = array<i32>} : memref<2x16x128xf32, #tpu.memory_space<vmem>>, vector<1x16x128xf32>,
    %c1_17 = arith.constant 1 : index
    %c0_18 = arith.constant 0 : index
    %c0_19 = arith.constant 0 : index
    %18 = vector.load %arg2[%c1_17, %c0_18, %c0_19] : memref<2x32x128xbf16, #tpu.memory_space<vmem>>, vector<1x32x128xbf16>
    %19 = vector.shape_cast %18 : vector<1x32x128xbf16> to vector<32x128xbf16>
    %cst_20 = arith.constant dense<0.000000e+00> : vector<16x128xf32>
    %20 = tpu.matmul %1, %19, %cst_20 {dimension_numbers = #tpu.dot_dimension_numbers<[1], [0], [0], [1], [0, 0, 1, 1], [], []>} : vector<16x32xbf16>, vector<32x128xbf16>, vector<16x128xf32> -> vector<16x128xf32>
    %c1_21 = arith.constant 1 : index
    %c0_22 = arith.constant 0 : index
    %c0_23 = arith.constant 0 : index
    %21 = vector.load %arg3[%c1_21, %c0_22, %c0_23] : memref<2x32x128xbf16, #tpu.memory_space<vmem>>, vector<1x32x128xbf16>
    %22 = vector.shape_cast %21 : vector<1x32x128xbf16> to vector<32x128xbf16>
    %cst_24 = arith.constant dense<0.000000e+00> : vector<16x128xf32>
    %23 = tpu.matmul %3, %22, %cst_24 {dimension_numbers = #tpu.dot_dimension_numbers<[1], [0], [0], [1], [0, 0, 1, 1], [], []>} : vector<16x32xbf16>, vector<32x128xbf16>, vector<16x128xf32> -> vector<16x128xf32>
    %24 = arith.addf %20, %23 : vector<16x128xf32>
    %c1_25 = arith.constant 1 : index
    %c0_26 = arith.constant 0 : index
    %c0_27 = arith.constant 0 : index
    %25 = vector.load %arg4[%c1_25, %c0_26, %c0_27] : memref<2x1x128xf32, #tpu.memory_space<vmem>>, vector<1x1x128xf32>
    %26 = vector.shape_cast %25 : vector<1x1x128xf32> to vector<1x128xf32>
    %27 = vector.broadcast %26 : vector<1x128xf32> to vector<16x128xf32>
    %28 = arith.addf %24, %27 : vector<16x128xf32>
    %c1_28 = arith.constant 1 : index
    %c0_29 = arith.constant 0 : index
    %c0_30 = arith.constant 0 : index
    %29 = vector.load %arg5[%c1_28, %c0_29, %c0_30] : memref<2x16x128xf32, #tpu.memory_space<vmem>>, vector<1x16x128xf32>
    %30 = vector.shape_cast %29 : vector<1x16x128xf32> to vector<16x128xf32>
    %31 = vector.shape_cast %28 : vector<16x128xf32> to vector<1x16x128xf32>
    tpu.vector_store %arg5[%c1_28, %c0_29, %c0_30], %31 {strides = array<i32>} : memref<2x16x128xf32, #tpu.memory_space<vmem>>, vector<1x16x128xf32>,
    return
  }
  func.func @transform_0(%arg0: i32) -> (i32, i32, i32) {
    %c0_i32 = arith.constant 0 : i32
    %c0_i32_0 = arith.constant 0 : i32
    %c0_i32_1 = arith.constant 0 : i32
    return %c0_i32, %arg0, %c0_i32_0 : i32, i32, i32
  }
  func.func @transform_1(%arg0: i32) -> (i32, i32, i32) {
    %c0_i32 = arith.constant 0 : i32
    %c0_i32_0 = arith.constant 0 : i32
    %c0_i32_1 = arith.constant 0 : i32
    %c0_i32_2 = arith.constant 0 : i32
    return %c0_i32, %c0_i32_0, %c0_i32_1 : i32, i32, i32
  }
  func.func @transform_2(%arg0: i32) -> (i32, i32, i32) {
    %c0_i32 = arith.constant 0 : i32
    %c0_i32_0 = arith.constant 0 : i32
    %c0_i32_1 = arith.constant 0 : i32
    %c0_i32_2 = arith.constant 0 : i32
    return %c0_i32, %c0_i32_0, %c0_i32_1 : i32, i32, i32
  }
  func.func @transform_3(%arg0: i32) -> (i32, i32, i32) {
    %c0_i32 = arith.constant 0 : i32
    %c0_i32_0 = arith.constant 0 : i32
    %c0_i32_1 = arith.constant 0 : i32
    %c0_i32_2 = arith.constant 0 : i32
    return %c0_i32, %c0_i32_0, %c0_i32_1 : i32, i32, i32
  }
  func.func @transform_4(%arg0: i32) -> (i32, i32, i32) {
    %c0_i32 = arith.constant 0 : i32
    %c0_i32_0 = arith.constant 0 : i32
    %c0_i32_1 = arith.constant 0 : i32
    return %c0_i32, %arg0, %c0_i32_0 : i32, i32, i32
  }
}

module attributes {stable_mosaic.version = 11 : i64} {
  func.func @_bilstm_kernel(%arg0: i32, %arg1: i32, %arg2: memref<2x1xi32, #tpu.memory_space<vmem>>, %arg3: memref<1x8x2x128xf32, #tpu.memory_space<vmem>>, %arg4: memref<1x32x128xbf16, #tpu.memory_space<vmem>>, %arg5: memref<1x8x2x32xbf16, #tpu.memory_space<vmem>>, %arg6: memref<1x2x32xf32, #tpu.memory_space<vmem>>, %arg7: memref<2x32xf32, #tpu.memory_space<vmem>>, %arg8: memref<2x32xf32, #tpu.memory_space<vmem>>) attributes {dimension_semantics = [#tpu.dimension_semantics<parallel>, #tpu.dimension_semantics<arbitrary>], iteration_bounds = array<i64: 2, 1>, scalar_prefetch = 0 : i64, scratch_operands = 2 : i64, tpu.core_type = #tpu.core_type<tc>, window_params = [{pipeline_mode = #tpu.pipeline_mode<synchronous>, transform_indices = @transform_0, window_bounds = array<i64: 2, 1>}, {transform_indices = @transform_1, window_bounds = array<i64: 1, 8, 2, 128>}, {transform_indices = @transform_2, window_bounds = array<i64: 1, 32, 128>}, {transform_indices = @transform_3, window_bounds = array<i64: 1, 8, 2, 32>}, {transform_indices = @transform_4, window_bounds = array<i64: 1, 2, 32>}]} {
    %c0_i32 = arith.constant 0 : i32
    %0 = arith.cmpi eq, %arg1, %c0_i32 : i32
    %1 = arith.extui %0 : i1 to i32
    %c0_i32_0 = arith.constant 0 : i32
    %2 = arith.cmpi ne, %1, %c0_i32_0 : i32
    scf.if %2 {
      %cst_165 = arith.constant 0.000000e+00 : f32
      %454 = vector.broadcast %cst_165 : f32 to vector<2x32xf32>
      %c0_166 = arith.constant 0 : index
      %c0_167 = arith.constant 0 : index
      %455 = vector.load %arg7[%c0_166, %c0_167] : memref<2x32xf32, #tpu.memory_space<vmem>>, vector<2x32xf32>
      tpu.vector_store %arg7[%c0_166, %c0_167], %454 {strides = array<i32>} : memref<2x32xf32, #tpu.memory_space<vmem>>, vector<2x32xf32>,
      %cst_168 = arith.constant 0.000000e+00 : f32
      %456 = vector.broadcast %cst_168 : f32 to vector<2x32xf32>
      %c0_169 = arith.constant 0 : index
      %c0_170 = arith.constant 0 : index
      %457 = vector.load %arg8[%c0_169, %c0_170] : memref<2x32xf32, #tpu.memory_space<vmem>>, vector<2x32xf32>
      tpu.vector_store %arg8[%c0_169, %c0_170], %456 {strides = array<i32>} : memref<2x32xf32, #tpu.memory_space<vmem>>, vector<2x32xf32>,
    } else {
    }
    %c0 = arith.constant 0 : index
    %c0_1 = arith.constant 0 : index
    %3 = vector.load %arg2[%c0, %c0_1] : memref<2x1xi32, #tpu.memory_space<vmem>>, vector<2x1xi32>
    %c0_2 = arith.constant 0 : index
    %c0_3 = arith.constant 0 : index
    %c0_4 = arith.constant 0 : index
    %4 = vector.load %arg4[%c0_2, %c0_3, %c0_4] : memref<1x32x128xbf16, #tpu.memory_space<vmem>>, vector<1x32x128xbf16>
    %5 = vector.shape_cast %4 : vector<1x32x128xbf16> to vector<32x128xbf16>
    %c2_i32 = arith.constant 2 : i32
    %6 = arith.muli %c2_i32, %arg1 : i32
    %c0_i32_5 = arith.constant 0 : i32
    %7 = arith.subi %c0_i32_5, %6 : i32
    %8 = arith.muli %arg0, %7 : i32
    %9 = arith.addi %arg1, %8 : i32
    %c8_i32 = arith.constant 8 : i32
    %10 = arith.muli %9, %c8_i32 : i32
    %c7_i32 = arith.constant 7 : i32
    %11 = arith.muli %arg0, %c7_i32 : i32
    %c0_i32_6 = arith.constant 0 : i32
    %12 = arith.addi %c0_i32_6, %11 : i32
    %c0_7 = arith.constant 0 : index
    %13 = arith.index_cast %12 : i32 to index
    %c0_8 = arith.constant 0 : index
    %c0_9 = arith.constant 0 : index
    %14 = vector.load %arg3[%c0_7, %13, %c0_8, %c0_9] : memref<1x8x2x128xf32, #tpu.memory_space<vmem>>, vector<1x1x2x128xf32>
    %15 = vector.shape_cast %14 : vector<1x1x2x128xf32> to vector<2x128xf32>
    %c0_10 = arith.constant 0 : index
    %c0_11 = arith.constant 0 : index
    %16 = vector.load %arg7[%c0_10, %c0_11] : memref<2x32xf32, #tpu.memory_space<vmem>>, vector<2x32xf32>
    %c0_12 = arith.constant 0 : index
    %c0_13 = arith.constant 0 : index
    %17 = vector.load %arg8[%c0_12, %c0_13] : memref<2x32xf32, #tpu.memory_space<vmem>>, vector<2x32xf32>
    %18 = arith.truncf %16 : vector<2x32xf32> to vector<2x32xbf16>
    %cst = arith.constant dense<0.000000e+00> : vector<2x128xf32>
    %19 = tpu.matmul %18, %5, %cst {dimension_numbers = #tpu.dot_dimension_numbers<[1], [0], [0], [1], [0, 0, 1, 1], [], []>} : vector<2x32xbf16>, vector<32x128xbf16>, vector<2x128xf32> -> vector<2x128xf32>
    %20 = arith.addf %15, %19 : vector<2x128xf32>
    %21 = vector.extract_strided_slice %20 {offsets = [0, 0], sizes = [2, 32], strides = [1, 1]} : vector<2x128xf32> to vector<2x32xf32>
    %22 = arith.negf %21 : vector<2x32xf32>
    %23 = math.exp %22 : vector<2x32xf32>
    %cst_14 = arith.constant 1.000000e+00 : f32
    %24 = vector.broadcast %cst_14 : f32 to vector<2x32xf32>
    %25 = arith.addf %24, %23 : vector<2x32xf32>
    %26 = arith.divf %24, %25 : vector<2x32xf32>
    %27 = vector.extract_strided_slice %20 {offsets = [0, 32], sizes = [2, 32], strides = [1, 1]} : vector<2x128xf32> to vector<2x32xf32>
    %28 = arith.negf %27 : vector<2x32xf32>
    %29 = math.exp %28 : vector<2x32xf32>
    %cst_15 = arith.constant 1.000000e+00 : f32
    %30 = vector.broadcast %cst_15 : f32 to vector<2x32xf32>
    %31 = arith.addf %30, %29 : vector<2x32xf32>
    %32 = arith.divf %30, %31 : vector<2x32xf32>
    %33 = vector.extract_strided_slice %20 {offsets = [0, 64], sizes = [2, 32], strides = [1, 1]} : vector<2x128xf32> to vector<2x32xf32>
    %34 = math.tanh %33 : vector<2x32xf32>
    %35 = vector.extract_strided_slice %20 {offsets = [0, 96], sizes = [2, 32], strides = [1, 1]} : vector<2x128xf32> to vector<2x32xf32>
    %36 = arith.negf %35 : vector<2x32xf32>
    %37 = math.exp %36 : vector<2x32xf32>
    %cst_16 = arith.constant 1.000000e+00 : f32
    %38 = vector.broadcast %cst_16 : f32 to vector<2x32xf32>
    %39 = arith.addf %38, %37 : vector<2x32xf32>
    %40 = arith.divf %38, %39 : vector<2x32xf32>
    %41 = arith.mulf %32, %17 : vector<2x32xf32>
    %42 = arith.mulf %26, %34 : vector<2x32xf32>
    %43 = arith.addf %41, %42 : vector<2x32xf32>
    %44 = math.tanh %43 : vector<2x32xf32>
    %45 = arith.mulf %40, %44 : vector<2x32xf32>
    %46 = arith.addi %10, %12 : i32
    %47 = vector.broadcast %46 : i32 to vector<2x1xi32>
    %48 = arith.cmpi slt, %47, %3 : vector<2x1xi32>
    %49 = vector.shape_cast %48 : vector<2x1xi1> to vector<2x1xi1>
    %50 = vector.broadcast %49 : vector<2x1xi1> to vector<2x32xi1>
    %51 = arith.select %50, %45, %16 : vector<2x32xi1>, vector<2x32xf32>
    %c0_17 = arith.constant 0 : index
    %c0_18 = arith.constant 0 : index
    %52 = vector.load %arg7[%c0_17, %c0_18] : memref<2x32xf32, #tpu.memory_space<vmem>>, vector<2x32xf32>
    tpu.vector_store %arg7[%c0_17, %c0_18], %51 {strides = array<i32>} : memref<2x32xf32, #tpu.memory_space<vmem>>, vector<2x32xf32>,
    %53 = vector.shape_cast %48 : vector<2x1xi1> to vector<2x1xi1>
    %54 = vector.broadcast %53 : vector<2x1xi1> to vector<2x32xi1>
    %55 = arith.select %54, %43, %17 : vector<2x32xi1>, vector<2x32xf32>
    %c0_19 = arith.constant 0 : index
    %c0_20 = arith.constant 0 : index
    %56 = vector.load %arg8[%c0_19, %c0_20] : memref<2x32xf32, #tpu.memory_space<vmem>>, vector<2x32xf32>
    tpu.vector_store %arg8[%c0_19, %c0_20], %55 {strides = array<i32>} : memref<2x32xf32, #tpu.memory_space<vmem>>, vector<2x32xf32>,
    %cst_21 = arith.constant 0.000000e+00 : f32
    %57 = vector.shape_cast %48 : vector<2x1xi1> to vector<2x1xi1>
    %58 = vector.broadcast %57 : vector<2x1xi1> to vector<2x32xi1>
    %59 = vector.broadcast %cst_21 : f32 to vector<2x32xf32>
    %60 = arith.select %58, %45, %59 : vector<2x32xi1>, vector<2x32xf32>
    %61 = arith.truncf %60 : vector<2x32xf32> to vector<2x32xbf16>
    %c0_22 = arith.constant 0 : index
    %62 = arith.index_cast %12 : i32 to index
    %c0_23 = arith.constant 0 : index
    %c0_24 = arith.constant 0 : index
    %63 = vector.load %arg5[%c0_22, %62, %c0_23, %c0_24] : memref<1x8x2x32xbf16, #tpu.memory_space<vmem>>, vector<1x1x2x32xbf16>
    %64 = vector.shape_cast %63 : vector<1x1x2x32xbf16> to vector<2x32xbf16>
    %65 = vector.shape_cast %61 : vector<2x32xbf16> to vector<1x1x2x32xbf16>
    tpu.vector_store %arg5[%c0_22, %62, %c0_23, %c0_24], %65 {strides = array<i32>} : memref<1x8x2x32xbf16, #tpu.memory_space<vmem>>, vector<1x1x2x32xbf16>,
    %c5_i32 = arith.constant 5 : i32
    %66 = arith.muli %arg0, %c5_i32 : i32
    %c1_i32 = arith.constant 1 : i32
    %67 = arith.addi %c1_i32, %66 : i32
    %c0_25 = arith.constant 0 : index
    %68 = arith.index_cast %67 : i32 to index
    %c0_26 = arith.constant 0 : index
    %c0_27 = arith.constant 0 : index
    %69 = vector.load %arg3[%c0_25, %68, %c0_26, %c0_27] : memref<1x8x2x128xf32, #tpu.memory_space<vmem>>, vector<1x1x2x128xf32>
    %70 = vector.shape_cast %69 : vector<1x1x2x128xf32> to vector<2x128xf32>
    %c0_28 = arith.constant 0 : index
    %c0_29 = arith.constant 0 : index
    %71 = vector.load %arg7[%c0_28, %c0_29] : memref<2x32xf32, #tpu.memory_space<vmem>>, vector<2x32xf32>
    %c0_30 = arith.constant 0 : index
    %c0_31 = arith.constant 0 : index
    %72 = vector.load %arg8[%c0_30, %c0_31] : memref<2x32xf32, #tpu.memory_space<vmem>>, vector<2x32xf32>
    %73 = arith.truncf %71 : vector<2x32xf32> to vector<2x32xbf16>
    %cst_32 = arith.constant dense<0.000000e+00> : vector<2x128xf32>
    %74 = tpu.matmul %73, %5, %cst_32 {dimension_numbers = #tpu.dot_dimension_numbers<[1], [0], [0], [1], [0, 0, 1, 1], [], []>} : vector<2x32xbf16>, vector<32x128xbf16>, vector<2x128xf32> -> vector<2x128xf32>
    %75 = arith.addf %70, %74 : vector<2x128xf32>
    %76 = vector.extract_strided_slice %75 {offsets = [0, 0], sizes = [2, 32], strides = [1, 1]} : vector<2x128xf32> to vector<2x32xf32>
    %77 = arith.negf %76 : vector<2x32xf32>
    %78 = math.exp %77 : vector<2x32xf32>
    %cst_33 = arith.constant 1.000000e+00 : f32
    %79 = vector.broadcast %cst_33 : f32 to vector<2x32xf32>
    %80 = arith.addf %79, %78 : vector<2x32xf32>
    %81 = arith.divf %79, %80 : vector<2x32xf32>
    %82 = vector.extract_strided_slice %75 {offsets = [0, 32], sizes = [2, 32], strides = [1, 1]} : vector<2x128xf32> to vector<2x32xf32>
    %83 = arith.negf %82 : vector<2x32xf32>
    %84 = math.exp %83 : vector<2x32xf32>
    %cst_34 = arith.constant 1.000000e+00 : f32
    %85 = vector.broadcast %cst_34 : f32 to vector<2x32xf32>
    %86 = arith.addf %85, %84 : vector<2x32xf32>
    %87 = arith.divf %85, %86 : vector<2x32xf32>
    %88 = vector.extract_strided_slice %75 {offsets = [0, 64], sizes = [2, 32], strides = [1, 1]} : vector<2x128xf32> to vector<2x32xf32>
    %89 = math.tanh %88 : vector<2x32xf32>
    %90 = vector.extract_strided_slice %75 {offsets = [0, 96], sizes = [2, 32], strides = [1, 1]} : vector<2x128xf32> to vector<2x32xf32>
    %91 = arith.negf %90 : vector<2x32xf32>
    %92 = math.exp %91 : vector<2x32xf32>
    %cst_35 = arith.constant 1.000000e+00 : f32
    %93 = vector.broadcast %cst_35 : f32 to vector<2x32xf32>
    %94 = arith.addf %93, %92 : vector<2x32xf32>
    %95 = arith.divf %93, %94 : vector<2x32xf32>
    %96 = arith.mulf %87, %72 : vector<2x32xf32>
    %97 = arith.mulf %81, %89 : vector<2x32xf32>
    %98 = arith.addf %96, %97 : vector<2x32xf32>
    %99 = math.tanh %98 : vector<2x32xf32>
    %100 = arith.mulf %95, %99 : vector<2x32xf32>
    %101 = arith.addi %10, %67 : i32
    %102 = vector.broadcast %101 : i32 to vector<2x1xi32>
    %103 = arith.cmpi slt, %102, %3 : vector<2x1xi32>
    %104 = vector.shape_cast %103 : vector<2x1xi1> to vector<2x1xi1>
    %105 = vector.broadcast %104 : vector<2x1xi1> to vector<2x32xi1>
    %106 = arith.select %105, %100, %71 : vector<2x32xi1>, vector<2x32xf32>
    %c0_36 = arith.constant 0 : index
    %c0_37 = arith.constant 0 : index
    %107 = vector.load %arg7[%c0_36, %c0_37] : memref<2x32xf32, #tpu.memory_space<vmem>>, vector<2x32xf32>
    tpu.vector_store %arg7[%c0_36, %c0_37], %106 {strides = array<i32>} : memref<2x32xf32, #tpu.memory_space<vmem>>, vector<2x32xf32>,
    %108 = vector.shape_cast %103 : vector<2x1xi1> to vector<2x1xi1>
    %109 = vector.broadcast %108 : vector<2x1xi1> to vector<2x32xi1>
    %110 = arith.select %109, %98, %72 : vector<2x32xi1>, vector<2x32xf32>
    %c0_38 = arith.constant 0 : index
    %c0_39 = arith.constant 0 : index
    %111 = vector.load %arg8[%c0_38, %c0_39] : memref<2x32xf32, #tpu.memory_space<vmem>>, vector<2x32xf32>
    tpu.vector_store %arg8[%c0_38, %c0_39], %110 {strides = array<i32>} : memref<2x32xf32, #tpu.memory_space<vmem>>, vector<2x32xf32>,
    %cst_40 = arith.constant 0.000000e+00 : f32
    %112 = vector.shape_cast %103 : vector<2x1xi1> to vector<2x1xi1>
    %113 = vector.broadcast %112 : vector<2x1xi1> to vector<2x32xi1>
    %114 = vector.broadcast %cst_40 : f32 to vector<2x32xf32>
    %115 = arith.select %113, %100, %114 : vector<2x32xi1>, vector<2x32xf32>
    %116 = arith.truncf %115 : vector<2x32xf32> to vector<2x32xbf16>
    %c0_41 = arith.constant 0 : index
    %117 = arith.index_cast %67 : i32 to index
    %c0_42 = arith.constant 0 : index
    %c0_43 = arith.constant 0 : index
    %118 = vector.load %arg5[%c0_41, %117, %c0_42, %c0_43] : memref<1x8x2x32xbf16, #tpu.memory_space<vmem>>, vector<1x1x2x32xbf16>
    %119 = vector.shape_cast %118 : vector<1x1x2x32xbf16> to vector<2x32xbf16>
    %120 = vector.shape_cast %116 : vector<2x32xbf16> to vector<1x1x2x32xbf16>
    tpu.vector_store %arg5[%c0_41, %117, %c0_42, %c0_43], %120 {strides = array<i32>} : memref<1x8x2x32xbf16, #tpu.memory_space<vmem>>, vector<1x1x2x32xbf16>,
    %c3_i32 = arith.constant 3 : i32
    %121 = arith.muli %arg0, %c3_i32 : i32
    %c2_i32_44 = arith.constant 2 : i32
    %122 = arith.addi %c2_i32_44, %121 : i32
    %c0_45 = arith.constant 0 : index
    %123 = arith.index_cast %122 : i32 to index
    %c0_46 = arith.constant 0 : index
    %c0_47 = arith.constant 0 : index
    %124 = vector.load %arg3[%c0_45, %123, %c0_46, %c0_47] : memref<1x8x2x128xf32, #tpu.memory_space<vmem>>, vector<1x1x2x128xf32>
    %125 = vector.shape_cast %124 : vector<1x1x2x128xf32> to vector<2x128xf32>
    %c0_48 = arith.constant 0 : index
    %c0_49 = arith.constant 0 : index
    %126 = vector.load %arg7[%c0_48, %c0_49] : memref<2x32xf32, #tpu.memory_space<vmem>>, vector<2x32xf32>
    %c0_50 = arith.constant 0 : index
    %c0_51 = arith.constant 0 : index
    %127 = vector.load %arg8[%c0_50, %c0_51] : memref<2x32xf32, #tpu.memory_space<vmem>>, vector<2x32xf32>
    %128 = arith.truncf %126 : vector<2x32xf32> to vector<2x32xbf16>
    %cst_52 = arith.constant dense<0.000000e+00> : vector<2x128xf32>
    %129 = tpu.matmul %128, %5, %cst_52 {dimension_numbers = #tpu.dot_dimension_numbers<[1], [0], [0], [1], [0, 0, 1, 1], [], []>} : vector<2x32xbf16>, vector<32x128xbf16>, vector<2x128xf32> -> vector<2x128xf32>
    %130 = arith.addf %125, %129 : vector<2x128xf32>
    %131 = vector.extract_strided_slice %130 {offsets = [0, 0], sizes = [2, 32], strides = [1, 1]} : vector<2x128xf32> to vector<2x32xf32>
    %132 = arith.negf %131 : vector<2x32xf32>
    %133 = math.exp %132 : vector<2x32xf32>
    %cst_53 = arith.constant 1.000000e+00 : f32
    %134 = vector.broadcast %cst_53 : f32 to vector<2x32xf32>
    %135 = arith.addf %134, %133 : vector<2x32xf32>
    %136 = arith.divf %134, %135 : vector<2x32xf32>
    %137 = vector.extract_strided_slice %130 {offsets = [0, 32], sizes = [2, 32], strides = [1, 1]} : vector<2x128xf32> to vector<2x32xf32>
    %138 = arith.negf %137 : vector<2x32xf32>
    %139 = math.exp %138 : vector<2x32xf32>
    %cst_54 = arith.constant 1.000000e+00 : f32
    %140 = vector.broadcast %cst_54 : f32 to vector<2x32xf32>
    %141 = arith.addf %140, %139 : vector<2x32xf32>
    %142 = arith.divf %140, %141 : vector<2x32xf32>
    %143 = vector.extract_strided_slice %130 {offsets = [0, 64], sizes = [2, 32], strides = [1, 1]} : vector<2x128xf32> to vector<2x32xf32>
    %144 = math.tanh %143 : vector<2x32xf32>
    %145 = vector.extract_strided_slice %130 {offsets = [0, 96], sizes = [2, 32], strides = [1, 1]} : vector<2x128xf32> to vector<2x32xf32>
    %146 = arith.negf %145 : vector<2x32xf32>
    %147 = math.exp %146 : vector<2x32xf32>
    %cst_55 = arith.constant 1.000000e+00 : f32
    %148 = vector.broadcast %cst_55 : f32 to vector<2x32xf32>
    %149 = arith.addf %148, %147 : vector<2x32xf32>
    %150 = arith.divf %148, %149 : vector<2x32xf32>
    %151 = arith.mulf %142, %127 : vector<2x32xf32>
    %152 = arith.mulf %136, %144 : vector<2x32xf32>
    %153 = arith.addf %151, %152 : vector<2x32xf32>
    %154 = math.tanh %153 : vector<2x32xf32>
    %155 = arith.mulf %150, %154 : vector<2x32xf32>
    %156 = arith.addi %10, %122 : i32
    %157 = vector.broadcast %156 : i32 to vector<2x1xi32>
    %158 = arith.cmpi slt, %157, %3 : vector<2x1xi32>
    %159 = vector.shape_cast %158 : vector<2x1xi1> to vector<2x1xi1>
    %160 = vector.broadcast %159 : vector<2x1xi1> to vector<2x32xi1>
    %161 = arith.select %160, %155, %126 : vector<2x32xi1>, vector<2x32xf32>
    %c0_56 = arith.constant 0 : index
    %c0_57 = arith.constant 0 : index
    %162 = vector.load %arg7[%c0_56, %c0_57] : memref<2x32xf32, #tpu.memory_space<vmem>>, vector<2x32xf32>
    tpu.vector_store %arg7[%c0_56, %c0_57], %161 {strides = array<i32>} : memref<2x32xf32, #tpu.memory_space<vmem>>, vector<2x32xf32>,
    %163 = vector.shape_cast %158 : vector<2x1xi1> to vector<2x1xi1>
    %164 = vector.broadcast %163 : vector<2x1xi1> to vector<2x32xi1>
    %165 = arith.select %164, %153, %127 : vector<2x32xi1>, vector<2x32xf32>
    %c0_58 = arith.constant 0 : index
    %c0_59 = arith.constant 0 : index
    %166 = vector.load %arg8[%c0_58, %c0_59] : memref<2x32xf32, #tpu.memory_space<vmem>>, vector<2x32xf32>
    tpu.vector_store %arg8[%c0_58, %c0_59], %165 {strides = array<i32>} : memref<2x32xf32, #tpu.memory_space<vmem>>, vector<2x32xf32>,
    %cst_60 = arith.constant 0.000000e+00 : f32
    %167 = vector.shape_cast %158 : vector<2x1xi1> to vector<2x1xi1>
    %168 = vector.broadcast %167 : vector<2x1xi1> to vector<2x32xi1>
    %169 = vector.broadcast %cst_60 : f32 to vector<2x32xf32>
    %170 = arith.select %168, %155, %169 : vector<2x32xi1>, vector<2x32xf32>
    %171 = arith.truncf %170 : vector<2x32xf32> to vector<2x32xbf16>
    %c0_61 = arith.constant 0 : index
    %172 = arith.index_cast %122 : i32 to index
    %c0_62 = arith.constant 0 : index
    %c0_63 = arith.constant 0 : index
    %173 = vector.load %arg5[%c0_61, %172, %c0_62, %c0_63] : memref<1x8x2x32xbf16, #tpu.memory_space<vmem>>, vector<1x1x2x32xbf16>
    %174 = vector.shape_cast %173 : vector<1x1x2x32xbf16> to vector<2x32xbf16>
    %175 = vector.shape_cast %171 : vector<2x32xbf16> to vector<1x1x2x32xbf16>
    tpu.vector_store %arg5[%c0_61, %172, %c0_62, %c0_63], %175 {strides = array<i32>} : memref<1x8x2x32xbf16, #tpu.memory_space<vmem>>, vector<1x1x2x32xbf16>,
    %c1_i32_64 = arith.constant 1 : i32
    %176 = arith.muli %arg0, %c1_i32_64 : i32
    %c3_i32_65 = arith.constant 3 : i32
    %177 = arith.addi %c3_i32_65, %176 : i32
    %c0_66 = arith.constant 0 : index
    %178 = arith.index_cast %177 : i32 to index
    %c0_67 = arith.constant 0 : index
    %c0_68 = arith.constant 0 : index
    %179 = vector.load %arg3[%c0_66, %178, %c0_67, %c0_68] : memref<1x8x2x128xf32, #tpu.memory_space<vmem>>, vector<1x1x2x128xf32>
    %180 = vector.shape_cast %179 : vector<1x1x2x128xf32> to vector<2x128xf32>
    %c0_69 = arith.constant 0 : index
    %c0_70 = arith.constant 0 : index
    %181 = vector.load %arg7[%c0_69, %c0_70] : memref<2x32xf32, #tpu.memory_space<vmem>>, vector<2x32xf32>
    %c0_71 = arith.constant 0 : index
    %c0_72 = arith.constant 0 : index
    %182 = vector.load %arg8[%c0_71, %c0_72] : memref<2x32xf32, #tpu.memory_space<vmem>>, vector<2x32xf32>
    %183 = arith.truncf %181 : vector<2x32xf32> to vector<2x32xbf16>
    %cst_73 = arith.constant dense<0.000000e+00> : vector<2x128xf32>
    %184 = tpu.matmul %183, %5, %cst_73 {dimension_numbers = #tpu.dot_dimension_numbers<[1], [0], [0], [1], [0, 0, 1, 1], [], []>} : vector<2x32xbf16>, vector<32x128xbf16>, vector<2x128xf32> -> vector<2x128xf32>
    %185 = arith.addf %180, %184 : vector<2x128xf32>
    %186 = vector.extract_strided_slice %185 {offsets = [0, 0], sizes = [2, 32], strides = [1, 1]} : vector<2x128xf32> to vector<2x32xf32>
    %187 = arith.negf %186 : vector<2x32xf32>
    %188 = math.exp %187 : vector<2x32xf32>
    %cst_74 = arith.constant 1.000000e+00 : f32
    %189 = vector.broadcast %cst_74 : f32 to vector<2x32xf32>
    %190 = arith.addf %189, %188 : vector<2x32xf32>
    %191 = arith.divf %189, %190 : vector<2x32xf32>
    %192 = vector.extract_strided_slice %185 {offsets = [0, 32], sizes = [2, 32], strides = [1, 1]} : vector<2x128xf32> to vector<2x32xf32>
    %193 = arith.negf %192 : vector<2x32xf32>
    %194 = math.exp %193 : vector<2x32xf32>
    %cst_75 = arith.constant 1.000000e+00 : f32
    %195 = vector.broadcast %cst_75 : f32 to vector<2x32xf32>
    %196 = arith.addf %195, %194 : vector<2x32xf32>
    %197 = arith.divf %195, %196 : vector<2x32xf32>
    %198 = vector.extract_strided_slice %185 {offsets = [0, 64], sizes = [2, 32], strides = [1, 1]} : vector<2x128xf32> to vector<2x32xf32>
    %199 = math.tanh %198 : vector<2x32xf32>
    %200 = vector.extract_strided_slice %185 {offsets = [0, 96], sizes = [2, 32], strides = [1, 1]} : vector<2x128xf32> to vector<2x32xf32>
    %201 = arith.negf %200 : vector<2x32xf32>
    %202 = math.exp %201 : vector<2x32xf32>
    %cst_76 = arith.constant 1.000000e+00 : f32
    %203 = vector.broadcast %cst_76 : f32 to vector<2x32xf32>
    %204 = arith.addf %203, %202 : vector<2x32xf32>
    %205 = arith.divf %203, %204 : vector<2x32xf32>
    %206 = arith.mulf %197, %182 : vector<2x32xf32>
    %207 = arith.mulf %191, %199 : vector<2x32xf32>
    %208 = arith.addf %206, %207 : vector<2x32xf32>
    %209 = math.tanh %208 : vector<2x32xf32>
    %210 = arith.mulf %205, %209 : vector<2x32xf32>
    %211 = arith.addi %10, %177 : i32
    %212 = vector.broadcast %211 : i32 to vector<2x1xi32>
    %213 = arith.cmpi slt, %212, %3 : vector<2x1xi32>
    %214 = vector.shape_cast %213 : vector<2x1xi1> to vector<2x1xi1>
    %215 = vector.broadcast %214 : vector<2x1xi1> to vector<2x32xi1>
    %216 = arith.select %215, %210, %181 : vector<2x32xi1>, vector<2x32xf32>
    %c0_77 = arith.constant 0 : index
    %c0_78 = arith.constant 0 : index
    %217 = vector.load %arg7[%c0_77, %c0_78] : memref<2x32xf32, #tpu.memory_space<vmem>>, vector<2x32xf32>
    tpu.vector_store %arg7[%c0_77, %c0_78], %216 {strides = array<i32>} : memref<2x32xf32, #tpu.memory_space<vmem>>, vector<2x32xf32>,
    %218 = vector.shape_cast %213 : vector<2x1xi1> to vector<2x1xi1>
    %219 = vector.broadcast %218 : vector<2x1xi1> to vector<2x32xi1>
    %220 = arith.select %219, %208, %182 : vector<2x32xi1>, vector<2x32xf32>
    %c0_79 = arith.constant 0 : index
    %c0_80 = arith.constant 0 : index
    %221 = vector.load %arg8[%c0_79, %c0_80] : memref<2x32xf32, #tpu.memory_space<vmem>>, vector<2x32xf32>
    tpu.vector_store %arg8[%c0_79, %c0_80], %220 {strides = array<i32>} : memref<2x32xf32, #tpu.memory_space<vmem>>, vector<2x32xf32>,
    %cst_81 = arith.constant 0.000000e+00 : f32
    %222 = vector.shape_cast %213 : vector<2x1xi1> to vector<2x1xi1>
    %223 = vector.broadcast %222 : vector<2x1xi1> to vector<2x32xi1>
    %224 = vector.broadcast %cst_81 : f32 to vector<2x32xf32>
    %225 = arith.select %223, %210, %224 : vector<2x32xi1>, vector<2x32xf32>
    %226 = arith.truncf %225 : vector<2x32xf32> to vector<2x32xbf16>
    %c0_82 = arith.constant 0 : index
    %227 = arith.index_cast %177 : i32 to index
    %c0_83 = arith.constant 0 : index
    %c0_84 = arith.constant 0 : index
    %228 = vector.load %arg5[%c0_82, %227, %c0_83, %c0_84] : memref<1x8x2x32xbf16, #tpu.memory_space<vmem>>, vector<1x1x2x32xbf16>
    %229 = vector.shape_cast %228 : vector<1x1x2x32xbf16> to vector<2x32xbf16>
    %230 = vector.shape_cast %226 : vector<2x32xbf16> to vector<1x1x2x32xbf16>
    tpu.vector_store %arg5[%c0_82, %227, %c0_83, %c0_84], %230 {strides = array<i32>} : memref<1x8x2x32xbf16, #tpu.memory_space<vmem>>, vector<1x1x2x32xbf16>,
    %c-1_i32 = arith.constant -1 : i32
    %231 = arith.muli %arg0, %c-1_i32 : i32
    %c4_i32 = arith.constant 4 : i32
    %232 = arith.addi %c4_i32, %231 : i32
    %c0_85 = arith.constant 0 : index
    %233 = arith.index_cast %232 : i32 to index
    %c0_86 = arith.constant 0 : index
    %c0_87 = arith.constant 0 : index
    %234 = vector.load %arg3[%c0_85, %233, %c0_86, %c0_87] : memref<1x8x2x128xf32, #tpu.memory_space<vmem>>, vector<1x1x2x128xf32>
    %235 = vector.shape_cast %234 : vector<1x1x2x128xf32> to vector<2x128xf32>
    %c0_88 = arith.constant 0 : index
    %c0_89 = arith.constant 0 : index
    %236 = vector.load %arg7[%c0_88, %c0_89] : memref<2x32xf32, #tpu.memory_space<vmem>>, vector<2x32xf32>
    %c0_90 = arith.constant 0 : index
    %c0_91 = arith.constant 0 : index
    %237 = vector.load %arg8[%c0_90, %c0_91] : memref<2x32xf32, #tpu.memory_space<vmem>>, vector<2x32xf32>
    %238 = arith.truncf %236 : vector<2x32xf32> to vector<2x32xbf16>
    %cst_92 = arith.constant dense<0.000000e+00> : vector<2x128xf32>
    %239 = tpu.matmul %238, %5, %cst_92 {dimension_numbers = #tpu.dot_dimension_numbers<[1], [0], [0], [1], [0, 0, 1, 1], [], []>} : vector<2x32xbf16>, vector<32x128xbf16>, vector<2x128xf32> -> vector<2x128xf32>
    %240 = arith.addf %235, %239 : vector<2x128xf32>
    %241 = vector.extract_strided_slice %240 {offsets = [0, 0], sizes = [2, 32], strides = [1, 1]} : vector<2x128xf32> to vector<2x32xf32>
    %242 = arith.negf %241 : vector<2x32xf32>
    %243 = math.exp %242 : vector<2x32xf32>
    %cst_93 = arith.constant 1.000000e+00 : f32
    %244 = vector.broadcast %cst_93 : f32 to vector<2x32xf32>
    %245 = arith.addf %244, %243 : vector<2x32xf32>
    %246 = arith.divf %244, %245 : vector<2x32xf32>
    %247 = vector.extract_strided_slice %240 {offsets = [0, 32], sizes = [2, 32], strides = [1, 1]} : vector<2x128xf32> to vector<2x32xf32>
    %248 = arith.negf %247 : vector<2x32xf32>
    %249 = math.exp %248 : vector<2x32xf32>
    %cst_94 = arith.constant 1.000000e+00 : f32
    %250 = vector.broadcast %cst_94 : f32 to vector<2x32xf32>
    %251 = arith.addf %250, %249 : vector<2x32xf32>
    %252 = arith.divf %250, %251 : vector<2x32xf32>
    %253 = vector.extract_strided_slice %240 {offsets = [0, 64], sizes = [2, 32], strides = [1, 1]} : vector<2x128xf32> to vector<2x32xf32>
    %254 = math.tanh %253 : vector<2x32xf32>
    %255 = vector.extract_strided_slice %240 {offsets = [0, 96], sizes = [2, 32], strides = [1, 1]} : vector<2x128xf32> to vector<2x32xf32>
    %256 = arith.negf %255 : vector<2x32xf32>
    %257 = math.exp %256 : vector<2x32xf32>
    %cst_95 = arith.constant 1.000000e+00 : f32
    %258 = vector.broadcast %cst_95 : f32 to vector<2x32xf32>
    %259 = arith.addf %258, %257 : vector<2x32xf32>
    %260 = arith.divf %258, %259 : vector<2x32xf32>
    %261 = arith.mulf %252, %237 : vector<2x32xf32>
    %262 = arith.mulf %246, %254 : vector<2x32xf32>
    %263 = arith.addf %261, %262 : vector<2x32xf32>
    %264 = math.tanh %263 : vector<2x32xf32>
    %265 = arith.mulf %260, %264 : vector<2x32xf32>
    %266 = arith.addi %10, %232 : i32
    %267 = vector.broadcast %266 : i32 to vector<2x1xi32>
    %268 = arith.cmpi slt, %267, %3 : vector<2x1xi32>
    %269 = vector.shape_cast %268 : vector<2x1xi1> to vector<2x1xi1>
    %270 = vector.broadcast %269 : vector<2x1xi1> to vector<2x32xi1>
    %271 = arith.select %270, %265, %236 : vector<2x32xi1>, vector<2x32xf32>
    %c0_96 = arith.constant 0 : index
    %c0_97 = arith.constant 0 : index
    %272 = vector.load %arg7[%c0_96, %c0_97] : memref<2x32xf32, #tpu.memory_space<vmem>>, vector<2x32xf32>
    tpu.vector_store %arg7[%c0_96, %c0_97], %271 {strides = array<i32>} : memref<2x32xf32, #tpu.memory_space<vmem>>, vector<2x32xf32>,
    %273 = vector.shape_cast %268 : vector<2x1xi1> to vector<2x1xi1>
    %274 = vector.broadcast %273 : vector<2x1xi1> to vector<2x32xi1>
    %275 = arith.select %274, %263, %237 : vector<2x32xi1>, vector<2x32xf32>
    %c0_98 = arith.constant 0 : index
    %c0_99 = arith.constant 0 : index
    %276 = vector.load %arg8[%c0_98, %c0_99] : memref<2x32xf32, #tpu.memory_space<vmem>>, vector<2x32xf32>
    tpu.vector_store %arg8[%c0_98, %c0_99], %275 {strides = array<i32>} : memref<2x32xf32, #tpu.memory_space<vmem>>, vector<2x32xf32>,
    %cst_100 = arith.constant 0.000000e+00 : f32
    %277 = vector.shape_cast %268 : vector<2x1xi1> to vector<2x1xi1>
    %278 = vector.broadcast %277 : vector<2x1xi1> to vector<2x32xi1>
    %279 = vector.broadcast %cst_100 : f32 to vector<2x32xf32>
    %280 = arith.select %278, %265, %279 : vector<2x32xi1>, vector<2x32xf32>
    %281 = arith.truncf %280 : vector<2x32xf32> to vector<2x32xbf16>
    %c0_101 = arith.constant 0 : index
    %282 = arith.index_cast %232 : i32 to index
    %c0_102 = arith.constant 0 : index
    %c0_103 = arith.constant 0 : index
    %283 = vector.load %arg5[%c0_101, %282, %c0_102, %c0_103] : memref<1x8x2x32xbf16, #tpu.memory_space<vmem>>, vector<1x1x2x32xbf16>
    %284 = vector.shape_cast %283 : vector<1x1x2x32xbf16> to vector<2x32xbf16>
    %285 = vector.shape_cast %281 : vector<2x32xbf16> to vector<1x1x2x32xbf16>
    tpu.vector_store %arg5[%c0_101, %282, %c0_102, %c0_103], %285 {strides = array<i32>} : memref<1x8x2x32xbf16, #tpu.memory_space<vmem>>, vector<1x1x2x32xbf16>,
    %c-3_i32 = arith.constant -3 : i32
    %286 = arith.muli %arg0, %c-3_i32 : i32
    %c5_i32_104 = arith.constant 5 : i32
    %287 = arith.addi %c5_i32_104, %286 : i32
    %c0_105 = arith.constant 0 : index
    %288 = arith.index_cast %287 : i32 to index
    %c0_106 = arith.constant 0 : index
    %c0_107 = arith.constant 0 : index
    %289 = vector.load %arg3[%c0_105, %288, %c0_106, %c0_107] : memref<1x8x2x128xf32, #tpu.memory_space<vmem>>, vector<1x1x2x128xf32>
    %290 = vector.shape_cast %289 : vector<1x1x2x128xf32> to vector<2x128xf32>
    %c0_108 = arith.constant 0 : index
    %c0_109 = arith.constant 0 : index
    %291 = vector.load %arg7[%c0_108, %c0_109] : memref<2x32xf32, #tpu.memory_space<vmem>>, vector<2x32xf32>
    %c0_110 = arith.constant 0 : index
    %c0_111 = arith.constant 0 : index
    %292 = vector.load %arg8[%c0_110, %c0_111] : memref<2x32xf32, #tpu.memory_space<vmem>>, vector<2x32xf32>
    %293 = arith.truncf %291 : vector<2x32xf32> to vector<2x32xbf16>
    %cst_112 = arith.constant dense<0.000000e+00> : vector<2x128xf32>
    %294 = tpu.matmul %293, %5, %cst_112 {dimension_numbers = #tpu.dot_dimension_numbers<[1], [0], [0], [1], [0, 0, 1, 1], [], []>} : vector<2x32xbf16>, vector<32x128xbf16>, vector<2x128xf32> -> vector<2x128xf32>
    %295 = arith.addf %290, %294 : vector<2x128xf32>
    %296 = vector.extract_strided_slice %295 {offsets = [0, 0], sizes = [2, 32], strides = [1, 1]} : vector<2x128xf32> to vector<2x32xf32>
    %297 = arith.negf %296 : vector<2x32xf32>
    %298 = math.exp %297 : vector<2x32xf32>
    %cst_113 = arith.constant 1.000000e+00 : f32
    %299 = vector.broadcast %cst_113 : f32 to vector<2x32xf32>
    %300 = arith.addf %299, %298 : vector<2x32xf32>
    %301 = arith.divf %299, %300 : vector<2x32xf32>
    %302 = vector.extract_strided_slice %295 {offsets = [0, 32], sizes = [2, 32], strides = [1, 1]} : vector<2x128xf32> to vector<2x32xf32>
    %303 = arith.negf %302 : vector<2x32xf32>
    %304 = math.exp %303 : vector<2x32xf32>
    %cst_114 = arith.constant 1.000000e+00 : f32
    %305 = vector.broadcast %cst_114 : f32 to vector<2x32xf32>
    %306 = arith.addf %305, %304 : vector<2x32xf32>
    %307 = arith.divf %305, %306 : vector<2x32xf32>
    %308 = vector.extract_strided_slice %295 {offsets = [0, 64], sizes = [2, 32], strides = [1, 1]} : vector<2x128xf32> to vector<2x32xf32>
    %309 = math.tanh %308 : vector<2x32xf32>
    %310 = vector.extract_strided_slice %295 {offsets = [0, 96], sizes = [2, 32], strides = [1, 1]} : vector<2x128xf32> to vector<2x32xf32>
    %311 = arith.negf %310 : vector<2x32xf32>
    %312 = math.exp %311 : vector<2x32xf32>
    %cst_115 = arith.constant 1.000000e+00 : f32
    %313 = vector.broadcast %cst_115 : f32 to vector<2x32xf32>
    %314 = arith.addf %313, %312 : vector<2x32xf32>
    %315 = arith.divf %313, %314 : vector<2x32xf32>
    %316 = arith.mulf %307, %292 : vector<2x32xf32>
    %317 = arith.mulf %301, %309 : vector<2x32xf32>
    %318 = arith.addf %316, %317 : vector<2x32xf32>
    %319 = math.tanh %318 : vector<2x32xf32>
    %320 = arith.mulf %315, %319 : vector<2x32xf32>
    %321 = arith.addi %10, %287 : i32
    %322 = vector.broadcast %321 : i32 to vector<2x1xi32>
    %323 = arith.cmpi slt, %322, %3 : vector<2x1xi32>
    %324 = vector.shape_cast %323 : vector<2x1xi1> to vector<2x1xi1>
    %325 = vector.broadcast %324 : vector<2x1xi1> to vector<2x32xi1>
    %326 = arith.select %325, %320, %291 : vector<2x32xi1>, vector<2x32xf32>
    %c0_116 = arith.constant 0 : index
    %c0_117 = arith.constant 0 : index
    %327 = vector.load %arg7[%c0_116, %c0_117] : memref<2x32xf32, #tpu.memory_space<vmem>>, vector<2x32xf32>
    tpu.vector_store %arg7[%c0_116, %c0_117], %326 {strides = array<i32>} : memref<2x32xf32, #tpu.memory_space<vmem>>, vector<2x32xf32>,
    %328 = vector.shape_cast %323 : vector<2x1xi1> to vector<2x1xi1>
    %329 = vector.broadcast %328 : vector<2x1xi1> to vector<2x32xi1>
    %330 = arith.select %329, %318, %292 : vector<2x32xi1>, vector<2x32xf32>
    %c0_118 = arith.constant 0 : index
    %c0_119 = arith.constant 0 : index
    %331 = vector.load %arg8[%c0_118, %c0_119] : memref<2x32xf32, #tpu.memory_space<vmem>>, vector<2x32xf32>
    tpu.vector_store %arg8[%c0_118, %c0_119], %330 {strides = array<i32>} : memref<2x32xf32, #tpu.memory_space<vmem>>, vector<2x32xf32>,
    %cst_120 = arith.constant 0.000000e+00 : f32
    %332 = vector.shape_cast %323 : vector<2x1xi1> to vector<2x1xi1>
    %333 = vector.broadcast %332 : vector<2x1xi1> to vector<2x32xi1>
    %334 = vector.broadcast %cst_120 : f32 to vector<2x32xf32>
    %335 = arith.select %333, %320, %334 : vector<2x32xi1>, vector<2x32xf32>
    %336 = arith.truncf %335 : vector<2x32xf32> to vector<2x32xbf16>
    %c0_121 = arith.constant 0 : index
    %337 = arith.index_cast %287 : i32 to index
    %c0_122 = arith.constant 0 : index
    %c0_123 = arith.constant 0 : index
    %338 = vector.load %arg5[%c0_121, %337, %c0_122, %c0_123] : memref<1x8x2x32xbf16, #tpu.memory_space<vmem>>, vector<1x1x2x32xbf16>
    %339 = vector.shape_cast %338 : vector<1x1x2x32xbf16> to vector<2x32xbf16>
    %340 = vector.shape_cast %336 : vector<2x32xbf16> to vector<1x1x2x32xbf16>
    tpu.vector_store %arg5[%c0_121, %337, %c0_122, %c0_123], %340 {strides = array<i32>} : memref<1x8x2x32xbf16, #tpu.memory_space<vmem>>, vector<1x1x2x32xbf16>,
    %c-5_i32 = arith.constant -5 : i32
    %341 = arith.muli %arg0, %c-5_i32 : i32
    %c6_i32 = arith.constant 6 : i32
    %342 = arith.addi %c6_i32, %341 : i32
    %c0_124 = arith.constant 0 : index
    %343 = arith.index_cast %342 : i32 to index
    %c0_125 = arith.constant 0 : index
    %c0_126 = arith.constant 0 : index
    %344 = vector.load %arg3[%c0_124, %343, %c0_125, %c0_126] : memref<1x8x2x128xf32, #tpu.memory_space<vmem>>, vector<1x1x2x128xf32>
    %345 = vector.shape_cast %344 : vector<1x1x2x128xf32> to vector<2x128xf32>
    %c0_127 = arith.constant 0 : index
    %c0_128 = arith.constant 0 : index
    %346 = vector.load %arg7[%c0_127, %c0_128] : memref<2x32xf32, #tpu.memory_space<vmem>>, vector<2x32xf32>
    %c0_129 = arith.constant 0 : index
    %c0_130 = arith.constant 0 : index
    %347 = vector.load %arg8[%c0_129, %c0_130] : memref<2x32xf32, #tpu.memory_space<vmem>>, vector<2x32xf32>
    %348 = arith.truncf %346 : vector<2x32xf32> to vector<2x32xbf16>
    %cst_131 = arith.constant dense<0.000000e+00> : vector<2x128xf32>
    %349 = tpu.matmul %348, %5, %cst_131 {dimension_numbers = #tpu.dot_dimension_numbers<[1], [0], [0], [1], [0, 0, 1, 1], [], []>} : vector<2x32xbf16>, vector<32x128xbf16>, vector<2x128xf32> -> vector<2x128xf32>
    %350 = arith.addf %345, %349 : vector<2x128xf32>
    %351 = vector.extract_strided_slice %350 {offsets = [0, 0], sizes = [2, 32], strides = [1, 1]} : vector<2x128xf32> to vector<2x32xf32>
    %352 = arith.negf %351 : vector<2x32xf32>
    %353 = math.exp %352 : vector<2x32xf32>
    %cst_132 = arith.constant 1.000000e+00 : f32
    %354 = vector.broadcast %cst_132 : f32 to vector<2x32xf32>
    %355 = arith.addf %354, %353 : vector<2x32xf32>
    %356 = arith.divf %354, %355 : vector<2x32xf32>
    %357 = vector.extract_strided_slice %350 {offsets = [0, 32], sizes = [2, 32], strides = [1, 1]} : vector<2x128xf32> to vector<2x32xf32>
    %358 = arith.negf %357 : vector<2x32xf32>
    %359 = math.exp %358 : vector<2x32xf32>
    %cst_133 = arith.constant 1.000000e+00 : f32
    %360 = vector.broadcast %cst_133 : f32 to vector<2x32xf32>
    %361 = arith.addf %360, %359 : vector<2x32xf32>
    %362 = arith.divf %360, %361 : vector<2x32xf32>
    %363 = vector.extract_strided_slice %350 {offsets = [0, 64], sizes = [2, 32], strides = [1, 1]} : vector<2x128xf32> to vector<2x32xf32>
    %364 = math.tanh %363 : vector<2x32xf32>
    %365 = vector.extract_strided_slice %350 {offsets = [0, 96], sizes = [2, 32], strides = [1, 1]} : vector<2x128xf32> to vector<2x32xf32>
    %366 = arith.negf %365 : vector<2x32xf32>
    %367 = math.exp %366 : vector<2x32xf32>
    %cst_134 = arith.constant 1.000000e+00 : f32
    %368 = vector.broadcast %cst_134 : f32 to vector<2x32xf32>
    %369 = arith.addf %368, %367 : vector<2x32xf32>
    %370 = arith.divf %368, %369 : vector<2x32xf32>
    %371 = arith.mulf %362, %347 : vector<2x32xf32>
    %372 = arith.mulf %356, %364 : vector<2x32xf32>
    %373 = arith.addf %371, %372 : vector<2x32xf32>
    %374 = math.tanh %373 : vector<2x32xf32>
    %375 = arith.mulf %370, %374 : vector<2x32xf32>
    %376 = arith.addi %10, %342 : i32
    %377 = vector.broadcast %376 : i32 to vector<2x1xi32>
    %378 = arith.cmpi slt, %377, %3 : vector<2x1xi32>
    %379 = vector.shape_cast %378 : vector<2x1xi1> to vector<2x1xi1>
    %380 = vector.broadcast %379 : vector<2x1xi1> to vector<2x32xi1>
    %381 = arith.select %380, %375, %346 : vector<2x32xi1>, vector<2x32xf32>
    %c0_135 = arith.constant 0 : index
    %c0_136 = arith.constant 0 : index
    %382 = vector.load %arg7[%c0_135, %c0_136] : memref<2x32xf32, #tpu.memory_space<vmem>>, vector<2x32xf32>
    tpu.vector_store %arg7[%c0_135, %c0_136], %381 {strides = array<i32>} : memref<2x32xf32, #tpu.memory_space<vmem>>, vector<2x32xf32>,
    %383 = vector.shape_cast %378 : vector<2x1xi1> to vector<2x1xi1>
    %384 = vector.broadcast %383 : vector<2x1xi1> to vector<2x32xi1>
    %385 = arith.select %384, %373, %347 : vector<2x32xi1>, vector<2x32xf32>
    %c0_137 = arith.constant 0 : index
    %c0_138 = arith.constant 0 : index
    %386 = vector.load %arg8[%c0_137, %c0_138] : memref<2x32xf32, #tpu.memory_space<vmem>>, vector<2x32xf32>
    tpu.vector_store %arg8[%c0_137, %c0_138], %385 {strides = array<i32>} : memref<2x32xf32, #tpu.memory_space<vmem>>, vector<2x32xf32>,
    %cst_139 = arith.constant 0.000000e+00 : f32
    %387 = vector.shape_cast %378 : vector<2x1xi1> to vector<2x1xi1>
    %388 = vector.broadcast %387 : vector<2x1xi1> to vector<2x32xi1>
    %389 = vector.broadcast %cst_139 : f32 to vector<2x32xf32>
    %390 = arith.select %388, %375, %389 : vector<2x32xi1>, vector<2x32xf32>
    %391 = arith.truncf %390 : vector<2x32xf32> to vector<2x32xbf16>
    %c0_140 = arith.constant 0 : index
    %392 = arith.index_cast %342 : i32 to index
    %c0_141 = arith.constant 0 : index
    %c0_142 = arith.constant 0 : index
    %393 = vector.load %arg5[%c0_140, %392, %c0_141, %c0_142] : memref<1x8x2x32xbf16, #tpu.memory_space<vmem>>, vector<1x1x2x32xbf16>
    %394 = vector.shape_cast %393 : vector<1x1x2x32xbf16> to vector<2x32xbf16>
    %395 = vector.shape_cast %391 : vector<2x32xbf16> to vector<1x1x2x32xbf16>
    tpu.vector_store %arg5[%c0_140, %392, %c0_141, %c0_142], %395 {strides = array<i32>} : memref<1x8x2x32xbf16, #tpu.memory_space<vmem>>, vector<1x1x2x32xbf16>,
    %c-7_i32 = arith.constant -7 : i32
    %396 = arith.muli %arg0, %c-7_i32 : i32
    %c7_i32_143 = arith.constant 7 : i32
    %397 = arith.addi %c7_i32_143, %396 : i32
    %c0_144 = arith.constant 0 : index
    %398 = arith.index_cast %397 : i32 to index
    %c0_145 = arith.constant 0 : index
    %c0_146 = arith.constant 0 : index
    %399 = vector.load %arg3[%c0_144, %398, %c0_145, %c0_146] : memref<1x8x2x128xf32, #tpu.memory_space<vmem>>, vector<1x1x2x128xf32>
    %400 = vector.shape_cast %399 : vector<1x1x2x128xf32> to vector<2x128xf32>
    %c0_147 = arith.constant 0 : index
    %c0_148 = arith.constant 0 : index
    %401 = vector.load %arg7[%c0_147, %c0_148] : memref<2x32xf32, #tpu.memory_space<vmem>>, vector<2x32xf32>
    %c0_149 = arith.constant 0 : index
    %c0_150 = arith.constant 0 : index
    %402 = vector.load %arg8[%c0_149, %c0_150] : memref<2x32xf32, #tpu.memory_space<vmem>>, vector<2x32xf32>
    %403 = arith.truncf %401 : vector<2x32xf32> to vector<2x32xbf16>
    %cst_151 = arith.constant dense<0.000000e+00> : vector<2x128xf32>
    %404 = tpu.matmul %403, %5, %cst_151 {dimension_numbers = #tpu.dot_dimension_numbers<[1], [0], [0], [1], [0, 0, 1, 1], [], []>} : vector<2x32xbf16>, vector<32x128xbf16>, vector<2x128xf32> -> vector<2x128xf32>
    %405 = arith.addf %400, %404 : vector<2x128xf32>
    %406 = vector.extract_strided_slice %405 {offsets = [0, 0], sizes = [2, 32], strides = [1, 1]} : vector<2x128xf32> to vector<2x32xf32>
    %407 = arith.negf %406 : vector<2x32xf32>
    %408 = math.exp %407 : vector<2x32xf32>
    %cst_152 = arith.constant 1.000000e+00 : f32
    %409 = vector.broadcast %cst_152 : f32 to vector<2x32xf32>
    %410 = arith.addf %409, %408 : vector<2x32xf32>
    %411 = arith.divf %409, %410 : vector<2x32xf32>
    %412 = vector.extract_strided_slice %405 {offsets = [0, 32], sizes = [2, 32], strides = [1, 1]} : vector<2x128xf32> to vector<2x32xf32>
    %413 = arith.negf %412 : vector<2x32xf32>
    %414 = math.exp %413 : vector<2x32xf32>
    %cst_153 = arith.constant 1.000000e+00 : f32
    %415 = vector.broadcast %cst_153 : f32 to vector<2x32xf32>
    %416 = arith.addf %415, %414 : vector<2x32xf32>
    %417 = arith.divf %415, %416 : vector<2x32xf32>
    %418 = vector.extract_strided_slice %405 {offsets = [0, 64], sizes = [2, 32], strides = [1, 1]} : vector<2x128xf32> to vector<2x32xf32>
    %419 = math.tanh %418 : vector<2x32xf32>
    %420 = vector.extract_strided_slice %405 {offsets = [0, 96], sizes = [2, 32], strides = [1, 1]} : vector<2x128xf32> to vector<2x32xf32>
    %421 = arith.negf %420 : vector<2x32xf32>
    %422 = math.exp %421 : vector<2x32xf32>
    %cst_154 = arith.constant 1.000000e+00 : f32
    %423 = vector.broadcast %cst_154 : f32 to vector<2x32xf32>
    %424 = arith.addf %423, %422 : vector<2x32xf32>
    %425 = arith.divf %423, %424 : vector<2x32xf32>
    %426 = arith.mulf %417, %402 : vector<2x32xf32>
    %427 = arith.mulf %411, %419 : vector<2x32xf32>
    %428 = arith.addf %426, %427 : vector<2x32xf32>
    %429 = math.tanh %428 : vector<2x32xf32>
    %430 = arith.mulf %425, %429 : vector<2x32xf32>
    %431 = arith.addi %10, %397 : i32
    %432 = vector.broadcast %431 : i32 to vector<2x1xi32>
    %433 = arith.cmpi slt, %432, %3 : vector<2x1xi32>
    %434 = vector.shape_cast %433 : vector<2x1xi1> to vector<2x1xi1>
    %435 = vector.broadcast %434 : vector<2x1xi1> to vector<2x32xi1>
    %436 = arith.select %435, %430, %401 : vector<2x32xi1>, vector<2x32xf32>
    %c0_155 = arith.constant 0 : index
    %c0_156 = arith.constant 0 : index
    %437 = vector.load %arg7[%c0_155, %c0_156] : memref<2x32xf32, #tpu.memory_space<vmem>>, vector<2x32xf32>
    tpu.vector_store %arg7[%c0_155, %c0_156], %436 {strides = array<i32>} : memref<2x32xf32, #tpu.memory_space<vmem>>, vector<2x32xf32>,
    %438 = vector.shape_cast %433 : vector<2x1xi1> to vector<2x1xi1>
    %439 = vector.broadcast %438 : vector<2x1xi1> to vector<2x32xi1>
    %440 = arith.select %439, %428, %402 : vector<2x32xi1>, vector<2x32xf32>
    %c0_157 = arith.constant 0 : index
    %c0_158 = arith.constant 0 : index
    %441 = vector.load %arg8[%c0_157, %c0_158] : memref<2x32xf32, #tpu.memory_space<vmem>>, vector<2x32xf32>
    tpu.vector_store %arg8[%c0_157, %c0_158], %440 {strides = array<i32>} : memref<2x32xf32, #tpu.memory_space<vmem>>, vector<2x32xf32>,
    %cst_159 = arith.constant 0.000000e+00 : f32
    %442 = vector.shape_cast %433 : vector<2x1xi1> to vector<2x1xi1>
    %443 = vector.broadcast %442 : vector<2x1xi1> to vector<2x32xi1>
    %444 = vector.broadcast %cst_159 : f32 to vector<2x32xf32>
    %445 = arith.select %443, %430, %444 : vector<2x32xi1>, vector<2x32xf32>
    %446 = arith.truncf %445 : vector<2x32xf32> to vector<2x32xbf16>
    %c0_160 = arith.constant 0 : index
    %447 = arith.index_cast %397 : i32 to index
    %c0_161 = arith.constant 0 : index
    %c0_162 = arith.constant 0 : index
    %448 = vector.load %arg5[%c0_160, %447, %c0_161, %c0_162] : memref<1x8x2x32xbf16, #tpu.memory_space<vmem>>, vector<1x1x2x32xbf16>
    %449 = vector.shape_cast %448 : vector<1x1x2x32xbf16> to vector<2x32xbf16>
    %450 = vector.shape_cast %446 : vector<2x32xbf16> to vector<1x1x2x32xbf16>
    tpu.vector_store %arg5[%c0_160, %447, %c0_161, %c0_162], %450 {strides = array<i32>} : memref<1x8x2x32xbf16, #tpu.memory_space<vmem>>, vector<1x1x2x32xbf16>,
    %c0_i32_163 = arith.constant 0 : i32
    %451 = arith.cmpi eq, %arg1, %c0_i32_163 : i32
    %452 = arith.extui %451 : i1 to i32
    %c0_i32_164 = arith.constant 0 : i32
    %453 = arith.cmpi ne, %452, %c0_i32_164 : i32
    scf.if %453 {
      %c0_165 = arith.constant 0 : index
      %c0_166 = arith.constant 0 : index
      %454 = vector.load %arg7[%c0_165, %c0_166] : memref<2x32xf32, #tpu.memory_space<vmem>>, vector<2x32xf32>
      %c0_167 = arith.constant 0 : index
      %c0_168 = arith.constant 0 : index
      %c0_169 = arith.constant 0 : index
      %455 = vector.load %arg6[%c0_167, %c0_168, %c0_169] : memref<1x2x32xf32, #tpu.memory_space<vmem>>, vector<1x2x32xf32>
      %456 = vector.shape_cast %455 : vector<1x2x32xf32> to vector<2x32xf32>
      %457 = vector.shape_cast %454 : vector<2x32xf32> to vector<1x2x32xf32>
      tpu.vector_store %arg6[%c0_167, %c0_168, %c0_169], %457 {strides = array<i32>} : memref<1x2x32xf32, #tpu.memory_space<vmem>>, vector<1x2x32xf32>,
    } else {
    }
    return
  }
  func.func @transform_0(%arg0: i32, %arg1: i32) -> (i32, i32) {
    %c0_i32 = arith.constant 0 : i32
    %c0_i32_0 = arith.constant 0 : i32
    %c0_i32_1 = arith.constant 0 : i32
    return %c0_i32, %c0_i32_0 : i32, i32
  }
  func.func @transform_1(%arg0: i32, %arg1: i32) -> (i32, i32, i32, i32) {
    %c2_i32 = arith.constant 2 : i32
    %0 = arith.muli %c2_i32, %arg1 : i32
    %c0_i32 = arith.constant 0 : i32
    %1 = arith.subi %c0_i32, %0 : i32
    %2 = arith.muli %arg0, %1 : i32
    %3 = arith.addi %arg1, %2 : i32
    %c0_i32_0 = arith.constant 0 : i32
    %c0_i32_1 = arith.constant 0 : i32
    %c0_i32_2 = arith.constant 0 : i32
    return %arg0, %3, %c0_i32_0, %c0_i32_1 : i32, i32, i32, i32
  }
  func.func @transform_2(%arg0: i32, %arg1: i32) -> (i32, i32, i32) {
    %c0_i32 = arith.constant 0 : i32
    %c0_i32_0 = arith.constant 0 : i32
    %c0_i32_1 = arith.constant 0 : i32
    return %arg0, %c0_i32, %c0_i32_0 : i32, i32, i32
  }
  func.func @transform_3(%arg0: i32, %arg1: i32) -> (i32, i32, i32, i32) {
    %c2_i32 = arith.constant 2 : i32
    %0 = arith.muli %c2_i32, %arg1 : i32
    %c0_i32 = arith.constant 0 : i32
    %1 = arith.subi %c0_i32, %0 : i32
    %2 = arith.muli %arg0, %1 : i32
    %3 = arith.addi %arg1, %2 : i32
    %c0_i32_0 = arith.constant 0 : i32
    %c0_i32_1 = arith.constant 0 : i32
    %c0_i32_2 = arith.constant 0 : i32
    return %arg0, %3, %c0_i32_0, %c0_i32_1 : i32, i32, i32, i32
  }
  func.func @transform_4(%arg0: i32, %arg1: i32) -> (i32, i32, i32) {
    %c0_i32 = arith.constant 0 : i32
    %c0_i32_0 = arith.constant 0 : i32
    %c0_i32_1 = arith.constant 0 : i32
    return %arg0, %c0_i32, %c0_i32_0 : i32, i32, i32
  }
}

module attributes {stable_mosaic.version = 11 : i64} {
  func.func @_bilstm_kernel(%arg0: i32, %arg1: i32, %arg2: memref<2x1xi32, #tpu.memory_space<vmem>>, %arg3: memref<1x8x2x128xf32, #tpu.memory_space<vmem>>, %arg4: memref<1x32x128xbf16, #tpu.memory_space<vmem>>, %arg5: memref<1x8x2x32xbf16, #tpu.memory_space<vmem>>, %arg6: memref<1x2x32xf32, #tpu.memory_space<vmem>>, %arg7: memref<2x32xf32, #tpu.memory_space<vmem>>, %arg8: memref<2x32xf32, #tpu.memory_space<vmem>>) attributes {dimension_semantics = [#tpu.dimension_semantics<parallel>, #tpu.dimension_semantics<arbitrary>], iteration_bounds = array<i64: 2, 1>, scalar_prefetch = 0 : i64, scratch_operands = 2 : i64, tpu.core_type = #tpu.core_type<tc>, window_params = [{pipeline_mode = #tpu.pipeline_mode<synchronous>, transform_indices = @transform_0, window_bounds = array<i64: 2, 1>}, {transform_indices = @transform_1, window_bounds = array<i64: 1, 8, 2, 128>}, {transform_indices = @transform_2, window_bounds = array<i64: 1, 32, 128>}, {transform_indices = @transform_3, window_bounds = array<i64: 1, 8, 2, 32>}, {transform_indices = @transform_4, window_bounds = array<i64: 1, 2, 32>}]} {
    %c0_i32 = arith.constant 0 : i32
    %0 = arith.cmpi eq, %arg1, %c0_i32 : i32
    %1 = arith.extui %0 : i1 to i32
    %c0_i32_0 = arith.constant 0 : i32
    %2 = arith.cmpi ne, %1, %c0_i32_0 : i32
    scf.if %2 {
      %cst_165 = arith.constant 0.000000e+00 : f32
      %454 = vector.broadcast %cst_165 : f32 to vector<2x32xf32>
      %c0_166 = arith.constant 0 : index
      %c0_167 = arith.constant 0 : index
      %455 = vector.load %arg7[%c0_166, %c0_167] : memref<2x32xf32, #tpu.memory_space<vmem>>, vector<2x32xf32>
      tpu.vector_store %arg7[%c0_166, %c0_167], %454 {strides = array<i32>} : memref<2x32xf32, #tpu.memory_space<vmem>>, vector<2x32xf32>,
      %cst_168 = arith.constant 0.000000e+00 : f32
      %456 = vector.broadcast %cst_168 : f32 to vector<2x32xf32>
      %c0_169 = arith.constant 0 : index
      %c0_170 = arith.constant 0 : index
      %457 = vector.load %arg8[%c0_169, %c0_170] : memref<2x32xf32, #tpu.memory_space<vmem>>, vector<2x32xf32>
      tpu.vector_store %arg8[%c0_169, %c0_170], %456 {strides = array<i32>} : memref<2x32xf32, #tpu.memory_space<vmem>>, vector<2x32xf32>,
    } else {
    }
    %c0 = arith.constant 0 : index
    %c0_1 = arith.constant 0 : index
    %3 = vector.load %arg2[%c0, %c0_1] : memref<2x1xi32, #tpu.memory_space<vmem>>, vector<2x1xi32>
    %c0_2 = arith.constant 0 : index
    %c0_3 = arith.constant 0 : index
    %c0_4 = arith.constant 0 : index
    %4 = vector.load %arg4[%c0_2, %c0_3, %c0_4] : memref<1x32x128xbf16, #tpu.memory_space<vmem>>, vector<1x32x128xbf16>
    %5 = vector.shape_cast %4 : vector<1x32x128xbf16> to vector<32x128xbf16>
    %c2_i32 = arith.constant 2 : i32
    %6 = arith.muli %c2_i32, %arg1 : i32
    %c0_i32_5 = arith.constant 0 : i32
    %7 = arith.subi %c0_i32_5, %6 : i32
    %8 = arith.muli %arg0, %7 : i32
    %9 = arith.addi %arg1, %8 : i32
    %c8_i32 = arith.constant 8 : i32
    %10 = arith.muli %9, %c8_i32 : i32
    %c7_i32 = arith.constant 7 : i32
    %11 = arith.muli %arg0, %c7_i32 : i32
    %c0_i32_6 = arith.constant 0 : i32
    %12 = arith.addi %c0_i32_6, %11 : i32
    %c0_7 = arith.constant 0 : index
    %13 = arith.index_cast %12 : i32 to index
    %c0_8 = arith.constant 0 : index
    %c0_9 = arith.constant 0 : index
    %14 = vector.load %arg3[%c0_7, %13, %c0_8, %c0_9] : memref<1x8x2x128xf32, #tpu.memory_space<vmem>>, vector<1x1x2x128xf32>
    %15 = vector.shape_cast %14 : vector<1x1x2x128xf32> to vector<2x128xf32>
    %c0_10 = arith.constant 0 : index
    %c0_11 = arith.constant 0 : index
    %16 = vector.load %arg7[%c0_10, %c0_11] : memref<2x32xf32, #tpu.memory_space<vmem>>, vector<2x32xf32>
    %c0_12 = arith.constant 0 : index
    %c0_13 = arith.constant 0 : index
    %17 = vector.load %arg8[%c0_12, %c0_13] : memref<2x32xf32, #tpu.memory_space<vmem>>, vector<2x32xf32>
    %18 = arith.truncf %16 : vector<2x32xf32> to vector<2x32xbf16>
    %cst = arith.constant dense<0.000000e+00> : vector<2x128xf32>
    %19 = tpu.matmul %18, %5, %cst {dimension_numbers = #tpu.dot_dimension_numbers<[1], [0], [0], [1], [0, 0, 1, 1], [], []>} : vector<2x32xbf16>, vector<32x128xbf16>, vector<2x128xf32> -> vector<2x128xf32>
    %20 = arith.addf %15, %19 : vector<2x128xf32>
    %21 = vector.extract_strided_slice %20 {offsets = [0, 0], sizes = [2, 32], strides = [1, 1]} : vector<2x128xf32> to vector<2x32xf32>
    %22 = arith.negf %21 : vector<2x32xf32>
    %23 = math.exp %22 : vector<2x32xf32>
    %cst_14 = arith.constant 1.000000e+00 : f32
    %24 = vector.broadcast %cst_14 : f32 to vector<2x32xf32>
    %25 = arith.addf %24, %23 : vector<2x32xf32>
    %26 = arith.divf %24, %25 : vector<2x32xf32>
    %27 = vector.extract_strided_slice %20 {offsets = [0, 32], sizes = [2, 32], strides = [1, 1]} : vector<2x128xf32> to vector<2x32xf32>
    %28 = arith.negf %27 : vector<2x32xf32>
    %29 = math.exp %28 : vector<2x32xf32>
    %cst_15 = arith.constant 1.000000e+00 : f32
    %30 = vector.broadcast %cst_15 : f32 to vector<2x32xf32>
    %31 = arith.addf %30, %29 : vector<2x32xf32>
    %32 = arith.divf %30, %31 : vector<2x32xf32>
    %33 = vector.extract_strided_slice %20 {offsets = [0, 64], sizes = [2, 32], strides = [1, 1]} : vector<2x128xf32> to vector<2x32xf32>
    %34 = math.tanh %33 : vector<2x32xf32>
    %35 = vector.extract_strided_slice %20 {offsets = [0, 96], sizes = [2, 32], strides = [1, 1]} : vector<2x128xf32> to vector<2x32xf32>
    %36 = arith.negf %35 : vector<2x32xf32>
    %37 = math.exp %36 : vector<2x32xf32>
    %cst_16 = arith.constant 1.000000e+00 : f32
    %38 = vector.broadcast %cst_16 : f32 to vector<2x32xf32>
    %39 = arith.addf %38, %37 : vector<2x32xf32>
    %40 = arith.divf %38, %39 : vector<2x32xf32>
    %41 = arith.mulf %32, %17 : vector<2x32xf32>
    %42 = arith.mulf %26, %34 : vector<2x32xf32>
    %43 = arith.addf %41, %42 : vector<2x32xf32>
    %44 = math.tanh %43 : vector<2x32xf32>
    %45 = arith.mulf %40, %44 : vector<2x32xf32>
    %46 = arith.addi %10, %12 : i32
    %47 = vector.broadcast %46 : i32 to vector<2x1xi32>
    %48 = arith.cmpi slt, %47, %3 : vector<2x1xi32>
    %49 = vector.shape_cast %48 : vector<2x1xi1> to vector<2x1xi1>
    %50 = vector.broadcast %49 : vector<2x1xi1> to vector<2x32xi1>
    %51 = arith.select %50, %45, %16 : vector<2x32xi1>, vector<2x32xf32>
    %c0_17 = arith.constant 0 : index
    %c0_18 = arith.constant 0 : index
    %52 = vector.load %arg7[%c0_17, %c0_18] : memref<2x32xf32, #tpu.memory_space<vmem>>, vector<2x32xf32>
    tpu.vector_store %arg7[%c0_17, %c0_18], %51 {strides = array<i32>} : memref<2x32xf32, #tpu.memory_space<vmem>>, vector<2x32xf32>,
    %53 = vector.shape_cast %48 : vector<2x1xi1> to vector<2x1xi1>
    %54 = vector.broadcast %53 : vector<2x1xi1> to vector<2x32xi1>
    %55 = arith.select %54, %43, %17 : vector<2x32xi1>, vector<2x32xf32>
    %c0_19 = arith.constant 0 : index
    %c0_20 = arith.constant 0 : index
    %56 = vector.load %arg8[%c0_19, %c0_20] : memref<2x32xf32, #tpu.memory_space<vmem>>, vector<2x32xf32>
    tpu.vector_store %arg8[%c0_19, %c0_20], %55 {strides = array<i32>} : memref<2x32xf32, #tpu.memory_space<vmem>>, vector<2x32xf32>,
    %cst_21 = arith.constant 0.000000e+00 : f32
    %57 = vector.shape_cast %48 : vector<2x1xi1> to vector<2x1xi1>
    %58 = vector.broadcast %57 : vector<2x1xi1> to vector<2x32xi1>
    %59 = vector.broadcast %cst_21 : f32 to vector<2x32xf32>
    %60 = arith.select %58, %45, %59 : vector<2x32xi1>, vector<2x32xf32>
    %61 = arith.truncf %60 : vector<2x32xf32> to vector<2x32xbf16>
    %c0_22 = arith.constant 0 : index
    %62 = arith.index_cast %12 : i32 to index
    %c0_23 = arith.constant 0 : index
    %c0_24 = arith.constant 0 : index
    %63 = vector.load %arg5[%c0_22, %62, %c0_23, %c0_24] : memref<1x8x2x32xbf16, #tpu.memory_space<vmem>>, vector<1x1x2x32xbf16>
    %64 = vector.shape_cast %63 : vector<1x1x2x32xbf16> to vector<2x32xbf16>
    %65 = vector.shape_cast %61 : vector<2x32xbf16> to vector<1x1x2x32xbf16>
    tpu.vector_store %arg5[%c0_22, %62, %c0_23, %c0_24], %65 {strides = array<i32>} : memref<1x8x2x32xbf16, #tpu.memory_space<vmem>>, vector<1x1x2x32xbf16>,
    %c5_i32 = arith.constant 5 : i32
    %66 = arith.muli %arg0, %c5_i32 : i32
    %c1_i32 = arith.constant 1 : i32
    %67 = arith.addi %c1_i32, %66 : i32
    %c0_25 = arith.constant 0 : index
    %68 = arith.index_cast %67 : i32 to index
    %c0_26 = arith.constant 0 : index
    %c0_27 = arith.constant 0 : index
    %69 = vector.load %arg3[%c0_25, %68, %c0_26, %c0_27] : memref<1x8x2x128xf32, #tpu.memory_space<vmem>>, vector<1x1x2x128xf32>
    %70 = vector.shape_cast %69 : vector<1x1x2x128xf32> to vector<2x128xf32>
    %c0_28 = arith.constant 0 : index
    %c0_29 = arith.constant 0 : index
    %71 = vector.load %arg7[%c0_28, %c0_29] : memref<2x32xf32, #tpu.memory_space<vmem>>, vector<2x32xf32>
    %c0_30 = arith.constant 0 : index
    %c0_31 = arith.constant 0 : index
    %72 = vector.load %arg8[%c0_30, %c0_31] : memref<2x32xf32, #tpu.memory_space<vmem>>, vector<2x32xf32>
    %73 = arith.truncf %71 : vector<2x32xf32> to vector<2x32xbf16>
    %cst_32 = arith.constant dense<0.000000e+00> : vector<2x128xf32>
    %74 = tpu.matmul %73, %5, %cst_32 {dimension_numbers = #tpu.dot_dimension_numbers<[1], [0], [0], [1], [0, 0, 1, 1], [], []>} : vector<2x32xbf16>, vector<32x128xbf16>, vector<2x128xf32> -> vector<2x128xf32>
    %75 = arith.addf %70, %74 : vector<2x128xf32>
    %76 = vector.extract_strided_slice %75 {offsets = [0, 0], sizes = [2, 32], strides = [1, 1]} : vector<2x128xf32> to vector<2x32xf32>
    %77 = arith.negf %76 : vector<2x32xf32>
    %78 = math.exp %77 : vector<2x32xf32>
    %cst_33 = arith.constant 1.000000e+00 : f32
    %79 = vector.broadcast %cst_33 : f32 to vector<2x32xf32>
    %80 = arith.addf %79, %78 : vector<2x32xf32>
    %81 = arith.divf %79, %80 : vector<2x32xf32>
    %82 = vector.extract_strided_slice %75 {offsets = [0, 32], sizes = [2, 32], strides = [1, 1]} : vector<2x128xf32> to vector<2x32xf32>
    %83 = arith.negf %82 : vector<2x32xf32>
    %84 = math.exp %83 : vector<2x32xf32>
    %cst_34 = arith.constant 1.000000e+00 : f32
    %85 = vector.broadcast %cst_34 : f32 to vector<2x32xf32>
    %86 = arith.addf %85, %84 : vector<2x32xf32>
    %87 = arith.divf %85, %86 : vector<2x32xf32>
    %88 = vector.extract_strided_slice %75 {offsets = [0, 64], sizes = [2, 32], strides = [1, 1]} : vector<2x128xf32> to vector<2x32xf32>
    %89 = math.tanh %88 : vector<2x32xf32>
    %90 = vector.extract_strided_slice %75 {offsets = [0, 96], sizes = [2, 32], strides = [1, 1]} : vector<2x128xf32> to vector<2x32xf32>
    %91 = arith.negf %90 : vector<2x32xf32>
    %92 = math.exp %91 : vector<2x32xf32>
    %cst_35 = arith.constant 1.000000e+00 : f32
    %93 = vector.broadcast %cst_35 : f32 to vector<2x32xf32>
    %94 = arith.addf %93, %92 : vector<2x32xf32>
    %95 = arith.divf %93, %94 : vector<2x32xf32>
    %96 = arith.mulf %87, %72 : vector<2x32xf32>
    %97 = arith.mulf %81, %89 : vector<2x32xf32>
    %98 = arith.addf %96, %97 : vector<2x32xf32>
    %99 = math.tanh %98 : vector<2x32xf32>
    %100 = arith.mulf %95, %99 : vector<2x32xf32>
    %101 = arith.addi %10, %67 : i32
    %102 = vector.broadcast %101 : i32 to vector<2x1xi32>
    %103 = arith.cmpi slt, %102, %3 : vector<2x1xi32>
    %104 = vector.shape_cast %103 : vector<2x1xi1> to vector<2x1xi1>
    %105 = vector.broadcast %104 : vector<2x1xi1> to vector<2x32xi1>
    %106 = arith.select %105, %100, %71 : vector<2x32xi1>, vector<2x32xf32>
    %c0_36 = arith.constant 0 : index
    %c0_37 = arith.constant 0 : index
    %107 = vector.load %arg7[%c0_36, %c0_37] : memref<2x32xf32, #tpu.memory_space<vmem>>, vector<2x32xf32>
    tpu.vector_store %arg7[%c0_36, %c0_37], %106 {strides = array<i32>} : memref<2x32xf32, #tpu.memory_space<vmem>>, vector<2x32xf32>,
    %108 = vector.shape_cast %103 : vector<2x1xi1> to vector<2x1xi1>
    %109 = vector.broadcast %108 : vector<2x1xi1> to vector<2x32xi1>
    %110 = arith.select %109, %98, %72 : vector<2x32xi1>, vector<2x32xf32>
    %c0_38 = arith.constant 0 : index
    %c0_39 = arith.constant 0 : index
    %111 = vector.load %arg8[%c0_38, %c0_39] : memref<2x32xf32, #tpu.memory_space<vmem>>, vector<2x32xf32>
    tpu.vector_store %arg8[%c0_38, %c0_39], %110 {strides = array<i32>} : memref<2x32xf32, #tpu.memory_space<vmem>>, vector<2x32xf32>,
    %cst_40 = arith.constant 0.000000e+00 : f32
    %112 = vector.shape_cast %103 : vector<2x1xi1> to vector<2x1xi1>
    %113 = vector.broadcast %112 : vector<2x1xi1> to vector<2x32xi1>
    %114 = vector.broadcast %cst_40 : f32 to vector<2x32xf32>
    %115 = arith.select %113, %100, %114 : vector<2x32xi1>, vector<2x32xf32>
    %116 = arith.truncf %115 : vector<2x32xf32> to vector<2x32xbf16>
    %c0_41 = arith.constant 0 : index
    %117 = arith.index_cast %67 : i32 to index
    %c0_42 = arith.constant 0 : index
    %c0_43 = arith.constant 0 : index
    %118 = vector.load %arg5[%c0_41, %117, %c0_42, %c0_43] : memref<1x8x2x32xbf16, #tpu.memory_space<vmem>>, vector<1x1x2x32xbf16>
    %119 = vector.shape_cast %118 : vector<1x1x2x32xbf16> to vector<2x32xbf16>
    %120 = vector.shape_cast %116 : vector<2x32xbf16> to vector<1x1x2x32xbf16>
    tpu.vector_store %arg5[%c0_41, %117, %c0_42, %c0_43], %120 {strides = array<i32>} : memref<1x8x2x32xbf16, #tpu.memory_space<vmem>>, vector<1x1x2x32xbf16>,
    %c3_i32 = arith.constant 3 : i32
    %121 = arith.muli %arg0, %c3_i32 : i32
    %c2_i32_44 = arith.constant 2 : i32
    %122 = arith.addi %c2_i32_44, %121 : i32
    %c0_45 = arith.constant 0 : index
    %123 = arith.index_cast %122 : i32 to index
    %c0_46 = arith.constant 0 : index
    %c0_47 = arith.constant 0 : index
    %124 = vector.load %arg3[%c0_45, %123, %c0_46, %c0_47] : memref<1x8x2x128xf32, #tpu.memory_space<vmem>>, vector<1x1x2x128xf32>
    %125 = vector.shape_cast %124 : vector<1x1x2x128xf32> to vector<2x128xf32>
    %c0_48 = arith.constant 0 : index
    %c0_49 = arith.constant 0 : index
    %126 = vector.load %arg7[%c0_48, %c0_49] : memref<2x32xf32, #tpu.memory_space<vmem>>, vector<2x32xf32>
    %c0_50 = arith.constant 0 : index
    %c0_51 = arith.constant 0 : index
    %127 = vector.load %arg8[%c0_50, %c0_51] : memref<2x32xf32, #tpu.memory_space<vmem>>, vector<2x32xf32>
    %128 = arith.truncf %126 : vector<2x32xf32> to vector<2x32xbf16>
    %cst_52 = arith.constant dense<0.000000e+00> : vector<2x128xf32>
    %129 = tpu.matmul %128, %5, %cst_52 {dimension_numbers = #tpu.dot_dimension_numbers<[1], [0], [0], [1], [0, 0, 1, 1], [], []>} : vector<2x32xbf16>, vector<32x128xbf16>, vector<2x128xf32> -> vector<2x128xf32>
    %130 = arith.addf %125, %129 : vector<2x128xf32>
    %131 = vector.extract_strided_slice %130 {offsets = [0, 0], sizes = [2, 32], strides = [1, 1]} : vector<2x128xf32> to vector<2x32xf32>
    %132 = arith.negf %131 : vector<2x32xf32>
    %133 = math.exp %132 : vector<2x32xf32>
    %cst_53 = arith.constant 1.000000e+00 : f32
    %134 = vector.broadcast %cst_53 : f32 to vector<2x32xf32>
    %135 = arith.addf %134, %133 : vector<2x32xf32>
    %136 = arith.divf %134, %135 : vector<2x32xf32>
    %137 = vector.extract_strided_slice %130 {offsets = [0, 32], sizes = [2, 32], strides = [1, 1]} : vector<2x128xf32> to vector<2x32xf32>
    %138 = arith.negf %137 : vector<2x32xf32>
    %139 = math.exp %138 : vector<2x32xf32>
    %cst_54 = arith.constant 1.000000e+00 : f32
    %140 = vector.broadcast %cst_54 : f32 to vector<2x32xf32>
    %141 = arith.addf %140, %139 : vector<2x32xf32>
    %142 = arith.divf %140, %141 : vector<2x32xf32>
    %143 = vector.extract_strided_slice %130 {offsets = [0, 64], sizes = [2, 32], strides = [1, 1]} : vector<2x128xf32> to vector<2x32xf32>
    %144 = math.tanh %143 : vector<2x32xf32>
    %145 = vector.extract_strided_slice %130 {offsets = [0, 96], sizes = [2, 32], strides = [1, 1]} : vector<2x128xf32> to vector<2x32xf32>
    %146 = arith.negf %145 : vector<2x32xf32>
    %147 = math.exp %146 : vector<2x32xf32>
    %cst_55 = arith.constant 1.000000e+00 : f32
    %148 = vector.broadcast %cst_55 : f32 to vector<2x32xf32>
    %149 = arith.addf %148, %147 : vector<2x32xf32>
    %150 = arith.divf %148, %149 : vector<2x32xf32>
    %151 = arith.mulf %142, %127 : vector<2x32xf32>
    %152 = arith.mulf %136, %144 : vector<2x32xf32>
    %153 = arith.addf %151, %152 : vector<2x32xf32>
    %154 = math.tanh %153 : vector<2x32xf32>
    %155 = arith.mulf %150, %154 : vector<2x32xf32>
    %156 = arith.addi %10, %122 : i32
    %157 = vector.broadcast %156 : i32 to vector<2x1xi32>
    %158 = arith.cmpi slt, %157, %3 : vector<2x1xi32>
    %159 = vector.shape_cast %158 : vector<2x1xi1> to vector<2x1xi1>
    %160 = vector.broadcast %159 : vector<2x1xi1> to vector<2x32xi1>
    %161 = arith.select %160, %155, %126 : vector<2x32xi1>, vector<2x32xf32>
    %c0_56 = arith.constant 0 : index
    %c0_57 = arith.constant 0 : index
    %162 = vector.load %arg7[%c0_56, %c0_57] : memref<2x32xf32, #tpu.memory_space<vmem>>, vector<2x32xf32>
    tpu.vector_store %arg7[%c0_56, %c0_57], %161 {strides = array<i32>} : memref<2x32xf32, #tpu.memory_space<vmem>>, vector<2x32xf32>,
    %163 = vector.shape_cast %158 : vector<2x1xi1> to vector<2x1xi1>
    %164 = vector.broadcast %163 : vector<2x1xi1> to vector<2x32xi1>
    %165 = arith.select %164, %153, %127 : vector<2x32xi1>, vector<2x32xf32>
    %c0_58 = arith.constant 0 : index
    %c0_59 = arith.constant 0 : index
    %166 = vector.load %arg8[%c0_58, %c0_59] : memref<2x32xf32, #tpu.memory_space<vmem>>, vector<2x32xf32>
    tpu.vector_store %arg8[%c0_58, %c0_59], %165 {strides = array<i32>} : memref<2x32xf32, #tpu.memory_space<vmem>>, vector<2x32xf32>,
    %cst_60 = arith.constant 0.000000e+00 : f32
    %167 = vector.shape_cast %158 : vector<2x1xi1> to vector<2x1xi1>
    %168 = vector.broadcast %167 : vector<2x1xi1> to vector<2x32xi1>
    %169 = vector.broadcast %cst_60 : f32 to vector<2x32xf32>
    %170 = arith.select %168, %155, %169 : vector<2x32xi1>, vector<2x32xf32>
    %171 = arith.truncf %170 : vector<2x32xf32> to vector<2x32xbf16>
    %c0_61 = arith.constant 0 : index
    %172 = arith.index_cast %122 : i32 to index
    %c0_62 = arith.constant 0 : index
    %c0_63 = arith.constant 0 : index
    %173 = vector.load %arg5[%c0_61, %172, %c0_62, %c0_63] : memref<1x8x2x32xbf16, #tpu.memory_space<vmem>>, vector<1x1x2x32xbf16>
    %174 = vector.shape_cast %173 : vector<1x1x2x32xbf16> to vector<2x32xbf16>
    %175 = vector.shape_cast %171 : vector<2x32xbf16> to vector<1x1x2x32xbf16>
    tpu.vector_store %arg5[%c0_61, %172, %c0_62, %c0_63], %175 {strides = array<i32>} : memref<1x8x2x32xbf16, #tpu.memory_space<vmem>>, vector<1x1x2x32xbf16>,
    %c1_i32_64 = arith.constant 1 : i32
    %176 = arith.muli %arg0, %c1_i32_64 : i32
    %c3_i32_65 = arith.constant 3 : i32
    %177 = arith.addi %c3_i32_65, %176 : i32
    %c0_66 = arith.constant 0 : index
    %178 = arith.index_cast %177 : i32 to index
    %c0_67 = arith.constant 0 : index
    %c0_68 = arith.constant 0 : index
    %179 = vector.load %arg3[%c0_66, %178, %c0_67, %c0_68] : memref<1x8x2x128xf32, #tpu.memory_space<vmem>>, vector<1x1x2x128xf32>
    %180 = vector.shape_cast %179 : vector<1x1x2x128xf32> to vector<2x128xf32>
    %c0_69 = arith.constant 0 : index
    %c0_70 = arith.constant 0 : index
    %181 = vector.load %arg7[%c0_69, %c0_70] : memref<2x32xf32, #tpu.memory_space<vmem>>, vector<2x32xf32>
    %c0_71 = arith.constant 0 : index
    %c0_72 = arith.constant 0 : index
    %182 = vector.load %arg8[%c0_71, %c0_72] : memref<2x32xf32, #tpu.memory_space<vmem>>, vector<2x32xf32>
    %183 = arith.truncf %181 : vector<2x32xf32> to vector<2x32xbf16>
    %cst_73 = arith.constant dense<0.000000e+00> : vector<2x128xf32>
    %184 = tpu.matmul %183, %5, %cst_73 {dimension_numbers = #tpu.dot_dimension_numbers<[1], [0], [0], [1], [0, 0, 1, 1], [], []>} : vector<2x32xbf16>, vector<32x128xbf16>, vector<2x128xf32> -> vector<2x128xf32>
    %185 = arith.addf %180, %184 : vector<2x128xf32>
    %186 = vector.extract_strided_slice %185 {offsets = [0, 0], sizes = [2, 32], strides = [1, 1]} : vector<2x128xf32> to vector<2x32xf32>
    %187 = arith.negf %186 : vector<2x32xf32>
    %188 = math.exp %187 : vector<2x32xf32>
    %cst_74 = arith.constant 1.000000e+00 : f32
    %189 = vector.broadcast %cst_74 : f32 to vector<2x32xf32>
    %190 = arith.addf %189, %188 : vector<2x32xf32>
    %191 = arith.divf %189, %190 : vector<2x32xf32>
    %192 = vector.extract_strided_slice %185 {offsets = [0, 32], sizes = [2, 32], strides = [1, 1]} : vector<2x128xf32> to vector<2x32xf32>
    %193 = arith.negf %192 : vector<2x32xf32>
    %194 = math.exp %193 : vector<2x32xf32>
    %cst_75 = arith.constant 1.000000e+00 : f32
    %195 = vector.broadcast %cst_75 : f32 to vector<2x32xf32>
    %196 = arith.addf %195, %194 : vector<2x32xf32>
    %197 = arith.divf %195, %196 : vector<2x32xf32>
    %198 = vector.extract_strided_slice %185 {offsets = [0, 64], sizes = [2, 32], strides = [1, 1]} : vector<2x128xf32> to vector<2x32xf32>
    %199 = math.tanh %198 : vector<2x32xf32>
    %200 = vector.extract_strided_slice %185 {offsets = [0, 96], sizes = [2, 32], strides = [1, 1]} : vector<2x128xf32> to vector<2x32xf32>
    %201 = arith.negf %200 : vector<2x32xf32>
    %202 = math.exp %201 : vector<2x32xf32>
    %cst_76 = arith.constant 1.000000e+00 : f32
    %203 = vector.broadcast %cst_76 : f32 to vector<2x32xf32>
    %204 = arith.addf %203, %202 : vector<2x32xf32>
    %205 = arith.divf %203, %204 : vector<2x32xf32>
    %206 = arith.mulf %197, %182 : vector<2x32xf32>
    %207 = arith.mulf %191, %199 : vector<2x32xf32>
    %208 = arith.addf %206, %207 : vector<2x32xf32>
    %209 = math.tanh %208 : vector<2x32xf32>
    %210 = arith.mulf %205, %209 : vector<2x32xf32>
    %211 = arith.addi %10, %177 : i32
    %212 = vector.broadcast %211 : i32 to vector<2x1xi32>
    %213 = arith.cmpi slt, %212, %3 : vector<2x1xi32>
    %214 = vector.shape_cast %213 : vector<2x1xi1> to vector<2x1xi1>
    %215 = vector.broadcast %214 : vector<2x1xi1> to vector<2x32xi1>
    %216 = arith.select %215, %210, %181 : vector<2x32xi1>, vector<2x32xf32>
    %c0_77 = arith.constant 0 : index
    %c0_78 = arith.constant 0 : index
    %217 = vector.load %arg7[%c0_77, %c0_78] : memref<2x32xf32, #tpu.memory_space<vmem>>, vector<2x32xf32>
    tpu.vector_store %arg7[%c0_77, %c0_78], %216 {strides = array<i32>} : memref<2x32xf32, #tpu.memory_space<vmem>>, vector<2x32xf32>,
    %218 = vector.shape_cast %213 : vector<2x1xi1> to vector<2x1xi1>
    %219 = vector.broadcast %218 : vector<2x1xi1> to vector<2x32xi1>
    %220 = arith.select %219, %208, %182 : vector<2x32xi1>, vector<2x32xf32>
    %c0_79 = arith.constant 0 : index
    %c0_80 = arith.constant 0 : index
    %221 = vector.load %arg8[%c0_79, %c0_80] : memref<2x32xf32, #tpu.memory_space<vmem>>, vector<2x32xf32>
    tpu.vector_store %arg8[%c0_79, %c0_80], %220 {strides = array<i32>} : memref<2x32xf32, #tpu.memory_space<vmem>>, vector<2x32xf32>,
    %cst_81 = arith.constant 0.000000e+00 : f32
    %222 = vector.shape_cast %213 : vector<2x1xi1> to vector<2x1xi1>
    %223 = vector.broadcast %222 : vector<2x1xi1> to vector<2x32xi1>
    %224 = vector.broadcast %cst_81 : f32 to vector<2x32xf32>
    %225 = arith.select %223, %210, %224 : vector<2x32xi1>, vector<2x32xf32>
    %226 = arith.truncf %225 : vector<2x32xf32> to vector<2x32xbf16>
    %c0_82 = arith.constant 0 : index
    %227 = arith.index_cast %177 : i32 to index
    %c0_83 = arith.constant 0 : index
    %c0_84 = arith.constant 0 : index
    %228 = vector.load %arg5[%c0_82, %227, %c0_83, %c0_84] : memref<1x8x2x32xbf16, #tpu.memory_space<vmem>>, vector<1x1x2x32xbf16>
    %229 = vector.shape_cast %228 : vector<1x1x2x32xbf16> to vector<2x32xbf16>
    %230 = vector.shape_cast %226 : vector<2x32xbf16> to vector<1x1x2x32xbf16>
    tpu.vector_store %arg5[%c0_82, %227, %c0_83, %c0_84], %230 {strides = array<i32>} : memref<1x8x2x32xbf16, #tpu.memory_space<vmem>>, vector<1x1x2x32xbf16>,
    %c-1_i32 = arith.constant -1 : i32
    %231 = arith.muli %arg0, %c-1_i32 : i32
    %c4_i32 = arith.constant 4 : i32
    %232 = arith.addi %c4_i32, %231 : i32
    %c0_85 = arith.constant 0 : index
    %233 = arith.index_cast %232 : i32 to index
    %c0_86 = arith.constant 0 : index
    %c0_87 = arith.constant 0 : index
    %234 = vector.load %arg3[%c0_85, %233, %c0_86, %c0_87] : memref<1x8x2x128xf32, #tpu.memory_space<vmem>>, vector<1x1x2x128xf32>
    %235 = vector.shape_cast %234 : vector<1x1x2x128xf32> to vector<2x128xf32>
    %c0_88 = arith.constant 0 : index
    %c0_89 = arith.constant 0 : index
    %236 = vector.load %arg7[%c0_88, %c0_89] : memref<2x32xf32, #tpu.memory_space<vmem>>, vector<2x32xf32>
    %c0_90 = arith.constant 0 : index
    %c0_91 = arith.constant 0 : index
    %237 = vector.load %arg8[%c0_90, %c0_91] : memref<2x32xf32, #tpu.memory_space<vmem>>, vector<2x32xf32>
    %238 = arith.truncf %236 : vector<2x32xf32> to vector<2x32xbf16>
    %cst_92 = arith.constant dense<0.000000e+00> : vector<2x128xf32>
    %239 = tpu.matmul %238, %5, %cst_92 {dimension_numbers = #tpu.dot_dimension_numbers<[1], [0], [0], [1], [0, 0, 1, 1], [], []>} : vector<2x32xbf16>, vector<32x128xbf16>, vector<2x128xf32> -> vector<2x128xf32>
    %240 = arith.addf %235, %239 : vector<2x128xf32>
    %241 = vector.extract_strided_slice %240 {offsets = [0, 0], sizes = [2, 32], strides = [1, 1]} : vector<2x128xf32> to vector<2x32xf32>
    %242 = arith.negf %241 : vector<2x32xf32>
    %243 = math.exp %242 : vector<2x32xf32>
    %cst_93 = arith.constant 1.000000e+00 : f32
    %244 = vector.broadcast %cst_93 : f32 to vector<2x32xf32>
    %245 = arith.addf %244, %243 : vector<2x32xf32>
    %246 = arith.divf %244, %245 : vector<2x32xf32>
    %247 = vector.extract_strided_slice %240 {offsets = [0, 32], sizes = [2, 32], strides = [1, 1]} : vector<2x128xf32> to vector<2x32xf32>
    %248 = arith.negf %247 : vector<2x32xf32>
    %249 = math.exp %248 : vector<2x32xf32>
    %cst_94 = arith.constant 1.000000e+00 : f32
    %250 = vector.broadcast %cst_94 : f32 to vector<2x32xf32>
    %251 = arith.addf %250, %249 : vector<2x32xf32>
    %252 = arith.divf %250, %251 : vector<2x32xf32>
    %253 = vector.extract_strided_slice %240 {offsets = [0, 64], sizes = [2, 32], strides = [1, 1]} : vector<2x128xf32> to vector<2x32xf32>
    %254 = math.tanh %253 : vector<2x32xf32>
    %255 = vector.extract_strided_slice %240 {offsets = [0, 96], sizes = [2, 32], strides = [1, 1]} : vector<2x128xf32> to vector<2x32xf32>
    %256 = arith.negf %255 : vector<2x32xf32>
    %257 = math.exp %256 : vector<2x32xf32>
    %cst_95 = arith.constant 1.000000e+00 : f32
    %258 = vector.broadcast %cst_95 : f32 to vector<2x32xf32>
    %259 = arith.addf %258, %257 : vector<2x32xf32>
    %260 = arith.divf %258, %259 : vector<2x32xf32>
    %261 = arith.mulf %252, %237 : vector<2x32xf32>
    %262 = arith.mulf %246, %254 : vector<2x32xf32>
    %263 = arith.addf %261, %262 : vector<2x32xf32>
    %264 = math.tanh %263 : vector<2x32xf32>
    %265 = arith.mulf %260, %264 : vector<2x32xf32>
    %266 = arith.addi %10, %232 : i32
    %267 = vector.broadcast %266 : i32 to vector<2x1xi32>
    %268 = arith.cmpi slt, %267, %3 : vector<2x1xi32>
    %269 = vector.shape_cast %268 : vector<2x1xi1> to vector<2x1xi1>
    %270 = vector.broadcast %269 : vector<2x1xi1> to vector<2x32xi1>
    %271 = arith.select %270, %265, %236 : vector<2x32xi1>, vector<2x32xf32>
    %c0_96 = arith.constant 0 : index
    %c0_97 = arith.constant 0 : index
    %272 = vector.load %arg7[%c0_96, %c0_97] : memref<2x32xf32, #tpu.memory_space<vmem>>, vector<2x32xf32>
    tpu.vector_store %arg7[%c0_96, %c0_97], %271 {strides = array<i32>} : memref<2x32xf32, #tpu.memory_space<vmem>>, vector<2x32xf32>,
    %273 = vector.shape_cast %268 : vector<2x1xi1> to vector<2x1xi1>
    %274 = vector.broadcast %273 : vector<2x1xi1> to vector<2x32xi1>
    %275 = arith.select %274, %263, %237 : vector<2x32xi1>, vector<2x32xf32>
    %c0_98 = arith.constant 0 : index
    %c0_99 = arith.constant 0 : index
    %276 = vector.load %arg8[%c0_98, %c0_99] : memref<2x32xf32, #tpu.memory_space<vmem>>, vector<2x32xf32>
    tpu.vector_store %arg8[%c0_98, %c0_99], %275 {strides = array<i32>} : memref<2x32xf32, #tpu.memory_space<vmem>>, vector<2x32xf32>,
    %cst_100 = arith.constant 0.000000e+00 : f32
    %277 = vector.shape_cast %268 : vector<2x1xi1> to vector<2x1xi1>
    %278 = vector.broadcast %277 : vector<2x1xi1> to vector<2x32xi1>
    %279 = vector.broadcast %cst_100 : f32 to vector<2x32xf32>
    %280 = arith.select %278, %265, %279 : vector<2x32xi1>, vector<2x32xf32>
    %281 = arith.truncf %280 : vector<2x32xf32> to vector<2x32xbf16>
    %c0_101 = arith.constant 0 : index
    %282 = arith.index_cast %232 : i32 to index
    %c0_102 = arith.constant 0 : index
    %c0_103 = arith.constant 0 : index
    %283 = vector.load %arg5[%c0_101, %282, %c0_102, %c0_103] : memref<1x8x2x32xbf16, #tpu.memory_space<vmem>>, vector<1x1x2x32xbf16>
    %284 = vector.shape_cast %283 : vector<1x1x2x32xbf16> to vector<2x32xbf16>
    %285 = vector.shape_cast %281 : vector<2x32xbf16> to vector<1x1x2x32xbf16>
    tpu.vector_store %arg5[%c0_101, %282, %c0_102, %c0_103], %285 {strides = array<i32>} : memref<1x8x2x32xbf16, #tpu.memory_space<vmem>>, vector<1x1x2x32xbf16>,
    %c-3_i32 = arith.constant -3 : i32
    %286 = arith.muli %arg0, %c-3_i32 : i32
    %c5_i32_104 = arith.constant 5 : i32
    %287 = arith.addi %c5_i32_104, %286 : i32
    %c0_105 = arith.constant 0 : index
    %288 = arith.index_cast %287 : i32 to index
    %c0_106 = arith.constant 0 : index
    %c0_107 = arith.constant 0 : index
    %289 = vector.load %arg3[%c0_105, %288, %c0_106, %c0_107] : memref<1x8x2x128xf32, #tpu.memory_space<vmem>>, vector<1x1x2x128xf32>
    %290 = vector.shape_cast %289 : vector<1x1x2x128xf32> to vector<2x128xf32>
    %c0_108 = arith.constant 0 : index
    %c0_109 = arith.constant 0 : index
    %291 = vector.load %arg7[%c0_108, %c0_109] : memref<2x32xf32, #tpu.memory_space<vmem>>, vector<2x32xf32>
    %c0_110 = arith.constant 0 : index
    %c0_111 = arith.constant 0 : index
    %292 = vector.load %arg8[%c0_110, %c0_111] : memref<2x32xf32, #tpu.memory_space<vmem>>, vector<2x32xf32>
    %293 = arith.truncf %291 : vector<2x32xf32> to vector<2x32xbf16>
    %cst_112 = arith.constant dense<0.000000e+00> : vector<2x128xf32>
    %294 = tpu.matmul %293, %5, %cst_112 {dimension_numbers = #tpu.dot_dimension_numbers<[1], [0], [0], [1], [0, 0, 1, 1], [], []>} : vector<2x32xbf16>, vector<32x128xbf16>, vector<2x128xf32> -> vector<2x128xf32>
    %295 = arith.addf %290, %294 : vector<2x128xf32>
    %296 = vector.extract_strided_slice %295 {offsets = [0, 0], sizes = [2, 32], strides = [1, 1]} : vector<2x128xf32> to vector<2x32xf32>
    %297 = arith.negf %296 : vector<2x32xf32>
    %298 = math.exp %297 : vector<2x32xf32>
    %cst_113 = arith.constant 1.000000e+00 : f32
    %299 = vector.broadcast %cst_113 : f32 to vector<2x32xf32>
    %300 = arith.addf %299, %298 : vector<2x32xf32>
    %301 = arith.divf %299, %300 : vector<2x32xf32>
    %302 = vector.extract_strided_slice %295 {offsets = [0, 32], sizes = [2, 32], strides = [1, 1]} : vector<2x128xf32> to vector<2x32xf32>
    %303 = arith.negf %302 : vector<2x32xf32>
    %304 = math.exp %303 : vector<2x32xf32>
    %cst_114 = arith.constant 1.000000e+00 : f32
    %305 = vector.broadcast %cst_114 : f32 to vector<2x32xf32>
    %306 = arith.addf %305, %304 : vector<2x32xf32>
    %307 = arith.divf %305, %306 : vector<2x32xf32>
    %308 = vector.extract_strided_slice %295 {offsets = [0, 64], sizes = [2, 32], strides = [1, 1]} : vector<2x128xf32> to vector<2x32xf32>
    %309 = math.tanh %308 : vector<2x32xf32>
    %310 = vector.extract_strided_slice %295 {offsets = [0, 96], sizes = [2, 32], strides = [1, 1]} : vector<2x128xf32> to vector<2x32xf32>
    %311 = arith.negf %310 : vector<2x32xf32>
    %312 = math.exp %311 : vector<2x32xf32>
    %cst_115 = arith.constant 1.000000e+00 : f32
    %313 = vector.broadcast %cst_115 : f32 to vector<2x32xf32>
    %314 = arith.addf %313, %312 : vector<2x32xf32>
    %315 = arith.divf %313, %314 : vector<2x32xf32>
    %316 = arith.mulf %307, %292 : vector<2x32xf32>
    %317 = arith.mulf %301, %309 : vector<2x32xf32>
    %318 = arith.addf %316, %317 : vector<2x32xf32>
    %319 = math.tanh %318 : vector<2x32xf32>
    %320 = arith.mulf %315, %319 : vector<2x32xf32>
    %321 = arith.addi %10, %287 : i32
    %322 = vector.broadcast %321 : i32 to vector<2x1xi32>
    %323 = arith.cmpi slt, %322, %3 : vector<2x1xi32>
    %324 = vector.shape_cast %323 : vector<2x1xi1> to vector<2x1xi1>
    %325 = vector.broadcast %324 : vector<2x1xi1> to vector<2x32xi1>
    %326 = arith.select %325, %320, %291 : vector<2x32xi1>, vector<2x32xf32>
    %c0_116 = arith.constant 0 : index
    %c0_117 = arith.constant 0 : index
    %327 = vector.load %arg7[%c0_116, %c0_117] : memref<2x32xf32, #tpu.memory_space<vmem>>, vector<2x32xf32>
    tpu.vector_store %arg7[%c0_116, %c0_117], %326 {strides = array<i32>} : memref<2x32xf32, #tpu.memory_space<vmem>>, vector<2x32xf32>,
    %328 = vector.shape_cast %323 : vector<2x1xi1> to vector<2x1xi1>
    %329 = vector.broadcast %328 : vector<2x1xi1> to vector<2x32xi1>
    %330 = arith.select %329, %318, %292 : vector<2x32xi1>, vector<2x32xf32>
    %c0_118 = arith.constant 0 : index
    %c0_119 = arith.constant 0 : index
    %331 = vector.load %arg8[%c0_118, %c0_119] : memref<2x32xf32, #tpu.memory_space<vmem>>, vector<2x32xf32>
    tpu.vector_store %arg8[%c0_118, %c0_119], %330 {strides = array<i32>} : memref<2x32xf32, #tpu.memory_space<vmem>>, vector<2x32xf32>,
    %cst_120 = arith.constant 0.000000e+00 : f32
    %332 = vector.shape_cast %323 : vector<2x1xi1> to vector<2x1xi1>
    %333 = vector.broadcast %332 : vector<2x1xi1> to vector<2x32xi1>
    %334 = vector.broadcast %cst_120 : f32 to vector<2x32xf32>
    %335 = arith.select %333, %320, %334 : vector<2x32xi1>, vector<2x32xf32>
    %336 = arith.truncf %335 : vector<2x32xf32> to vector<2x32xbf16>
    %c0_121 = arith.constant 0 : index
    %337 = arith.index_cast %287 : i32 to index
    %c0_122 = arith.constant 0 : index
    %c0_123 = arith.constant 0 : index
    %338 = vector.load %arg5[%c0_121, %337, %c0_122, %c0_123] : memref<1x8x2x32xbf16, #tpu.memory_space<vmem>>, vector<1x1x2x32xbf16>
    %339 = vector.shape_cast %338 : vector<1x1x2x32xbf16> to vector<2x32xbf16>
    %340 = vector.shape_cast %336 : vector<2x32xbf16> to vector<1x1x2x32xbf16>
    tpu.vector_store %arg5[%c0_121, %337, %c0_122, %c0_123], %340 {strides = array<i32>} : memref<1x8x2x32xbf16, #tpu.memory_space<vmem>>, vector<1x1x2x32xbf16>,
    %c-5_i32 = arith.constant -5 : i32
    %341 = arith.muli %arg0, %c-5_i32 : i32
    %c6_i32 = arith.constant 6 : i32
    %342 = arith.addi %c6_i32, %341 : i32
    %c0_124 = arith.constant 0 : index
    %343 = arith.index_cast %342 : i32 to index
    %c0_125 = arith.constant 0 : index
    %c0_126 = arith.constant 0 : index
    %344 = vector.load %arg3[%c0_124, %343, %c0_125, %c0_126] : memref<1x8x2x128xf32, #tpu.memory_space<vmem>>, vector<1x1x2x128xf32>
    %345 = vector.shape_cast %344 : vector<1x1x2x128xf32> to vector<2x128xf32>
    %c0_127 = arith.constant 0 : index
    %c0_128 = arith.constant 0 : index
    %346 = vector.load %arg7[%c0_127, %c0_128] : memref<2x32xf32, #tpu.memory_space<vmem>>, vector<2x32xf32>
    %c0_129 = arith.constant 0 : index
    %c0_130 = arith.constant 0 : index
    %347 = vector.load %arg8[%c0_129, %c0_130] : memref<2x32xf32, #tpu.memory_space<vmem>>, vector<2x32xf32>
    %348 = arith.truncf %346 : vector<2x32xf32> to vector<2x32xbf16>
    %cst_131 = arith.constant dense<0.000000e+00> : vector<2x128xf32>
    %349 = tpu.matmul %348, %5, %cst_131 {dimension_numbers = #tpu.dot_dimension_numbers<[1], [0], [0], [1], [0, 0, 1, 1], [], []>} : vector<2x32xbf16>, vector<32x128xbf16>, vector<2x128xf32> -> vector<2x128xf32>
    %350 = arith.addf %345, %349 : vector<2x128xf32>
    %351 = vector.extract_strided_slice %350 {offsets = [0, 0], sizes = [2, 32], strides = [1, 1]} : vector<2x128xf32> to vector<2x32xf32>
    %352 = arith.negf %351 : vector<2x32xf32>
    %353 = math.exp %352 : vector<2x32xf32>
    %cst_132 = arith.constant 1.000000e+00 : f32
    %354 = vector.broadcast %cst_132 : f32 to vector<2x32xf32>
    %355 = arith.addf %354, %353 : vector<2x32xf32>
    %356 = arith.divf %354, %355 : vector<2x32xf32>
    %357 = vector.extract_strided_slice %350 {offsets = [0, 32], sizes = [2, 32], strides = [1, 1]} : vector<2x128xf32> to vector<2x32xf32>
    %358 = arith.negf %357 : vector<2x32xf32>
    %359 = math.exp %358 : vector<2x32xf32>
    %cst_133 = arith.constant 1.000000e+00 : f32
    %360 = vector.broadcast %cst_133 : f32 to vector<2x32xf32>
    %361 = arith.addf %360, %359 : vector<2x32xf32>
    %362 = arith.divf %360, %361 : vector<2x32xf32>
    %363 = vector.extract_strided_slice %350 {offsets = [0, 64], sizes = [2, 32], strides = [1, 1]} : vector<2x128xf32> to vector<2x32xf32>
    %364 = math.tanh %363 : vector<2x32xf32>
    %365 = vector.extract_strided_slice %350 {offsets = [0, 96], sizes = [2, 32], strides = [1, 1]} : vector<2x128xf32> to vector<2x32xf32>
    %366 = arith.negf %365 : vector<2x32xf32>
    %367 = math.exp %366 : vector<2x32xf32>
    %cst_134 = arith.constant 1.000000e+00 : f32
    %368 = vector.broadcast %cst_134 : f32 to vector<2x32xf32>
    %369 = arith.addf %368, %367 : vector<2x32xf32>
    %370 = arith.divf %368, %369 : vector<2x32xf32>
    %371 = arith.mulf %362, %347 : vector<2x32xf32>
    %372 = arith.mulf %356, %364 : vector<2x32xf32>
    %373 = arith.addf %371, %372 : vector<2x32xf32>
    %374 = math.tanh %373 : vector<2x32xf32>
    %375 = arith.mulf %370, %374 : vector<2x32xf32>
    %376 = arith.addi %10, %342 : i32
    %377 = vector.broadcast %376 : i32 to vector<2x1xi32>
    %378 = arith.cmpi slt, %377, %3 : vector<2x1xi32>
    %379 = vector.shape_cast %378 : vector<2x1xi1> to vector<2x1xi1>
    %380 = vector.broadcast %379 : vector<2x1xi1> to vector<2x32xi1>
    %381 = arith.select %380, %375, %346 : vector<2x32xi1>, vector<2x32xf32>
    %c0_135 = arith.constant 0 : index
    %c0_136 = arith.constant 0 : index
    %382 = vector.load %arg7[%c0_135, %c0_136] : memref<2x32xf32, #tpu.memory_space<vmem>>, vector<2x32xf32>
    tpu.vector_store %arg7[%c0_135, %c0_136], %381 {strides = array<i32>} : memref<2x32xf32, #tpu.memory_space<vmem>>, vector<2x32xf32>,
    %383 = vector.shape_cast %378 : vector<2x1xi1> to vector<2x1xi1>
    %384 = vector.broadcast %383 : vector<2x1xi1> to vector<2x32xi1>
    %385 = arith.select %384, %373, %347 : vector<2x32xi1>, vector<2x32xf32>
    %c0_137 = arith.constant 0 : index
    %c0_138 = arith.constant 0 : index
    %386 = vector.load %arg8[%c0_137, %c0_138] : memref<2x32xf32, #tpu.memory_space<vmem>>, vector<2x32xf32>
    tpu.vector_store %arg8[%c0_137, %c0_138], %385 {strides = array<i32>} : memref<2x32xf32, #tpu.memory_space<vmem>>, vector<2x32xf32>,
    %cst_139 = arith.constant 0.000000e+00 : f32
    %387 = vector.shape_cast %378 : vector<2x1xi1> to vector<2x1xi1>
    %388 = vector.broadcast %387 : vector<2x1xi1> to vector<2x32xi1>
    %389 = vector.broadcast %cst_139 : f32 to vector<2x32xf32>
    %390 = arith.select %388, %375, %389 : vector<2x32xi1>, vector<2x32xf32>
    %391 = arith.truncf %390 : vector<2x32xf32> to vector<2x32xbf16>
    %c0_140 = arith.constant 0 : index
    %392 = arith.index_cast %342 : i32 to index
    %c0_141 = arith.constant 0 : index
    %c0_142 = arith.constant 0 : index
    %393 = vector.load %arg5[%c0_140, %392, %c0_141, %c0_142] : memref<1x8x2x32xbf16, #tpu.memory_space<vmem>>, vector<1x1x2x32xbf16>
    %394 = vector.shape_cast %393 : vector<1x1x2x32xbf16> to vector<2x32xbf16>
    %395 = vector.shape_cast %391 : vector<2x32xbf16> to vector<1x1x2x32xbf16>
    tpu.vector_store %arg5[%c0_140, %392, %c0_141, %c0_142], %395 {strides = array<i32>} : memref<1x8x2x32xbf16, #tpu.memory_space<vmem>>, vector<1x1x2x32xbf16>,
    %c-7_i32 = arith.constant -7 : i32
    %396 = arith.muli %arg0, %c-7_i32 : i32
    %c7_i32_143 = arith.constant 7 : i32
    %397 = arith.addi %c7_i32_143, %396 : i32
    %c0_144 = arith.constant 0 : index
    %398 = arith.index_cast %397 : i32 to index
    %c0_145 = arith.constant 0 : index
    %c0_146 = arith.constant 0 : index
    %399 = vector.load %arg3[%c0_144, %398, %c0_145, %c0_146] : memref<1x8x2x128xf32, #tpu.memory_space<vmem>>, vector<1x1x2x128xf32>
    %400 = vector.shape_cast %399 : vector<1x1x2x128xf32> to vector<2x128xf32>
    %c0_147 = arith.constant 0 : index
    %c0_148 = arith.constant 0 : index
    %401 = vector.load %arg7[%c0_147, %c0_148] : memref<2x32xf32, #tpu.memory_space<vmem>>, vector<2x32xf32>
    %c0_149 = arith.constant 0 : index
    %c0_150 = arith.constant 0 : index
    %402 = vector.load %arg8[%c0_149, %c0_150] : memref<2x32xf32, #tpu.memory_space<vmem>>, vector<2x32xf32>
    %403 = arith.truncf %401 : vector<2x32xf32> to vector<2x32xbf16>
    %cst_151 = arith.constant dense<0.000000e+00> : vector<2x128xf32>
    %404 = tpu.matmul %403, %5, %cst_151 {dimension_numbers = #tpu.dot_dimension_numbers<[1], [0], [0], [1], [0, 0, 1, 1], [], []>} : vector<2x32xbf16>, vector<32x128xbf16>, vector<2x128xf32> -> vector<2x128xf32>
    %405 = arith.addf %400, %404 : vector<2x128xf32>
    %406 = vector.extract_strided_slice %405 {offsets = [0, 0], sizes = [2, 32], strides = [1, 1]} : vector<2x128xf32> to vector<2x32xf32>
    %407 = arith.negf %406 : vector<2x32xf32>
    %408 = math.exp %407 : vector<2x32xf32>
    %cst_152 = arith.constant 1.000000e+00 : f32
    %409 = vector.broadcast %cst_152 : f32 to vector<2x32xf32>
    %410 = arith.addf %409, %408 : vector<2x32xf32>
    %411 = arith.divf %409, %410 : vector<2x32xf32>
    %412 = vector.extract_strided_slice %405 {offsets = [0, 32], sizes = [2, 32], strides = [1, 1]} : vector<2x128xf32> to vector<2x32xf32>
    %413 = arith.negf %412 : vector<2x32xf32>
    %414 = math.exp %413 : vector<2x32xf32>
    %cst_153 = arith.constant 1.000000e+00 : f32
    %415 = vector.broadcast %cst_153 : f32 to vector<2x32xf32>
    %416 = arith.addf %415, %414 : vector<2x32xf32>
    %417 = arith.divf %415, %416 : vector<2x32xf32>
    %418 = vector.extract_strided_slice %405 {offsets = [0, 64], sizes = [2, 32], strides = [1, 1]} : vector<2x128xf32> to vector<2x32xf32>
    %419 = math.tanh %418 : vector<2x32xf32>
    %420 = vector.extract_strided_slice %405 {offsets = [0, 96], sizes = [2, 32], strides = [1, 1]} : vector<2x128xf32> to vector<2x32xf32>
    %421 = arith.negf %420 : vector<2x32xf32>
    %422 = math.exp %421 : vector<2x32xf32>
    %cst_154 = arith.constant 1.000000e+00 : f32
    %423 = vector.broadcast %cst_154 : f32 to vector<2x32xf32>
    %424 = arith.addf %423, %422 : vector<2x32xf32>
    %425 = arith.divf %423, %424 : vector<2x32xf32>
    %426 = arith.mulf %417, %402 : vector<2x32xf32>
    %427 = arith.mulf %411, %419 : vector<2x32xf32>
    %428 = arith.addf %426, %427 : vector<2x32xf32>
    %429 = math.tanh %428 : vector<2x32xf32>
    %430 = arith.mulf %425, %429 : vector<2x32xf32>
    %431 = arith.addi %10, %397 : i32
    %432 = vector.broadcast %431 : i32 to vector<2x1xi32>
    %433 = arith.cmpi slt, %432, %3 : vector<2x1xi32>
    %434 = vector.shape_cast %433 : vector<2x1xi1> to vector<2x1xi1>
    %435 = vector.broadcast %434 : vector<2x1xi1> to vector<2x32xi1>
    %436 = arith.select %435, %430, %401 : vector<2x32xi1>, vector<2x32xf32>
    %c0_155 = arith.constant 0 : index
    %c0_156 = arith.constant 0 : index
    %437 = vector.load %arg7[%c0_155, %c0_156] : memref<2x32xf32, #tpu.memory_space<vmem>>, vector<2x32xf32>
    tpu.vector_store %arg7[%c0_155, %c0_156], %436 {strides = array<i32>} : memref<2x32xf32, #tpu.memory_space<vmem>>, vector<2x32xf32>,
    %438 = vector.shape_cast %433 : vector<2x1xi1> to vector<2x1xi1>
    %439 = vector.broadcast %438 : vector<2x1xi1> to vector<2x32xi1>
    %440 = arith.select %439, %428, %402 : vector<2x32xi1>, vector<2x32xf32>
    %c0_157 = arith.constant 0 : index
    %c0_158 = arith.constant 0 : index
    %441 = vector.load %arg8[%c0_157, %c0_158] : memref<2x32xf32, #tpu.memory_space<vmem>>, vector<2x32xf32>
    tpu.vector_store %arg8[%c0_157, %c0_158], %440 {strides = array<i32>} : memref<2x32xf32, #tpu.memory_space<vmem>>, vector<2x32xf32>,
    %cst_159 = arith.constant 0.000000e+00 : f32
    %442 = vector.shape_cast %433 : vector<2x1xi1> to vector<2x1xi1>
    %443 = vector.broadcast %442 : vector<2x1xi1> to vector<2x32xi1>
    %444 = vector.broadcast %cst_159 : f32 to vector<2x32xf32>
    %445 = arith.select %443, %430, %444 : vector<2x32xi1>, vector<2x32xf32>
    %446 = arith.truncf %445 : vector<2x32xf32> to vector<2x32xbf16>
    %c0_160 = arith.constant 0 : index
    %447 = arith.index_cast %397 : i32 to index
    %c0_161 = arith.constant 0 : index
    %c0_162 = arith.constant 0 : index
    %448 = vector.load %arg5[%c0_160, %447, %c0_161, %c0_162] : memref<1x8x2x32xbf16, #tpu.memory_space<vmem>>, vector<1x1x2x32xbf16>
    %449 = vector.shape_cast %448 : vector<1x1x2x32xbf16> to vector<2x32xbf16>
    %450 = vector.shape_cast %446 : vector<2x32xbf16> to vector<1x1x2x32xbf16>
    tpu.vector_store %arg5[%c0_160, %447, %c0_161, %c0_162], %450 {strides = array<i32>} : memref<1x8x2x32xbf16, #tpu.memory_space<vmem>>, vector<1x1x2x32xbf16>,
    %c0_i32_163 = arith.constant 0 : i32
    %451 = arith.cmpi eq, %arg1, %c0_i32_163 : i32
    %452 = arith.extui %451 : i1 to i32
    %c0_i32_164 = arith.constant 0 : i32
    %453 = arith.cmpi ne, %452, %c0_i32_164 : i32
    scf.if %453 {
      %c0_165 = arith.constant 0 : index
      %c0_166 = arith.constant 0 : index
      %454 = vector.load %arg7[%c0_165, %c0_166] : memref<2x32xf32, #tpu.memory_space<vmem>>, vector<2x32xf32>
      %c0_167 = arith.constant 0 : index
      %c0_168 = arith.constant 0 : index
      %c0_169 = arith.constant 0 : index
      %455 = vector.load %arg6[%c0_167, %c0_168, %c0_169] : memref<1x2x32xf32, #tpu.memory_space<vmem>>, vector<1x2x32xf32>
      %456 = vector.shape_cast %455 : vector<1x2x32xf32> to vector<2x32xf32>
      %457 = vector.shape_cast %454 : vector<2x32xf32> to vector<1x2x32xf32>
      tpu.vector_store %arg6[%c0_167, %c0_168, %c0_169], %457 {strides = array<i32>} : memref<1x2x32xf32, #tpu.memory_space<vmem>>, vector<1x2x32xf32>,
    } else {
    }
    return
  }
  func.func @transform_0(%arg0: i32, %arg1: i32) -> (i32, i32) {
    %c0_i32 = arith.constant 0 : i32
    %c0_i32_0 = arith.constant 0 : i32
    %c0_i32_1 = arith.constant 0 : i32
    return %c0_i32, %c0_i32_0 : i32, i32
  }
  func.func @transform_1(%arg0: i32, %arg1: i32) -> (i32, i32, i32, i32) {
    %c2_i32 = arith.constant 2 : i32
    %0 = arith.muli %c2_i32, %arg1 : i32
    %c0_i32 = arith.constant 0 : i32
    %1 = arith.subi %c0_i32, %0 : i32
    %2 = arith.muli %arg0, %1 : i32
    %3 = arith.addi %arg1, %2 : i32
    %c0_i32_0 = arith.constant 0 : i32
    %c0_i32_1 = arith.constant 0 : i32
    %c0_i32_2 = arith.constant 0 : i32
    return %arg0, %3, %c0_i32_0, %c0_i32_1 : i32, i32, i32, i32
  }
  func.func @transform_2(%arg0: i32, %arg1: i32) -> (i32, i32, i32) {
    %c0_i32 = arith.constant 0 : i32
    %c0_i32_0 = arith.constant 0 : i32
    %c0_i32_1 = arith.constant 0 : i32
    return %arg0, %c0_i32, %c0_i32_0 : i32, i32, i32
  }
  func.func @transform_3(%arg0: i32, %arg1: i32) -> (i32, i32, i32, i32) {
    %c2_i32 = arith.constant 2 : i32
    %0 = arith.muli %c2_i32, %arg1 : i32
    %c0_i32 = arith.constant 0 : i32
    %1 = arith.subi %c0_i32, %0 : i32
    %2 = arith.muli %arg0, %1 : i32
    %3 = arith.addi %arg1, %2 : i32
    %c0_i32_0 = arith.constant 0 : i32
    %c0_i32_1 = arith.constant 0 : i32
    %c0_i32_2 = arith.constant 0 : i32
    return %arg0, %3, %c0_i32_0, %c0_i32_1 : i32, i32, i32, i32
  }
  func.func @transform_4(%arg0: i32, %arg1: i32) -> (i32, i32, i32) {
    %c0_i32 = arith.constant 0 : i32
    %c0_i32_0 = arith.constant 0 : i32
    %c0_i32_1 = arith.constant 0 : i32
    return %arg0, %c0_i32, %c0_i32_0 : i32, i32, i32
  }
}

module attributes {stable_mosaic.version = 11 : i64} {
  func.func @_fc_kernel(%arg0: memref<2x2x32xf32, #tpu.memory_space<vmem>>, %arg1: memref<32x1xf32, #tpu.memory_space<vmem>>, %arg2: memref<32x1xf32, #tpu.memory_space<vmem>>, %arg3: memref<1x1xf32, #tpu.memory_space<vmem>>, %arg4: memref<2x1xf32, #tpu.memory_space<vmem>>) attributes {dimension_semantics = [], scalar_prefetch = 0 : i64, scratch_operands = 0 : i64, tpu.core_type = #tpu.core_type<tc>} {
    %c0 = arith.constant 0 : index
    %c0_0 = arith.constant 0 : index
    %c0_1 = arith.constant 0 : index
    %0 = vector.load %arg0[%c0, %c0_0, %c0_1] : memref<2x2x32xf32, #tpu.memory_space<vmem>>, vector<1x2x32xf32>
    %1 = vector.shape_cast %0 : vector<1x2x32xf32> to vector<2x32xf32>
    %c0_2 = arith.constant 0 : index
    %c0_3 = arith.constant 0 : index
    %2 = vector.load %arg1[%c0_2, %c0_3] : memref<32x1xf32, #tpu.memory_space<vmem>>, vector<32x1xf32>
    %cst = arith.constant dense<0.000000e+00> : vector<2x1xf32>
    %3 = tpu.matmul %1, %2, %cst {dimension_numbers = #tpu.dot_dimension_numbers<[1], [0], [0], [1], [0, 0, 1, 1], [], []>} : vector<2x32xf32>, vector<32x1xf32>, vector<2x1xf32> -> vector<2x1xf32>
    %c1 = arith.constant 1 : index
    %c0_4 = arith.constant 0 : index
    %c0_5 = arith.constant 0 : index
    %4 = vector.load %arg0[%c1, %c0_4, %c0_5] : memref<2x2x32xf32, #tpu.memory_space<vmem>>, vector<1x2x32xf32>
    %5 = vector.shape_cast %4 : vector<1x2x32xf32> to vector<2x32xf32>
    %c0_6 = arith.constant 0 : index
    %c0_7 = arith.constant 0 : index
    %6 = vector.load %arg2[%c0_6, %c0_7] : memref<32x1xf32, #tpu.memory_space<vmem>>, vector<32x1xf32>
    %cst_8 = arith.constant dense<0.000000e+00> : vector<2x1xf32>
    %7 = tpu.matmul %5, %6, %cst_8 {dimension_numbers = #tpu.dot_dimension_numbers<[1], [0], [0], [1], [0, 0, 1, 1], [], []>} : vector<2x32xf32>, vector<32x1xf32>, vector<2x1xf32> -> vector<2x1xf32>
    %8 = arith.addf %3, %7 : vector<2x1xf32>
    %c0_9 = arith.constant 0 : index
    %c0_10 = arith.constant 0 : index
    %9 = vector.load %arg3[%c0_9, %c0_10] : memref<1x1xf32, #tpu.memory_space<vmem>>, vector<1x1xf32>
    %10 = vector.broadcast %9 : vector<1x1xf32> to vector<2x1xf32>
    %11 = arith.addf %8, %10 : vector<2x1xf32>
    %c0_11 = arith.constant 0 : index
    %c0_12 = arith.constant 0 : index
    %12 = vector.load %arg4[%c0_11, %c0_12] : memref<2x1xf32, #tpu.memory_space<vmem>>, vector<2x1xf32>
    tpu.vector_store %arg4[%c0_11, %c0_12], %11 {strides = array<i32>} : memref<2x1xf32, #tpu.memory_space<vmem>>, vector<2x1xf32>,
    return
  }
}

</mosaic_0001>

<llo_original>
// kernel: bidirectional_lstm_forward.5
$region0: #{bidirectional_lstm_forward.5}
  #allocation0 [shape = 'u32[]', space=smem, size = 0x4, offset = 0x4, fixed_abs, tag = 'smem constant byte address 0x4 - core index']
  #allocation1 [shape = 'u32[144,128]{1,0:T(1,128)}', space=vmem, size = 0x12000, scoped, tag = 'internal scratch']
  %s0 = inlined_call_operand.vmem [shape: bf16[16,16], index: 0, kind: input, shape index: {}]
  %s1 = inlined_call_operand.vmem [shape: bf16[2,16,128], index: 1, kind: input, shape index: {}]
  %s2 = inlined_call_operand.vmem [shape: f32[2,1,128], index: 2, kind: input, shape index: {}]
  %s3 = inlined_call_operand.vmem [shape: f32[2,16,128], index: 3, kind: output, shape index: {}]
  %s4 = sld [smem:[#allocation0]]
  $region22: #{bidirectional_lstm_forward.5} parent=0
    _
  %s6 = ssub.s32 1, %s4
  %s7 = scalar_select 0, %s6, %s4
  // Predicated region
  $region2: #{bidirectional_lstm_forward.5} parent=0 // pred_check
    _
  $region3: #{bidirectional_lstm_forward.5} parent=0 // pred_check_branch
    %9 = sbr.rel (0) target = $region5
  $region4: #{bidirectional_lstm_forward.5} parent=0 // pred_region
    _
  $region5: #{bidirectional_lstm_forward.5} parent=0 // pred_fallthru
    _
  // Predicated region
  $region6: #{bidirectional_lstm_forward.5} parent=0 // pred_check
    _
  $region7: #{bidirectional_lstm_forward.5} parent=0 // pred_check_branch
    %11 = sbr.rel (0) target = $region9
  $region8: #{bidirectional_lstm_forward.5} parent=0 // pred_region
    _
  $region9: #{bidirectional_lstm_forward.5} parent=0 // pred_fallthru
    _
  // Predicated region
  $region10: #{bidirectional_lstm_forward.5} parent=0 // pred_check
    _
  $region11: #{bidirectional_lstm_forward.5} parent=0 // pred_check_branch
    %13 = sbr.rel (0) target = $region13
  $region12: #{bidirectional_lstm_forward.5} parent=0 // pred_region
    _
  $region13: #{bidirectional_lstm_forward.5} parent=0 // pred_fallthru
    _
  %v15 = vld [vmem:[%s0] sm:$0xf]
  %v16 = vld [vmem:[%s0 + $0x4] sm:$0xf]
  %v17 = vld [vmem:[%s1] sm:$0xf]
  %v18 = vld [vmem:[%s1 + $0x4] sm:$0xf]
  %v19 = vld [vmem:[%s2] sm:$0x1]
  %v21 = vlaneseq
  %v22 = vshrl.u32 %v21, 7
  %v23 = vsub.s32 0, %v22
  %v24 = vrot.slane %v19, %v23
  %v28 = vunpack.c.l.b16 %v15
  %v29 = vunpack.c.l.b16 %v16
  %v30 = vpack.c.b16 %v29, %v28
  %v33 = vunpack.c.l.b16 %v17
  %v34 = vunpack.c.l.b16 %v18
  %v35 = vpack.c.b16 %v34, %v33
  %vm37 = vcmask 130048
  %v39 = vsel %vm37, %v30, 0
  %41 = vmatprep.subr.bf16.mxu0 0
  %42 = vmatpush1.bf16.msra.mxu0 %v35
  %43 = vmatprep.subr.bf16.mxu0 0
  %44 = vmatpush1.bf16.msra.mxu0 0
  %45 = vmatprep.subr.bf16.mxu0 0
  %46 = vmatpush1.bf16.msra.mxu0 0
  %47 = vmatprep.subr.bf16.mxu0 0
  %48 = vmatpush1.bf16.msra.mxu0 0
  %49 = vmatprep.subr.bf16.mxu0 0
  %50 = vmatpush1.bf16.msra.mxu0 0
  %51 = vmatprep.subr.bf16.mxu0 0
  %52 = vmatpush1.bf16.msra.mxu0 0
  %53 = vmatprep.subr.bf16.mxu0 0
  %54 = vmatpush1.bf16.msra.mxu0 0
  %55 = vmatprep.subr.bf16.mxu0 0
  %56 = vmatpush1.bf16.msra.mxu0 0
  %57 = vmatprep.subr.bf16.mxu0 0
  %58 = vmatpush1.bf16.msra.mxu0 0
  %59 = vmatprep.subr.bf16.mxu0 0
  %60 = vmatpush1.bf16.msra.mxu0 0
  %61 = vmatprep.subr.bf16.mxu0 0
  %62 = vmatpush1.bf16.msra.mxu0 0
  %63 = vmatprep.subr.bf16.mxu0 0
  %64 = vmatpush1.bf16.msra.mxu0 0
  %65 = vmatprep.subr.bf16.mxu0 0
  %66 = vmatpush1.bf16.msra.mxu0 0
  %67 = vmatprep.subr.bf16.mxu0 0
  %68 = vmatpush1.bf16.msra.mxu0 0
  %69 = vmatprep.subr.bf16.mxu0 0
  %70 = vmatpush1.bf16.msra.mxu0 0
  %71 = vmatprep.subr.bf16.mxu0 0
  %72 = vmatpush1.bf16.msra.mxu0 0
  %73 = vmatprep.mubr.bf16.mxu0 0
  %74 = vmatmul.mubr.bf16.gmra.mrb[0].mxu0 %v39
  %v75 = vpop.f32.mrb[0].mxu0
  %v76 = vadd.f32 %v24, %v75
  %v77 = vpop.f32.mrb[0].mxu0
  %v78 = vpop.f32.mrb[0].mxu0
  %v79 = vadd.f32 %v24, %v78
  %v80 = vpop.f32.mrb[0].mxu0
  %81 = vdwg.mxu0
  %82 = vst [vmem:[%s3] sm:$0xff] %v76
  %83 = vst [vmem:[%s3 + $0x8] sm:$0xff] %v79
  %s84 = scalar_lea.vmem %s1, 8
  %v85 = vld [vmem:[%s84] sm:$0xf]
  %v86 = vld [vmem:[%s84 + $0x4] sm:$0xf]
  %s87 = scalar_lea.vmem %s2, 1
  %v88 = vld [vmem:[%s87] sm:$0x1]
  %v90 = vlaneseq
  %v91 = vshrl.u32 %v90, 7
  %v92 = vsub.s32 0, %v91
  %v93 = vrot.slane %v88, %v92
  %v97 = vunpack.c.l.b16 %v85
  %v98 = vunpack.c.l.b16 %v86
  %v99 = vpack.c.b16 %v98, %v97
  %101 = vmatprep.subr.bf16.mxu0 0
  %102 = vmatpush1.bf16.msra.mxu0 %v99
  %103 = vmatprep.subr.bf16.mxu0 0
  %104 = vmatpush1.bf16.msra.mxu0 0
  %105 = vmatprep.subr.bf16.mxu0 0
  %106 = vmatpush1.bf16.msra.mxu0 0
  %107 = vmatprep.subr.bf16.mxu0 0
  %108 = vmatpush1.bf16.msra.mxu0 0
  %109 = vmatprep.subr.bf16.mxu0 0
  %110 = vmatpush1.bf16.msra.mxu0 0
  %111 = vmatprep.subr.bf16.mxu0 0
  %112 = vmatpush1.bf16.msra.mxu0 0
  %113 = vmatprep.subr.bf16.mxu0 0
  %114 = vmatpush1.bf16.msra.mxu0 0
  %115 = vmatprep.subr.bf16.mxu0 0
  %116 = vmatpush1.bf16.msra.mxu0 0
  %117 = vmatprep.subr.bf16.mxu0 0
  %118 = vmatpush1.bf16.msra.mxu0 0
  %119 = vmatprep.subr.bf16.mxu0 0
  %120 = vmatpush1.bf16.msra.mxu0 0
  %121 = vmatprep.subr.bf16.mxu0 0
  %122 = vmatpush1.bf16.msra.mxu0 0
  %123 = vmatprep.subr.bf16.mxu0 0
  %124 = vmatpush1.bf16.msra.mxu0 0
  %125 = vmatprep.subr.bf16.mxu0 0
  %126 = vmatpush1.bf16.msra.mxu0 0
  %127 = vmatprep.subr.bf16.mxu0 0
  %128 = vmatpush1.bf16.msra.mxu0 0
  %129 = vmatprep.subr.bf16.mxu0 0
  %130 = vmatpush1.bf16.msra.mxu0 0
  %131 = vmatprep.subr.bf16.mxu0 0
  %132 = vmatpush1.bf16.msra.mxu0 0
  %133 = vmatprep.mubr.bf16.mxu0 0
  %134 = vmatmul.mubr.bf16.gmra.mrb[0].mxu0 %v39
  %v135 = vpop.f32.mrb[0].mxu0
  %v136 = vadd.f32 %v93, %v135
  %v137 = vpop.f32.mrb[0].mxu0
  %v138 = vpop.f32.mrb[0].mxu0
  %v139 = vadd.f32 %v93, %v138
  %v140 = vpop.f32.mrb[0].mxu0
  %141 = vdwg.mxu0
  %s142 = scalar_lea.vmem %s3, 16
  %143 = vst [vmem:[%s142] sm:$0xff] %v136
  %144 = vst [vmem:[%s142 + $0x8] sm:$0xff] %v139
  // Predicated region
  $region14: #{bidirectional_lstm_forward.5} parent=0 // pred_check
    _
  $region15: #{bidirectional_lstm_forward.5} parent=0 // pred_check_branch
    %146 = sbr.rel (0) target = $region17
  $region16: #{bidirectional_lstm_forward.5} parent=0 // pred_region
    _
  $region17: #{bidirectional_lstm_forward.5} parent=0 // pred_fallthru
    _
  // Predicated region
  $region18: #{bidirectional_lstm_forward.5} parent=0 // pred_check
    _
  $region19: #{bidirectional_lstm_forward.5} parent=0 // pred_check_branch
    %148 = sbr.rel (0) target = $region21
  $region20: #{bidirectional_lstm_forward.5} parent=0 // pred_region
    _
  $region21: #{bidirectional_lstm_forward.5} parent=0 // pred_fallthru
    _

// kernel: bidirectional_lstm_forward.7
$region0: #{bidirectional_lstm_forward.7}
  #allocation0 [shape = 'u32[]', space=smem, size = 0x4, offset = 0x4, fixed_abs, tag = 'smem constant byte address 0x4 - core index']
  #allocation1 [shape = 'u32[144,128]{1,0:T(1,128)}', space=vmem, size = 0x12000, scoped, tag = 'internal scratch']
  %s0 = inlined_call_operand.vmem [shape: bf16[2,16,32], index: 0, kind: input, shape index: {}]
  %s1 = inlined_call_operand.vmem [shape: bf16[2,32,128], index: 1, kind: input, shape index: {}]
  %s2 = inlined_call_operand.vmem [shape: bf16[2,32,128], index: 2, kind: input, shape index: {}]
  %s3 = inlined_call_operand.vmem [shape: f32[2,1,128], index: 3, kind: input, shape index: {}]
  %s4 = inlined_call_operand.vmem [shape: f32[2,16,128], index: 4, kind: output, shape index: {}]
  %s5 = sld [smem:[#allocation0]]
  $region26: #{bidirectional_lstm_forward.7} parent=0
    _
  %s7 = ssub.s32 1, %s5
  %s8 = scalar_select 0, %s7, %s5
  // Predicated region
  $region2: #{bidirectional_lstm_forward.7} parent=0 // pred_check
    _
  $region3: #{bidirectional_lstm_forward.7} parent=0 // pred_check_branch
    %10 = sbr.rel (0) target = $region5
  $region4: #{bidirectional_lstm_forward.7} parent=0 // pred_region
    _
  $region5: #{bidirectional_lstm_forward.7} parent=0 // pred_fallthru
    _
  // Predicated region
  $region6: #{bidirectional_lstm_forward.7} parent=0 // pred_check
    _
  $region7: #{bidirectional_lstm_forward.7} parent=0 // pred_check_branch
    %12 = sbr.rel (0) target = $region9
  $region8: #{bidirectional_lstm_forward.7} parent=0 // pred_region
    _
  $region9: #{bidirectional_lstm_forward.7} parent=0 // pred_fallthru
    _
  // Predicated region
  $region10: #{bidirectional_lstm_forward.7} parent=0 // pred_check
    _
  $region11: #{bidirectional_lstm_forward.7} parent=0 // pred_check_branch
    %14 = sbr.rel (0) target = $region13
  $region12: #{bidirectional_lstm_forward.7} parent=0 // pred_region
    _
  $region13: #{bidirectional_lstm_forward.7} parent=0 // pred_fallthru
    _
  // Predicated region
  $region14: #{bidirectional_lstm_forward.7} parent=0 // pred_check
    _
  $region15: #{bidirectional_lstm_forward.7} parent=0 // pred_check_branch
    %16 = sbr.rel (0) target = $region17
  $region16: #{bidirectional_lstm_forward.7} parent=0 // pred_region
    _
  $region17: #{bidirectional_lstm_forward.7} parent=0 // pred_fallthru
    _
  %v18 = vld [vmem:[%s0] sm:$0xf]
  %v19 = vld [vmem:[%s0 + $0x4] sm:$0xf]
  %s20 = scalar_lea.vmem %s0, 8
  %v21 = vld [vmem:[%s20] sm:$0xf]
  %v22 = vld [vmem:[%s20 + $0x4] sm:$0xf]
  %v23 = vld [vmem:[%s1] sm:$0xf]
  %v24 = vld [vmem:[%s1 + $0x4] sm:$0xf]
  %v25 = vld [vmem:[%s1 + $0x8] sm:$0xf]
  %v26 = vld [vmem:[%s1 + $0xc] sm:$0xf]
  %v27 = vld [vmem:[%s2] sm:$0xf]
  %v28 = vld [vmem:[%s2 + $0x4] sm:$0xf]
  %v29 = vld [vmem:[%s2 + $0x8] sm:$0xf]
  %v30 = vld [vmem:[%s2 + $0xc] sm:$0xf]
  %v33 = vunpack.c.l.b16 %v21
  %v34 = vunpack.c.l.b16 %v22
  %v35 = vpack.c.b16 %v34, %v33
  %v40 = vunpack.c.l.b16 %v27
  %v41 = vunpack.c.l.b16 %v28
  %v42 = vunpack.c.l.b16 %v29
  %v43 = vunpack.c.l.b16 %v30
  %v44 = vpack.c.b16 %v41, %v40
  %v45 = vpack.c.b16 %v43, %v42
  %vm48 = vcmask 261120
  %v50 = vsel %vm48, %v35, 0
  %52 = vmatprep.subr.bf16.mxu0 0
  %53 = vmatpush1.bf16.msra.mxu0 %v44
  %54 = vmatprep.subr.bf16.mxu0 0
  %55 = vmatpush1.bf16.msra.mxu0 %v45
  %56 = vmatprep.subr.bf16.mxu0 0
  %57 = vmatpush1.bf16.msra.mxu0 0
  %58 = vmatprep.subr.bf16.mxu0 0
  %59 = vmatpush1.bf16.msra.mxu0 0
  %60 = vmatprep.subr.bf16.mxu0 0
  %61 = vmatpush1.bf16.msra.mxu0 0
  %62 = vmatprep.subr.bf16.mxu0 0
  %63 = vmatpush1.bf16.msra.mxu0 0
  %64 = vmatprep.subr.bf16.mxu0 0
  %65 = vmatpush1.bf16.msra.mxu0 0
  %66 = vmatprep.subr.bf16.mxu0 0
  %67 = vmatpush1.bf16.msra.mxu0 0
  %68 = vmatprep.subr.bf16.mxu0 0
  %69 = vmatpush1.bf16.msra.mxu0 0
  %70 = vmatprep.subr.bf16.mxu0 0
  %71 = vmatpush1.bf16.msra.mxu0 0
  %72 = vmatprep.subr.bf16.mxu0 0
  %73 = vmatpush1.bf16.msra.mxu0 0
  %74 = vmatprep.subr.bf16.mxu0 0
  %75 = vmatpush1.bf16.msra.mxu0 0
  %76 = vmatprep.subr.bf16.mxu0 0
  %77 = vmatpush1.bf16.msra.mxu0 0
  %78 = vmatprep.subr.bf16.mxu0 0
  %79 = vmatpush1.bf16.msra.mxu0 0
  %80 = vmatprep.subr.bf16.mxu0 0
  %81 = vmatpush1.bf16.msra.mxu0 0
  %82 = vmatprep.subr.bf16.mxu0 0
  %83 = vmatpush1.bf16.msra.mxu0 0
  %84 = vmatprep.mubr.bf16.mxu0 0
  %85 = vmatmul.mubr.bf16.gmra.mrb[0].mxu0 %v50
  %v86 = vpop.f32.mrb[0].mxu0
  %v87 = vadd.f32 0.0, %v86
  %v88 = vpop.f32.mrb[0].mxu0
  %v89 = vpop.f32.mrb[0].mxu0
  %v90 = vadd.f32 0.0, %v89
  %v91 = vpop.f32.mrb[0].mxu0
  %92 = vdwg.mxu0
  %v95 = vunpack.c.l.b16 %v18
  %v96 = vunpack.c.l.b16 %v19
  %v97 = vpack.c.b16 %v96, %v95
  %v102 = vunpack.c.l.b16 %v23
  %v103 = vunpack.c.l.b16 %v24
  %v104 = vunpack.c.l.b16 %v25
  %v105 = vunpack.c.l.b16 %v26
  %v106 = vpack.c.b16 %v103, %v102
  %v107 = vpack.c.b16 %v105, %v104
  %v111 = vsel %vm48, %v97, 0
  %113 = vmatprep.subr.bf16.mxu0 0
  %114 = vmatpush1.bf16.msra.mxu0 %v106
  %115 = vmatprep.subr.bf16.mxu0 0
  %116 = vmatpush1.bf16.msra.mxu0 %v107
  %117 = vmatprep.subr.bf16.mxu0 0
  %118 = vmatpush1.bf16.msra.mxu0 0
  %119 = vmatprep.subr.bf16.mxu0 0
  %120 = vmatpush1.bf16.msra.mxu0 0
  %121 = vmatprep.subr.bf16.mxu0 0
  %122 = vmatpush1.bf16.msra.mxu0 0
  %123 = vmatprep.subr.bf16.mxu0 0
  %124 = vmatpush1.bf16.msra.mxu0 0
  %125 = vmatprep.subr.bf16.mxu0 0
  %126 = vmatpush1.bf16.msra.mxu0 0
  %127 = vmatprep.subr.bf16.mxu0 0
  %128 = vmatpush1.bf16.msra.mxu0 0
  %129 = vmatprep.subr.bf16.mxu0 0
  %130 = vmatpush1.bf16.msra.mxu0 0
  %131 = vmatprep.subr.bf16.mxu0 0
  %132 = vmatpush1.bf16.msra.mxu0 0
  %133 = vmatprep.subr.bf16.mxu0 0
  %134 = vmatpush1.bf16.msra.mxu0 0
  %135 = vmatprep.subr.bf16.mxu0 0
  %136 = vmatpush1.bf16.msra.mxu0 0
  %137 = vmatprep.subr.bf16.mxu0 0
  %138 = vmatpush1.bf16.msra.mxu0 0
  %139 = vmatprep.subr.bf16.mxu0 0
  %140 = vmatpush1.bf16.msra.mxu0 0
  %141 = vmatprep.subr.bf16.mxu0 0
  %142 = vmatpush1.bf16.msra.mxu0 0
  %143 = vmatprep.subr.bf16.mxu0 0
  %144 = vmatpush1.bf16.msra.mxu0 0
  %145 = vmatprep.mubr.bf16.mxu0 0
  %146 = vmatmul.mubr.bf16.gmra.mrb[0].mxu0 %v111
  %v147 = vpop.f32.mrb[0].mxu0
  %v148 = vadd.f32 %v87, %v147
  %v149 = vpop.f32.mrb[0].mxu0
  %v150 = vpop.f32.mrb[0].mxu0
  %v151 = vadd.f32 %v90, %v150
  %v152 = vpop.f32.mrb[0].mxu0
  %153 = vdwg.mxu0
  %v154 = vld [vmem:[%s3] sm:$0x1]
  %v156 = vlaneseq
  %v157 = vshrl.u32 %v156, 7
  %v158 = vsub.s32 0, %v157
  %v159 = vrot.slane %v154, %v158
  %v161 = vadd.f32 %v148, %v159
  %v162 = vadd.f32 %v151, %v159
  %163 = vst [vmem:[%s4] sm:$0xff] %v161
  %164 = vst [vmem:[%s4 + $0x8] sm:$0xff] %v162
  %s165 = scalar_lea.vmem %s1, 16
  %v166 = vld [vmem:[%s165] sm:$0xf]
  %v167 = vld [vmem:[%s165 + $0x4] sm:$0xf]
  %v168 = vld [vmem:[%s165 + $0x8] sm:$0xf]
  %v169 = vld [vmem:[%s165 + $0xc] sm:$0xf]
  %s170 = scalar_lea.vmem %s2, 16
  %v171 = vld [vmem:[%s170] sm:$0xf]
  %v172 = vld [vmem:[%s170 + $0x4] sm:$0xf]
  %v173 = vld [vmem:[%s170 + $0x8] sm:$0xf]
  %v174 = vld [vmem:[%s170 + $0xc] sm:$0xf]
  %v179 = vunpack.c.l.b16 %v171
  %v180 = vunpack.c.l.b16 %v172
  %v181 = vunpack.c.l.b16 %v173
  %v182 = vunpack.c.l.b16 %v174
  %v183 = vpack.c.b16 %v180, %v179
  %v184 = vpack.c.b16 %v182, %v181
  %187 = vmatprep.subr.bf16.mxu0 0
  %188 = vmatpush1.bf16.msra.mxu0 %v183
  %189 = vmatprep.subr.bf16.mxu0 0
  %190 = vmatpush1.bf16.msra.mxu0 %v184
  %191 = vmatprep.subr.bf16.mxu0 0
  %192 = vmatpush1.bf16.msra.mxu0 0
  %193 = vmatprep.subr.bf16.mxu0 0
  %194 = vmatpush1.bf16.msra.mxu0 0
  %195 = vmatprep.subr.bf16.mxu0 0
  %196 = vmatpush1.bf16.msra.mxu0 0
  %197 = vmatprep.subr.bf16.mxu0 0
  %198 = vmatpush1.bf16.msra.mxu0 0
  %199 = vmatprep.subr.bf16.mxu0 0
  %200 = vmatpush1.bf16.msra.mxu0 0
  %201 = vmatprep.subr.bf16.mxu0 0
  %202 = vmatpush1.bf16.msra.mxu0 0
  %203 = vmatprep.subr.bf16.mxu0 0
  %204 = vmatpush1.bf16.msra.mxu0 0
  %205 = vmatprep.subr.bf16.mxu0 0
  %206 = vmatpush1.bf16.msra.mxu0 0
  %207 = vmatprep.subr.bf16.mxu0 0
  %208 = vmatpush1.bf16.msra.mxu0 0
  %209 = vmatprep.subr.bf16.mxu0 0
  %210 = vmatpush1.bf16.msra.mxu0 0
  %211 = vmatprep.subr.bf16.mxu0 0
  %212 = vmatpush1.bf16.msra.mxu0 0
  %213 = vmatprep.subr.bf16.mxu0 0
  %214 = vmatpush1.bf16.msra.mxu0 0
  %215 = vmatprep.subr.bf16.mxu0 0
  %216 = vmatpush1.bf16.msra.mxu0 0
  %217 = vmatprep.subr.bf16.mxu0 0
  %218 = vmatpush1.bf16.msra.mxu0 0
  %219 = vmatprep.mubr.bf16.mxu0 0
  %220 = vmatmul.mubr.bf16.gmra.mrb[0].mxu0 %v50
  %v221 = vpop.f32.mrb[0].mxu0
  %v222 = vadd.f32 0.0, %v221
  %v223 = vpop.f32.mrb[0].mxu0
  %v224 = vpop.f32.mrb[0].mxu0
  %v225 = vadd.f32 0.0, %v224
  %v226 = vpop.f32.mrb[0].mxu0
  %227 = vdwg.mxu0
  %v232 = vunpack.c.l.b16 %v166
  %v233 = vunpack.c.l.b16 %v167
  %v234 = vunpack.c.l.b16 %v168
  %v235 = vunpack.c.l.b16 %v169
  %v236 = vpack.c.b16 %v233, %v232
  %v237 = vpack.c.b16 %v235, %v234
  %240 = vmatprep.subr.bf16.mxu0 0
  %241 = vmatpush1.bf16.msra.mxu0 %v236
  %242 = vmatprep.subr.bf16.mxu0 0
  %243 = vmatpush1.bf16.msra.mxu0 %v237
  %244 = vmatprep.subr.bf16.mxu0 0
  %245 = vmatpush1.bf16.msra.mxu0 0
  %246 = vmatprep.subr.bf16.mxu0 0
  %247 = vmatpush1.bf16.msra.mxu0 0
  %248 = vmatprep.subr.bf16.mxu0 0
  %249 = vmatpush1.bf16.msra.mxu0 0
  %250 = vmatprep.subr.bf16.mxu0 0
  %251 = vmatpush1.bf16.msra.mxu0 0
  %252 = vmatprep.subr.bf16.mxu0 0
  %253 = vmatpush1.bf16.msra.mxu0 0
  %254 = vmatprep.subr.bf16.mxu0 0
  %255 = vmatpush1.bf16.msra.mxu0 0
  %256 = vmatprep.subr.bf16.mxu0 0
  %257 = vmatpush1.bf16.msra.mxu0 0
  %258 = vmatprep.subr.bf16.mxu0 0
  %259 = vmatpush1.bf16.msra.mxu0 0
  %260 = vmatprep.subr.bf16.mxu0 0
  %261 = vmatpush1.bf16.msra.mxu0 0
  %262 = vmatprep.subr.bf16.mxu0 0
  %263 = vmatpush1.bf16.msra.mxu0 0
  %264 = vmatprep.subr.bf16.mxu0 0
  %265 = vmatpush1.bf16.msra.mxu0 0
  %266 = vmatprep.subr.bf16.mxu0 0
  %267 = vmatpush1.bf16.msra.mxu0 0
  %268 = vmatprep.subr.bf16.mxu0 0
  %269 = vmatpush1.bf16.msra.mxu0 0
  %270 = vmatprep.subr.bf16.mxu0 0
  %271 = vmatpush1.bf16.msra.mxu0 0
  %272 = vmatprep.mubr.bf16.mxu0 0
  %273 = vmatmul.mubr.bf16.gmra.mrb[0].mxu0 %v111
  %v274 = vpop.f32.mrb[0].mxu0
  %v275 = vadd.f32 %v222, %v274
  %v276 = vpop.f32.mrb[0].mxu0
  %v277 = vpop.f32.mrb[0].mxu0
  %v278 = vadd.f32 %v225, %v277
  %v279 = vpop.f32.mrb[0].mxu0
  %280 = vdwg.mxu0
  %s281 = scalar_lea.vmem %s3, 1
  %v282 = vld [vmem:[%s281] sm:$0x1]
  %v284 = vlaneseq
  %v285 = vshrl.u32 %v284, 7
  %v286 = vsub.s32 0, %v285
  %v287 = vrot.slane %v282, %v286
  %v289 = vadd.f32 %v275, %v287
  %v290 = vadd.f32 %v278, %v287
  %s291 = scalar_lea.vmem %s4, 16
  %292 = vst [vmem:[%s291] sm:$0xff] %v289
  %293 = vst [vmem:[%s291 + $0x8] sm:$0xff] %v290
  // Predicated region
  $region18: #{bidirectional_lstm_forward.7} parent=0 // pred_check
    _
  $region19: #{bidirectional_lstm_forward.7} parent=0 // pred_check_branch
    %295 = sbr.rel (0) target = $region21
  $region20: #{bidirectional_lstm_forward.7} parent=0 // pred_region
    _
  $region21: #{bidirectional_lstm_forward.7} parent=0 // pred_fallthru
    _
  // Predicated region
  $region22: #{bidirectional_lstm_forward.7} parent=0 // pred_check
    _
  $region23: #{bidirectional_lstm_forward.7} parent=0 // pred_check_branch
    %297 = sbr.rel (0) target = $region25
  $region24: #{bidirectional_lstm_forward.7} parent=0 // pred_region
    _
  $region25: #{bidirectional_lstm_forward.7} parent=0 // pred_fallthru
    _

// kernel: bidirectional_lstm_forward.9
$region0: #{bidirectional_lstm_forward.9}
  #allocation0 [shape = 'u32[]', space=smem, size = 0x4, offset = 0x4, fixed_abs, tag = 'smem constant byte address 0x4 - core index']
  #allocation1 [shape = 'u32[144,128]{1,0:T(1,128)}', space=vmem, size = 0x12000, scoped, tag = 'internal scratch']
  #allocation2 [shape = 'f32[1,1]{1,0:T(1,128)S(1)}', space=vmem, size = 0x200, scoped, tag = 'scoped memory for bidirectional_lstm_forward.9']
  %s0 = inlined_call_operand.vmem [shape: f32[2,2,32], index: 0, kind: input, shape index: {}]
  %s1 = inlined_call_operand.vmem [shape: f32[32,1], index: 1, kind: input, shape index: {}]
  %s2 = inlined_call_operand.vmem [shape: f32[32,1], index: 2, kind: input, shape index: {}]
  %s3 = inlined_call_operand.<no memory space> [shape: f32[1,1], index: 3, kind: input, shape index: {}]
  %s4 = inlined_call_operand.vmem [shape: f32[2,1], index: 4, kind: output, shape index: {}]
  %s5 = sld [smem:[#allocation0]]
  $region26: #{bidirectional_lstm_forward.9} parent=0
    _
  %s7 = ssub.s32 1, %s5
  %s8 = scalar_select 0, %s7, %s5
  %v9 = vstv %s3
  %10 = vst [vmem:[#allocation2] sm:$0x1] %v9
  // Predicated region
  $region2: #{bidirectional_lstm_forward.9} parent=0 // pred_check
    _
  $region3: #{bidirectional_lstm_forward.9} parent=0 // pred_check_branch
    %12 = sbr.rel (0) target = $region5
  $region4: #{bidirectional_lstm_forward.9} parent=0 // pred_region
    _
  $region5: #{bidirectional_lstm_forward.9} parent=0 // pred_fallthru
    _
  // Predicated region
  $region6: #{bidirectional_lstm_forward.9} parent=0 // pred_check
    _
  $region7: #{bidirectional_lstm_forward.9} parent=0 // pred_check_branch
    %14 = sbr.rel (0) target = $region9
  $region8: #{bidirectional_lstm_forward.9} parent=0 // pred_region
    _
  $region9: #{bidirectional_lstm_forward.9} parent=0 // pred_fallthru
    _
  // Predicated region
  $region10: #{bidirectional_lstm_forward.9} parent=0 // pred_check
    _
  $region11: #{bidirectional_lstm_forward.9} parent=0 // pred_check_branch
    %16 = sbr.rel (0) target = $region13
  $region12: #{bidirectional_lstm_forward.9} parent=0 // pred_region
    _
  $region13: #{bidirectional_lstm_forward.9} parent=0 // pred_fallthru
    _
  // Predicated region
  $region14: #{bidirectional_lstm_forward.9} parent=0 // pred_check
    _
  $region15: #{bidirectional_lstm_forward.9} parent=0 // pred_check_branch
    %18 = sbr.rel (0) target = $region17
  $region16: #{bidirectional_lstm_forward.9} parent=0 // pred_region
    _
  $region17: #{bidirectional_lstm_forward.9} parent=0 // pred_fallthru
    _
  %v19 = vld [vmem:[%s0] sm:$0x3]
  %v20 = vld [vmem:[%s1] sm:$0xff]
  %v21 = vld [vmem:[%s1 + $0x8] sm:$0xff]
  %v22 = vld [vmem:[%s1 + $0x10] sm:$0xff]
  %v23 = vld [vmem:[%s1 + $0x18] sm:$0xff]
  %s24 = scalar_lea.vmem %s0, 2
  %v25 = vld [vmem:[%s24] sm:$0x3]
  %v26 = vld [vmem:[%s2] sm:$0xff]
  %v27 = vld [vmem:[%s2 + $0x8] sm:$0xff]
  %v28 = vld [vmem:[%s2 + $0x10] sm:$0xff]
  %v29 = vld [vmem:[%s2 + $0x18] sm:$0xff]
  %vm30 = vcmask 261120
  %v32 = vsel %vm30, %v25, 0
  %34 = vmatprep.subr.mxu0 0.0
  %35 = vmatpush1.msra.mxu0 %v26
  %36 = vmatprep.subr.mxu0 0.0
  %37 = vmatpush1.msra.mxu0 %v27
  %38 = vmatprep.subr.mxu0 0.0
  %39 = vmatpush1.msra.mxu0 %v28
  %40 = vmatprep.subr.mxu0 0.0
  %41 = vmatpush1.msra.mxu0 %v29
  %42 = vmatprep.subr.mxu0 0.0
  %43 = vmatpush1.msra.mxu0 0.0
  %44 = vmatprep.subr.mxu0 0.0
  %45 = vmatpush1.msra.mxu0 0.0
  %46 = vmatprep.subr.mxu0 0.0
  %47 = vmatpush1.msra.mxu0 0.0
  %48 = vmatprep.subr.mxu0 0.0
  %49 = vmatpush1.msra.mxu0 0.0
  %50 = vmatprep.subr.mxu0 0.0
  %51 = vmatpush1.msra.mxu0 0.0
  %52 = vmatprep.subr.mxu0 0.0
  %53 = vmatpush1.msra.mxu0 0.0
  %54 = vmatprep.subr.mxu0 0.0
  %55 = vmatpush1.msra.mxu0 0.0
  %56 = vmatprep.subr.mxu0 0.0
  %57 = vmatpush1.msra.mxu0 0.0
  %58 = vmatprep.subr.mxu0 0.0
  %59 = vmatpush1.msra.mxu0 0.0
  %60 = vmatprep.subr.mxu0 0.0
  %61 = vmatpush1.msra.mxu0 0.0
  %62 = vmatprep.subr.mxu0 0.0
  %63 = vmatpush1.msra.mxu0 0.0
  %64 = vmatprep.subr.mxu0 0.0
  %65 = vmatpush1.msra.mxu0 0.0
  %66 = vmatprep.subr.mxu0 0.0
  %67 = vmatpush1.msra.mxu0 0.0
  %68 = vmatprep.subr.mxu0 0.0
  %69 = vmatpush1.msra.mxu0 0.0
  %70 = vmatprep.subr.mxu0 0.0
  %71 = vmatpush1.msra.mxu0 0.0
  %72 = vmatprep.subr.mxu0 0.0
  %73 = vmatpush1.msra.mxu0 0.0
  %74 = vmatprep.subr.mxu0 0.0
  %75 = vmatpush1.msra.mxu0 0.0
  %76 = vmatprep.subr.mxu0 0.0
  %77 = vmatpush1.msra.mxu0 0.0
  %78 = vmatprep.subr.mxu0 0.0
  %79 = vmatpush1.msra.mxu0 0.0
  %80 = vmatprep.subr.mxu0 0.0
  %81 = vmatpush1.msra.mxu0 0.0
  %82 = vmatprep.subr.mxu0 0.0
  %83 = vmatpush1.msra.mxu0 0.0
  %84 = vmatprep.subr.mxu0 0.0
  %85 = vmatpush1.msra.mxu0 0.0
  %86 = vmatprep.subr.mxu0 0.0
  %87 = vmatpush1.msra.mxu0 0.0
  %88 = vmatprep.subr.mxu0 0.0
  %89 = vmatpush1.msra.mxu0 0.0
  %90 = vmatprep.subr.mxu0 0.0
  %91 = vmatpush1.msra.mxu0 0.0
  %92 = vmatprep.subr.mxu0 0.0
  %93 = vmatpush1.msra.mxu0 0.0
  %94 = vmatprep.subr.mxu0 0.0
  %95 = vmatpush1.msra.mxu0 0.0
  %96 = vmatprep.subr.mxu0 0.0
  %97 = vmatpush1.msra.mxu0 0.0
  %98 = vmatprep.mubr.f32.mxu0 0.0
  %99 = vmatmul.mubr.f32.gmra.mrb[0].mxu0 %v32
  %v100 = vpop.f32.mrb[0].mxu0
  %v101 = vadd.f32 0.0, %v100
  %v102 = vpop.f32.mrb[0].mxu0
  %103 = vdwg.mxu0
  %v105 = vsel %vm30, %v19, 0
  %107 = vmatprep.subr.mxu0 0.0
  %108 = vmatpush1.msra.mxu0 %v20
  %109 = vmatprep.subr.mxu0 0.0
  %110 = vmatpush1.msra.mxu0 %v21
  %111 = vmatprep.subr.mxu0 0.0
  %112 = vmatpush1.msra.mxu0 %v22
  %113 = vmatprep.subr.mxu0 0.0
  %114 = vmatpush1.msra.mxu0 %v23
  %115 = vmatprep.subr.mxu0 0.0
  %116 = vmatpush1.msra.mxu0 0.0
  %117 = vmatprep.subr.mxu0 0.0
  %118 = vmatpush1.msra.mxu0 0.0
  %119 = vmatprep.subr.mxu0 0.0
  %120 = vmatpush1.msra.mxu0 0.0
  %121 = vmatprep.subr.mxu0 0.0
  %122 = vmatpush1.msra.mxu0 0.0
  %123 = vmatprep.subr.mxu0 0.0
  %124 = vmatpush1.msra.mxu0 0.0
  %125 = vmatprep.subr.mxu0 0.0
  %126 = vmatpush1.msra.mxu0 0.0
  %127 = vmatprep.subr.mxu0 0.0
  %128 = vmatpush1.msra.mxu0 0.0
  %129 = vmatprep.subr.mxu0 0.0
  %130 = vmatpush1.msra.mxu0 0.0
  %131 = vmatprep.subr.mxu0 0.0
  %132 = vmatpush1.msra.mxu0 0.0
  %133 = vmatprep.subr.mxu0 0.0
  %134 = vmatpush1.msra.mxu0 0.0
  %135 = vmatprep.subr.mxu0 0.0
  %136 = vmatpush1.msra.mxu0 0.0
  %137 = vmatprep.subr.mxu0 0.0
  %138 = vmatpush1.msra.mxu0 0.0
  %139 = vmatprep.subr.mxu0 0.0
  %140 = vmatpush1.msra.mxu0 0.0
  %141 = vmatprep.subr.mxu0 0.0
  %142 = vmatpush1.msra.mxu0 0.0
  %143 = vmatprep.subr.mxu0 0.0
  %144 = vmatpush1.msra.mxu0 0.0
  %145 = vmatprep.subr.mxu0 0.0
  %146 = vmatpush1.msra.mxu0 0.0
  %147 = vmatprep.subr.mxu0 0.0
  %148 = vmatpush1.msra.mxu0 0.0
  %149 = vmatprep.subr.mxu0 0.0
  %150 = vmatpush1.msra.mxu0 0.0
  %151 = vmatprep.subr.mxu0 0.0
  %152 = vmatpush1.msra.mxu0 0.0
  %153 = vmatprep.subr.mxu0 0.0
  %154 = vmatpush1.msra.mxu0 0.0
  %155 = vmatprep.subr.mxu0 0.0
  %156 = vmatpush1.msra.mxu0 0.0
  %157 = vmatprep.subr.mxu0 0.0
  %158 = vmatpush1.msra.mxu0 0.0
  %159 = vmatprep.subr.mxu0 0.0
  %160 = vmatpush1.msra.mxu0 0.0
  %161 = vmatprep.subr.mxu0 0.0
  %162 = vmatpush1.msra.mxu0 0.0
  %163 = vmatprep.subr.mxu0 0.0
  %164 = vmatpush1.msra.mxu0 0.0
  %165 = vmatprep.subr.mxu0 0.0
  %166 = vmatpush1.msra.mxu0 0.0
  %167 = vmatprep.subr.mxu0 0.0
  %168 = vmatpush1.msra.mxu0 0.0
  %169 = vmatprep.subr.mxu0 0.0
  %170 = vmatpush1.msra.mxu0 0.0
  %171 = vmatprep.mubr.f32.mxu0 0.0
  %172 = vmatmul.mubr.f32.gmra.mrb[0].mxu0 %v105
  %v173 = vpop.f32.mrb[0].mxu0
  %v174 = vadd.f32 %v101, %v173
  %v175 = vpop.f32.mrb[0].mxu0
  %176 = vdwg.mxu0
  %v177 = vld [vmem:[#allocation2] sm:$0x1]
  %v179 = vlaneseq
  %v180 = vshrl.u32 %v179, 7
  %v181 = vsub.s32 0, %v180
  %v182 = vrot.slane %v177, %v181
  %v184 = vadd.f32 %v174, %v182
  %vm185 = vcmask 1024
  %186 = vst.msk [vmem:[%s4] sm:$0x3] %vm185, %v184
  // Predicated region
  $region18: #{bidirectional_lstm_forward.9} parent=0 // pred_check
    _
  $region19: #{bidirectional_lstm_forward.9} parent=0 // pred_check_branch
    %188 = sbr.rel (0) target = $region21
  $region20: #{bidirectional_lstm_forward.9} parent=0 // pred_region
    _
  $region21: #{bidirectional_lstm_forward.9} parent=0 // pred_fallthru
    _
  // Predicated region
  $region22: #{bidirectional_lstm_forward.9} parent=0 // pred_check
    _
  $region23: #{bidirectional_lstm_forward.9} parent=0 // pred_check_branch
    %190 = sbr.rel (0) target = $region25
  $region24: #{bidirectional_lstm_forward.9} parent=0 // pred_region
    _
  $region25: #{bidirectional_lstm_forward.9} parent=0 // pred_fallthru
    _

// kernel: bidirectional_lstm_forward.6
$region0: #{bidirectional_lstm_forward.6}
  #allocation0 [shape = 'u32[]', space=smem, size = 0x4, offset = 0x4, fixed_abs, tag = 'smem constant byte address 0x4 - core index']
  #allocation1 [shape = 'u32[144,128]{1,0:T(1,128)}', space=vmem, size = 0x12000, scoped, tag = 'internal scratch']
  #allocation2 [shape = 'f32[2,32]{1,0:T(2,128)}', space=vmem, size = 0x400, scoped, tag = 'scratch operand']
  #allocation3 [shape = 'f32[2,32]{1,0:T(2,128)}', space=vmem, size = 0x400, scoped, tag = 'scratch operand']
  %s0 = inlined_call_operand.vmem [shape: s32[2,1], index: 0, kind: input, shape index: {}]
  %s1 = inlined_call_operand.vmem [shape: f32[2,8,2,128], index: 1, kind: input, shape index: {}]
  %s2 = inlined_call_operand.vmem [shape: bf16[2,32,128], index: 2, kind: input, shape index: {}]
  %s3 = inlined_call_operand.vmem [shape: bf16[2,8,2,32], index: 3, kind: output, shape index: {0}]
  %s4 = inlined_call_operand.hbm [shape: f32[2,2,32], index: 4, kind: output, shape index: {1}]
  %5 = xla_tuple %s3, %s4
  %s6 = sld [smem:[#allocation0]]
  $region61: #{bidirectional_lstm_forward.6} parent=0
    _
  %s8 = ssub.s32 1, %s6
  %s9 = scalar_select 0, %s8, %s6
  $region1: #{bidirectional_lstm_forward.6} parent=0
    #allocation4 [shape = 'u8[2048]{0}', space=vmem, size = 0x800, scoped, tag = 'output window, operand 1']
    #allocation5 [shape = 's32[2]{0}', space=sflag, size = 0x8, scoped, tag = 'scoped memory for bidirectional_lstm_forward.6']
    %10 = vsyncpa [#allocation5], 0
    %s11 = scalar_lea.sflag [#allocation5], 1
    %12 = vsyncpa %s11, 0
    loop: start=0, step=1, limit=4
    $region2: #{bidirectional_lstm_forward.6} parent=1 // loop_pre_header
      _
    $region3: #{bidirectional_lstm_forward.6} parent=1 // loop_header
      %s14 = sphi 0, %s18
      %p15 = scmp.ge.s32.totalorder %s14, 4
      %s21 = sphi 0, %s33
      %s22 = sphi 0, %s29
      %s23 = sphi 0, %s21
      %s24 = sphi 0, %s22
      %s25 = sphi 0, %s23
      %s26 = sphi 0, %s24
      %s34 = sphi 0, %s34
      %s36 = sphi 0, %s34
      %s37 = sphi 0, %s36
      %s51 = sphi 0, %s37
      %s67 = sphi 0, %s69
      %s70 = sphi 0, %s67
      %s71 = sphi 0, %s70
      %s87 = sphi 0, %s71
      %s93 = sphi 0, %s95
      %s96 = sphi 0, %s93
      %s97 = sphi 0, %s96
      %s113 = sphi 0, %s97
      %s129 = sphi 0, %s131
      %s132 = sphi 0, %s129
      %s133 = sphi 0, %s132
      %s149 = sphi 0, %s133
      %s155 = sphi 0, %s157
      %s158 = sphi 0, %s155
      %s159 = sphi 0, %s158
      %s175 = sphi 0, %s159
    $region4: #{bidirectional_lstm_forward.6} parent=1 // loop_header_branch
      %17 = sbr.rel (%p15) target = $region8
    $region5: #{bidirectional_lstm_forward.6} parent=1 // loop_body
      %s19 = ssub.s32 %s14, 1
      %s20 = ssub.s32 %s14, 2
      %s27 = sadd.s32 1, %s22
      %p28 = scmp.ge.s32.totalorder %s27, 1
      %s29 = scalar_select %p28, 0, %s27
      %s30 = sadd.s32 1, %s21
      %s31 = scalar_select %p28, %s30, %s21
      %p32 = scmp.ge.s32.totalorder %s31, 2
      %s33 = scalar_select %p32, 0, %s31
      %s35 = sadd.s32 %s34, 1
      %p38 = scmp.eq.s32.totalorder %s14, 1
      %p39 = scmp.ne.s32.totalorder %s34, %s36
      %p40 = scmp.eq.s32.totalorder %s14, 0
      %p41 = por %p39, %p40
      %p42 = scmp.ne.s32.totalorder %s34, %s36
      %p43 = scmp.eq.s32.totalorder %s19, 1
      %p44 = por %p42, %p43
      %p45 = scmp.ne.s32.totalorder %s36, %s37
      %p46 = scmp.eq.s32.totalorder %s19, 0
      %p47 = por %p45, %p46
      %p48 = scmp.ne.s32.totalorder %s36, %s37
      %p49 = scmp.eq.s32.totalorder %s20, 1
      %p50 = por %p48, %p49
      %p52 = scmp.ne.s32.totalorder %s37, %s51
      %p53 = scmp.eq.s32.totalorder %s20, 0
      %p54 = por %p52, %p53
      %s55 = smul.u32 %s22, 2
      %s56 = ssub.s32 0, %s55
      %s57 = smul.u32 %s21, %s56
      %s58 = sadd.s32 %s22, %s57
      %s59 = smul.u32 %s29, 2
      %s60 = ssub.s32 0, %s59
      %s61 = smul.u32 %s33, %s60
      %s62 = sadd.s32 %s29, %s61
      %s63 = ssub.s32 %s21, %s33
      %s64 = ssub.s32 %s58, %s62
      %s65 = sor.u32 %s63, %s64
      %p66 = scmp.eq.s32.totalorder %s65, 0
      %s68 = sadd.s32 %s67, 1
      %s69 = scalar_select %p66, %s67, %s68
      %p72 = pneg %p66
      %p73 = scmp.eq.s32.totalorder %s14, 1
      %p74 = por %p72, %p73
      %p75 = scmp.ne.s32.totalorder %s67, %s70
      %p76 = scmp.eq.s32.totalorder %s14, 0
      %p77 = por %p75, %p76
      %p78 = scmp.ne.s32.totalorder %s67, %s70
      %p79 = scmp.eq.s32.totalorder %s19, 1
      %p80 = por %p78, %p79
      %p81 = scmp.ne.s32.totalorder %s70, %s71
      %p82 = scmp.eq.s32.totalorder %s19, 0
      %p83 = por %p81, %p82
      %p84 = scmp.ne.s32.totalorder %s70, %s71
      %p85 = scmp.eq.s32.totalorder %s20, 1
      %p86 = por %p84, %p85
      %p88 = scmp.ne.s32.totalorder %s71, %s87
      %p89 = scmp.eq.s32.totalorder %s20, 0
      %p90 = por %p88, %p89
      %s91 = ssub.s32 %s21, %s33
      %p92 = scmp.eq.s32.totalorder %s91, 0
      %s94 = sadd.s32 %s93, 1
      %s95 = scalar_select %p92, %s93, %s94
      %p98 = pneg %p92
      %p99 = scmp.eq.s32.totalorder %s14, 1
      %p100 = por %p98, %p99
      %p101 = scmp.ne.s32.totalorder %s93, %s96
      %p102 = scmp.eq.s32.totalorder %s14, 0
      %p103 = por %p101, %p102
      %p104 = scmp.ne.s32.totalorder %s93, %s96
      %p105 = scmp.eq.s32.totalorder %s19, 1
      %p106 = por %p104, %p105
      %p107 = scmp.ne.s32.totalorder %s96, %s97
      %p108 = scmp.eq.s32.totalorder %s19, 0
      %p109 = por %p107, %p108
      %p110 = scmp.ne.s32.totalorder %s96, %s97
      %p111 = scmp.eq.s32.totalorder %s20, 1
      %p112 = por %p110, %p111
      %p114 = scmp.ne.s32.totalorder %s97, %s113
      %p115 = scmp.eq.s32.totalorder %s20, 0
      %p116 = por %p114, %p115
      %s117 = smul.u32 %s22, 2
      %s118 = ssub.s32 0, %s117
      %s119 = smul.u32 %s21, %s118
      %s120 = sadd.s32 %s22, %s119
      %s121 = smul.u32 %s29, 2
      %s122 = ssub.s32 0, %s121
      %s123 = smul.u32 %s33, %s122
      %s124 = sadd.s32 %s29, %s123
      %s125 = ssub.s32 %s21, %s33
      %s126 = ssub.s32 %s120, %s124
      %s127 = sor.u32 %s125, %s126
      %p128 = scmp.eq.s32.totalorder %s127, 0
      %s130 = sadd.s32 %s129, 1
      %s131 = scalar_select %p128, %s129, %s130
      %p134 = pneg %p128
      %p135 = scmp.eq.s32.totalorder %s14, 1
      %p136 = por %p134, %p135
      %p137 = scmp.ne.s32.totalorder %s129, %s132
      %p138 = scmp.eq.s32.totalorder %s14, 0
      %p139 = por %p137, %p138
      %p140 = scmp.ne.s32.totalorder %s129, %s132
      %p141 = scmp.eq.s32.totalorder %s19, 1
      %p142 = por %p140, %p141
      %p143 = scmp.ne.s32.totalorder %s132, %s133
      %p144 = scmp.eq.s32.totalorder %s19, 0
      %p145 = por %p143, %p144
      %p146 = scmp.ne.s32.totalorder %s132, %s133
      %p147 = scmp.eq.s32.totalorder %s20, 1
      %p148 = por %p146, %p147
      %p150 = scmp.ne.s32.totalorder %s133, %s149
      %p151 = scmp.eq.s32.totalorder %s20, 0
      %p152 = por %p150, %p151
      %s153 = ssub.s32 %s21, %s33
      %p154 = scmp.eq.s32.totalorder %s153, 0
      %s156 = sadd.s32 %s155, 1
      %s157 = scalar_select %p154, %s155, %s156
      %p160 = pneg %p154
      %p161 = scmp.eq.s32.totalorder %s14, 1
      %p162 = por %p160, %p161
      %p163 = scmp.ne.s32.totalorder %s155, %s158
      %p164 = scmp.eq.s32.totalorder %s14, 0
      %p165 = por %p163, %p164
      %p166 = scmp.ne.s32.totalorder %s155, %s158
      %p167 = scmp.eq.s32.totalorder %s19, 1
      %p168 = por %p166, %p167
      %p169 = scmp.ne.s32.totalorder %s158, %s159
      %p170 = scmp.eq.s32.totalorder %s19, 0
      %p171 = por %p169, %p170
      %p172 = scmp.ne.s32.totalorder %s158, %s159
      %p173 = scmp.eq.s32.totalorder %s20, 1
      %p174 = por %p172, %p173
      %p176 = scmp.ne.s32.totalorder %s159, %s175
      %p177 = scmp.eq.s32.totalorder %s20, 0
      %p178 = por %p176, %p177
      %p179 = scmp.le.s32.totalorder 1, %s14
      %p180 = scmp.lt.s32.totalorder %s14, 3
      %p181 = pnand %p179, %p180
      %p182 = pneg %p181
      // Predicated region
      $region9: #{bidirectional_lstm_forward.6} parent=5 // pred_check
        _
      $region10: #{bidirectional_lstm_forward.6} parent=5 // pred_check_branch
        %184 = sbr.rel (%p181) target = $region12
      $region11: #{bidirectional_lstm_forward.6} parent=5 // pred_region
        %s185 = ssub.s32 %s14, 1
        // Predicated region
        $region13: #{bidirectional_lstm_forward.6} parent=11 // pred_check
          %p186 = pneg %p47
        $region14: #{bidirectional_lstm_forward.6} parent=11 // pred_check_branch
          %188 = sbr.rel (%p186) target = $region16
        $region15: #{bidirectional_lstm_forward.6} parent=11 // pred_region
          _
        $region16: #{bidirectional_lstm_forward.6} parent=11 // pred_fallthru
          _
      $region12: #{bidirectional_lstm_forward.6} parent=5 // pred_fallthru
        _
      %p189 = scmp.lt.s32.totalorder %s14, 2
      // Predicated region
      $region17: #{bidirectional_lstm_forward.6} parent=5 // pred_check
        %p190 = pneg %p189
      $region18: #{bidirectional_lstm_forward.6} parent=5 // pred_check_branch
        %192 = sbr.rel (%p190) target = $region20
      $region19: #{bidirectional_lstm_forward.6} parent=5 // pred_region
        // Predicated region
        $region21: #{bidirectional_lstm_forward.6} parent=19 // pred_check
          %p193 = pneg %p77
        $region22: #{bidirectional_lstm_forward.6} parent=19 // pred_check_branch
          %195 = sbr.rel (%p193) target = $region24
        $region23: #{bidirectional_lstm_forward.6} parent=19 // pred_region
          %s196 = smul.u32 %s22, 2
          %s197 = ssub.s32 0, %s196
          %s198 = smul.u32 %s21, %s197
          %s199 = sadd.s32 %s22, %s198
          %s200 = smul.u32 8, %s199
          %p201 = scmp.lt.s32.totalorder %s21, 1
          %s202 = scalar_select %p201, %s21, 1
          %p203 = scmp.lt.s32.totalorder %s200, 7
          %s204 = scalar_select %p203, %s200, 7
          %s205 = smul.addr %s202, 8
          %s206 = sadd.s32 %s204, %s205
          %s207 = smul.addr %s206, 2
          %s208 = scalar_lea.vmem %s1, %s207
          %s209 = smul.u32 %s22, 2
          %s210 = ssub.s32 0, %s209
          %s211 = smul.u32 %s21, %s210
          %s212 = sadd.s32 %s22, %s211
          %s213 = smul.u32 8, %s212
        $region24: #{bidirectional_lstm_forward.6} parent=19 // pred_fallthru
          _
        // Predicated region
        $region25: #{bidirectional_lstm_forward.6} parent=19 // pred_check
          %p214 = pneg %p103
        $region26: #{bidirectional_lstm_forward.6} parent=19 // pred_check_branch
          %216 = sbr.rel (%p214) target = $region28
        $region27: #{bidirectional_lstm_forward.6} parent=19 // pred_region
          %p217 = scmp.lt.s32.totalorder %s21, 1
          %s218 = scalar_select %p217, %s21, 1
          %s219 = smul.addr %s218, 4
          %s220 = smul.addr %s219, 4
          %s221 = scalar_lea.vmem %s2, %s220
        $region28: #{bidirectional_lstm_forward.6} parent=19 // pred_fallthru
          _
      $region20: #{bidirectional_lstm_forward.6} parent=5 // pred_fallthru
        _
      %p222 = scmp.le.s32.totalorder 1, %s14
      %p223 = scmp.lt.s32.totalorder %s14, 3
      %p224 = pnand %p222, %p223
      %p225 = pneg %p224
      // Predicated region
      $region29: #{bidirectional_lstm_forward.6} parent=5 // pred_check
        _
      $region30: #{bidirectional_lstm_forward.6} parent=5 // pred_check_branch
        %227 = sbr.rel (%p224) target = $region32
      $region31: #{bidirectional_lstm_forward.6} parent=5 // pred_region
        %s228 = ssub.s32 %s14, 1
        %p229 = pneg %p47
        %p230 = pneg %p44
        %s231 = smul.u32 %s24, 2
        %s232 = ssub.s32 0, %s231
        %s233 = smul.u32 %s23, %s232
        %s234 = sadd.s32 %s24, %s233
        %s235 = smul.u32 8, %s234
        %p236 = scmp.lt.s32.totalorder %s23, 1
        %s237 = scalar_select %p236, %s23, 1
        %p238 = scmp.lt.s32.totalorder %s235, 7
        %s239 = scalar_select %p238, %s235, 7
        %s240 = smul.addr %s237, 8
        %s241 = sadd.s32 %s239, %s240
        %s242 = smul.addr %s241, 2
        %s243 = scalar_lea.vmem %s1, %s242
        %p244 = pneg %p83
        %p245 = pneg %p80
        %p246 = scmp.lt.s32.totalorder %s23, 1
        %s247 = scalar_select %p246, %s23, 1
        %s248 = smul.addr %s247, 4
        %s249 = smul.addr %s248, 4
        %s250 = scalar_lea.vmem %s2, %s249
        %p251 = pneg %p109
        %p252 = pneg %p106
        %p253 = pneg %p145
        %p254 = pneg %p142
        %s255 = smul.u32 %s24, 2
        %s256 = ssub.s32 0, %s255
        %s257 = smul.u32 %s23, %s256
        %s258 = sadd.s32 %s24, %s257
        %s259 = smul.u32 8, %s258
        %p260 = scmp.lt.s32.totalorder %s23, 1
        %s261 = scalar_select %p260, %s23, 1
        %p262 = scmp.lt.s32.totalorder %s259, 7
        %s263 = scalar_select %p262, %s259, 7
        %s264 = smul.addr %s261, 8
        %s265 = sadd.s32 %s263, %s264
        %s266 = scalar_lea.vmem %s3, %s265
        %p267 = pneg %p171
        %p268 = pneg %p168
        %s269 = sand.u32 %s158, 1
        %s270 = scalar_lea.sflag [#allocation5], %s269
        %s271 = sand.u32 %s158, 1
        %s272 = smul.addr %s271, 2
        %s273 = scalar_lea.vmem [#allocation4], %s272
        %s274 = smul.u32 %s24, 2
        %s275 = ssub.s32 0, %s274
        %s276 = smul.u32 %s23, %s275
        %s277 = sadd.s32 %s24, %s276
        %s278 = smul.u32 8, %s277
        %p279 = scmp.lt.s32.totalorder %s23, 1
        %s280 = scalar_select %p279, %s23, 1
        %p281 = scmp.lt.s32.totalorder %s278, 7
        %s282 = scalar_select %p281, %s278, 7
        %s283 = smul.addr %s280, 8
        %s284 = sadd.s32 %s282, %s283
        %s285 = smul.addr %s284, 2
        %s286 = scalar_lea.vmem %s1, %s285
        %s287 = smul.u32 %s24, 2
        %s288 = ssub.s32 0, %s287
        %s289 = smul.u32 %s23, %s288
        %s290 = sadd.s32 %s24, %s289
        %s291 = smul.u32 8, %s290
        %p292 = scmp.lt.s32.totalorder %s23, 1
        %s293 = scalar_select %p292, %s23, 1
        %s294 = smul.addr %s293, 4
        %s295 = smul.addr %s294, 4
        %s296 = scalar_lea.vmem %s2, %s295
        %s297 = smul.u32 %s24, 2
        %s298 = ssub.s32 0, %s297
        %s299 = smul.u32 %s23, %s298
        %s300 = sadd.s32 %s24, %s299
        %s301 = smul.u32 8, %s300
        %p302 = scmp.lt.s32.totalorder %s23, 1
        %s303 = scalar_select %p302, %s23, 1
        %p304 = scmp.lt.s32.totalorder %s301, 7
        %s305 = scalar_select %p304, %s301, 7
        %s306 = smul.addr %s303, 8
        %s307 = sadd.s32 %s305, %s306
        %s308 = scalar_lea.vmem %s3, %s307
        %s309 = smul.u32 %s24, 2
        %s310 = ssub.s32 0, %s309
        %s311 = smul.u32 %s23, %s310
        %s312 = sadd.s32 %s24, %s311
        %s313 = smul.u32 8, %s312
        %p315 = scmp.eq.s32.totalorder %s24, 0
        // Predicated region
        $region33: #{bidirectional_lstm_forward.6} parent=31 // pred_check
          %p316 = pneg %p315
        $region34: #{bidirectional_lstm_forward.6} parent=31 // pred_check_branch
          %318 = sbr.rel (%p316) target = $region36
        $region35: #{bidirectional_lstm_forward.6} parent=31 // pred_region
          %vm319 = vcmask 254976
          %320 = vst.msk [vmem:[#allocation2] sm:$0x3] %vm319, 0.0
          %321 = vst.msk [vmem:[#allocation3] sm:$0x3] %vm319, 0.0
        $region36: #{bidirectional_lstm_forward.6} parent=31 // pred_fallthru
          _
        %v322 = vld [vmem:[%s0] sm:$0x3]
        %v323 = vld [vmem:[%s296] sm:$0xf]
        %v324 = vld [vmem:[%s296 + $0x4] sm:$0xf]
        %v325 = vld [vmem:[%s296 + $0x8] sm:$0xf]
        %v326 = vld [vmem:[%s296 + $0xc] sm:$0xf]
        %s327 = smul.u32 %s24, 2
        %s328 = ssub.s32 0, %s327
        %s329 = smul.u32 %s23, %s328
        %s330 = sadd.s32 %s24, %s329
        %s331 = smul.u32 %s330, 8
        %s332 = smul.u32 %s23, 7
        %s333 = smul.u32 %s332, 2
        %s334 = scalar_lea.vmem %s286, %s333
        %v335 = vld [vmem:[%s334] sm:$0x3]
        %v336 = vld [vmem:[#allocation2] sm:$0x3]
        %v337 = vld [vmem:[#allocation3] sm:$0x3]
        %v338 = vpack.c.bf16 %v336, %v336
        %v343 = vunpack.c.l.b16 %v323
        %v344 = vunpack.c.l.b16 %v324
        %v345 = vunpack.c.l.b16 %v325
        %v346 = vunpack.c.l.b16 %v326
        %v347 = vpack.c.b16 %v344, %v343
        %v348 = vpack.c.b16 %v346, %v345
        %vm351 = vcmask 261120
        %v353 = vsel %vm351, %v338, 0
        %355 = vmatprep.subr.bf16.mxu0 0
        %356 = vmatpush1.bf16.msra.mxu0 %v347
        %357 = vmatprep.subr.bf16.mxu0 0
        %358 = vmatpush1.bf16.msra.mxu0 %v348
        %359 = vmatprep.subr.bf16.mxu0 0
        %360 = vmatpush1.bf16.msra.mxu0 0
        %361 = vmatprep.subr.bf16.mxu0 0
        %362 = vmatpush1.bf16.msra.mxu0 0
        %363 = vmatprep.subr.bf16.mxu0 0
        %364 = vmatpush1.bf16.msra.mxu0 0
        %365 = vmatprep.subr.bf16.mxu0 0
        %366 = vmatpush1.bf16.msra.mxu0 0
        %367 = vmatprep.subr.bf16.mxu0 0
        %368 = vmatpush1.bf16.msra.mxu0 0
        %369 = vmatprep.subr.bf16.mxu0 0
        %370 = vmatpush1.bf16.msra.mxu0 0
        %371 = vmatprep.subr.bf16.mxu0 0
        %372 = vmatpush1.bf16.msra.mxu0 0
        %373 = vmatprep.subr.bf16.mxu0 0
        %374 = vmatpush1.bf16.msra.mxu0 0
        %375 = vmatprep.subr.bf16.mxu0 0
        %376 = vmatpush1.bf16.msra.mxu0 0
        %377 = vmatprep.subr.bf16.mxu0 0
        %378 = vmatpush1.bf16.msra.mxu0 0
        %379 = vmatprep.subr.bf16.mxu0 0
        %380 = vmatpush1.bf16.msra.mxu0 0
        %381 = vmatprep.subr.bf16.mxu0 0
        %382 = vmatpush1.bf16.msra.mxu0 0
        %383 = vmatprep.subr.bf16.mxu0 0
        %384 = vmatpush1.bf16.msra.mxu0 0
        %385 = vmatprep.subr.bf16.mxu0 0
        %386 = vmatpush1.bf16.msra.mxu0 0
        %387 = vmatprep.mubr.bf16.mxu0 0
        %388 = vmatmul.mubr.bf16.gmra.mrb[0].mxu0 %v353
        %v389 = vpop.f32.mrb[0].mxu0
        %v390 = vadd.f32 0.0, %v389
        %v391 = vpop.f32.mrb[0].mxu0
        %v392 = vpop.f32.mrb[0].mxu0
        %v393 = vpop.f32.mrb[0].mxu0
        %394 = vdwg.mxu0
        %v395 = vadd.f32 %v335, %v390
        %v396 = vxor.u32 %v395, 2147483648
        %v397 = vmul.f32 %v396, 1.442695
        %v398 = vpow.pop %v397
        %v399 = vadd.f32 %v398, 1.0
        %v400 = vrcp.pop %v399
        %v401 = vmul.f32 1.0, %v400
        %v402 = vtanh.pop %v395
        %404 = vrot.lane.b32.xlu0 %v337, 32
        %v405 = vpop.permute.xlu0 %404
        %v407 = vmul.f32 %v401, %v405
        %409 = vrot.lane.b32.xlu0 %v402, 64
        %v410 = vpop.permute.xlu0 %409
        %v412 = vmul.f32 %v401, %v410
        %414 = vrot.lane.b32.xlu0 %v412, 32
        %v415 = vpop.permute.xlu0 %414
        %v417 = vadd.f32 %v407, %v415
        %v418 = vtanh.pop %v417
        %420 = vrot.lane.b32.xlu0 %v418, 64
        %v421 = vpop.permute.xlu0 %420
        %v423 = vmul.f32 %v401, %v421
        %s424 = sadd.s32 %s331, %s332
        %v425 = vstv %s424
        %vm426 = vcmp.lt.s32.totalorder %v425, %v322
        %v427 = vsel %vm426, 1, 0
        %428 = vset.pattern.permute.xlu0 0
        %429 = vperm.xlu0 %428, %v427
        %v430 = vpop.permute.xlu0 %429
        %vm431 = vcmp.eq.s32.totalorder %v430, 1
        %433 = vrot.lane.b32.xlu0 %v336, 96
        %v434 = vpop.permute.xlu0 %433
        %v436 = vsel %vm431, %v423, %v434
        %438 = vrot.lane.b32.xlu0 %v436, 32
        %v439 = vpop.permute.xlu0 %438
        %vm441 = vcmask 254976
        %442 = vst.msk [vmem:[#allocation2] sm:$0x3] %vm441, %v439
        %v443 = vsel %vm431, %v417, %v405
        %445 = vrot.lane.b32.xlu0 %v443, 96
        %v446 = vpop.permute.xlu0 %445
        %448 = vst.msk [vmem:[#allocation3] sm:$0x3] %vm441, %v446
        %v449 = vsel %vm431, %v423, 0.0
        %v450 = vpack.c.bf16 %v449, %v449
        %v453 = vunpack.c.l.s4 1966171168
        %v454 = vunpack.c.0.s8 %v453
        %v455 = vlaneseq
        %v456 = vshrl.u32 %v455, 7
        %v457 = vsub.s32 %v454, %v456
        %v458 = vrot.slane %v450, %v457
        %v460 = vunpack.c.l.s4 1966171168
        %v461 = vunpack.c.0.s8 %v460
        %v462 = vlaneseq
        %v463 = vshrl.u32 %v462, 7
        %v464 = vsub.s32 %v461, %v463
        %v465 = vrot.slane %v458, %v464
        %466 = vrot.lane.b32.xlu0 %v465, 32
        %v467 = vpop.permute.xlu0 %466
        %s469 = scalar_lea.vmem %s308, %s332
        %vm470 = vcmask 253952
        %471 = vst.msk [vmem:[%s469] sm:$0x1] %vm470, %v467
        %s472 = smul.u32 %s23, 5
        %s473 = sadd.s32 %s472, 1
        %s474 = smul.u32 %s473, 2
        %s475 = scalar_lea.vmem %s286, %s474
        %v476 = vld [vmem:[%s475] sm:$0x3]
        %v477 = vld [vmem:[#allocation2] sm:$0x3]
        %v478 = vld [vmem:[#allocation3] sm:$0x3]
        %v479 = vpack.c.bf16 %v477, %v477
        %v481 = vsel %vm351, %v479, 0
        %483 = vmatprep.subr.bf16.mxu0 0
        %484 = vmatpush1.bf16.msra.mxu0 %v347
        %485 = vmatprep.subr.bf16.mxu0 0
        %486 = vmatpush1.bf16.msra.mxu0 %v348
        %487 = vmatprep.subr.bf16.mxu0 0
        %488 = vmatpush1.bf16.msra.mxu0 0
        %489 = vmatprep.subr.bf16.mxu0 0
        %490 = vmatpush1.bf16.msra.mxu0 0
        %491 = vmatprep.subr.bf16.mxu0 0
        %492 = vmatpush1.bf16.msra.mxu0 0
        %493 = vmatprep.subr.bf16.mxu0 0
        %494 = vmatpush1.bf16.msra.mxu0 0
        %495 = vmatprep.subr.bf16.mxu0 0
        %496 = vmatpush1.bf16.msra.mxu0 0
        %497 = vmatprep.subr.bf16.mxu0 0
        %498 = vmatpush1.bf16.msra.mxu0 0
        %499 = vmatprep.subr.bf16.mxu0 0
        %500 = vmatpush1.bf16.msra.mxu0 0
        %501 = vmatprep.subr.bf16.mxu0 0
        %502 = vmatpush1.bf16.msra.mxu0 0
        %503 = vmatprep.subr.bf16.mxu0 0
        %504 = vmatpush1.bf16.msra.mxu0 0
        %505 = vmatprep.subr.bf16.mxu0 0
        %506 = vmatpush1.bf16.msra.mxu0 0
        %507 = vmatprep.subr.bf16.mxu0 0
        %508 = vmatpush1.bf16.msra.mxu0 0
        %509 = vmatprep.subr.bf16.mxu0 0
        %510 = vmatpush1.bf16.msra.mxu0 0
        %511 = vmatprep.subr.bf16.mxu0 0
        %512 = vmatpush1.bf16.msra.mxu0 0
        %513 = vmatprep.subr.bf16.mxu0 0
        %514 = vmatpush1.bf16.msra.mxu0 0
        %515 = vmatprep.mubr.bf16.mxu0 0
        %516 = vmatmul.mubr.bf16.gmra.mrb[0].mxu0 %v481
        %v517 = vpop.f32.mrb[0].mxu0
        %v518 = vadd.f32 0.0, %v517
        %v519 = vpop.f32.mrb[0].mxu0
        %v520 = vpop.f32.mrb[0].mxu0
        %v521 = vpop.f32.mrb[0].mxu0
        %522 = vdwg.mxu0
        %v523 = vadd.f32 %v476, %v518
        %v524 = vxor.u32 %v523, 2147483648
        %v525 = vmul.f32 %v524, 1.442695
        %v526 = vpow.pop %v525
        %v527 = vadd.f32 %v526, 1.0
        %v528 = vrcp.pop %v527
        %v529 = vmul.f32 1.0, %v528
        %v530 = vtanh.pop %v523
        %532 = vrot.lane.b32.xlu0 %v478, 32
        %v533 = vpop.permute.xlu0 %532
        %v535 = vmul.f32 %v529, %v533
        %537 = vrot.lane.b32.xlu0 %v530, 64
        %v538 = vpop.permute.xlu0 %537
        %v540 = vmul.f32 %v529, %v538
        %542 = vrot.lane.b32.xlu0 %v540, 32
        %v543 = vpop.permute.xlu0 %542
        %v545 = vadd.f32 %v535, %v543
        %v546 = vtanh.pop %v545
        %548 = vrot.lane.b32.xlu0 %v546, 64
        %v549 = vpop.permute.xlu0 %548
        %v551 = vmul.f32 %v529, %v549
        %s552 = sadd.s32 %s331, %s473
        %v553 = vstv %s552
        %vm554 = vcmp.lt.s32.totalorder %v553, %v322
        %v555 = vsel %vm554, 1, 0
        %556 = vset.pattern.permute.xlu0 0
        %557 = vperm.xlu0 %556, %v555
        %v558 = vpop.permute.xlu0 %557
        %vm559 = vcmp.eq.s32.totalorder %v558, 1
        %561 = vrot.lane.b32.xlu0 %v477, 96
        %v562 = vpop.permute.xlu0 %561
        %v564 = vsel %vm559, %v551, %v562
        %566 = vrot.lane.b32.xlu0 %v564, 32
        %v567 = vpop.permute.xlu0 %566
        %569 = vst.msk [vmem:[#allocation2] sm:$0x3] %vm441, %v567
        %v570 = vsel %vm559, %v545, %v533
        %572 = vrot.lane.b32.xlu0 %v570, 96
        %v573 = vpop.permute.xlu0 %572
        %575 = vst.msk [vmem:[#allocation3] sm:$0x3] %vm441, %v573
        %v576 = vsel %vm559, %v551, 0.0
        %v577 = vpack.c.bf16 %v576, %v576
        %v580 = vunpack.c.l.s4 1966171168
        %v581 = vunpack.c.0.s8 %v580
        %v582 = vlaneseq
        %v583 = vshrl.u32 %v582, 7
        %v584 = vsub.s32 %v581, %v583
        %v585 = vrot.slane %v577, %v584
        %v587 = vunpack.c.l.s4 1966171168
        %v588 = vunpack.c.0.s8 %v587
        %v589 = vlaneseq
        %v590 = vshrl.u32 %v589, 7
        %v591 = vsub.s32 %v588, %v590
        %v592 = vrot.slane %v585, %v591
        %593 = vrot.lane.b32.xlu0 %v592, 32
        %v594 = vpop.permute.xlu0 %593
        %s596 = scalar_lea.vmem %s308, %s473
        %597 = vst.msk [vmem:[%s596] sm:$0x1] %vm470, %v594
        %s598 = smul.u32 %s23, 3
        %s599 = sadd.s32 %s598, 2
        %s600 = smul.u32 %s599, 2
        %s601 = scalar_lea.vmem %s286, %s600
        %v602 = vld [vmem:[%s601] sm:$0x3]
        %v603 = vld [vmem:[#allocation2] sm:$0x3]
        %v604 = vld [vmem:[#allocation3] sm:$0x3]
        %v605 = vpack.c.bf16 %v603, %v603
        %v607 = vsel %vm351, %v605, 0
        %609 = vmatprep.subr.bf16.mxu0 0
        %610 = vmatpush1.bf16.msra.mxu0 %v347
        %611 = vmatprep.subr.bf16.mxu0 0
        %612 = vmatpush1.bf16.msra.mxu0 %v348
        %613 = vmatprep.subr.bf16.mxu0 0
        %614 = vmatpush1.bf16.msra.mxu0 0
        %615 = vmatprep.subr.bf16.mxu0 0
        %616 = vmatpush1.bf16.msra.mxu0 0
        %617 = vmatprep.subr.bf16.mxu0 0
        %618 = vmatpush1.bf16.msra.mxu0 0
        %619 = vmatprep.subr.bf16.mxu0 0
        %620 = vmatpush1.bf16.msra.mxu0 0
        %621 = vmatprep.subr.bf16.mxu0 0
        %622 = vmatpush1.bf16.msra.mxu0 0
        %623 = vmatprep.subr.bf16.mxu0 0
        %624 = vmatpush1.bf16.msra.mxu0 0
        %625 = vmatprep.subr.bf16.mxu0 0
        %626 = vmatpush1.bf16.msra.mxu0 0
        %627 = vmatprep.subr.bf16.mxu0 0
        %628 = vmatpush1.bf16.msra.mxu0 0
        %629 = vmatprep.subr.bf16.mxu0 0
        %630 = vmatpush1.bf16.msra.mxu0 0
        %631 = vmatprep.subr.bf16.mxu0 0
        %632 = vmatpush1.bf16.msra.mxu0 0
        %633 = vmatprep.subr.bf16.mxu0 0
        %634 = vmatpush1.bf16.msra.mxu0 0
        %635 = vmatprep.subr.bf16.mxu0 0
        %636 = vmatpush1.bf16.msra.mxu0 0
        %637 = vmatprep.subr.bf16.mxu0 0
        %638 = vmatpush1.bf16.msra.mxu0 0
        %639 = vmatprep.subr.bf16.mxu0 0
        %640 = vmatpush1.bf16.msra.mxu0 0
        %641 = vmatprep.mubr.bf16.mxu0 0
        %642 = vmatmul.mubr.bf16.gmra.mrb[0].mxu0 %v607
        %v643 = vpop.f32.mrb[0].mxu0
        %v644 = vadd.f32 0.0, %v643
        %v645 = vpop.f32.mrb[0].mxu0
        %v646 = vpop.f32.mrb[0].mxu0
        %v647 = vpop.f32.mrb[0].mxu0
        %648 = vdwg.mxu0
        %v649 = vadd.f32 %v602, %v644
        %v650 = vxor.u32 %v649, 2147483648
        %v651 = vmul.f32 %v650, 1.442695
        %v652 = vpow.pop %v651
        %v653 = vadd.f32 %v652, 1.0
        %v654 = vrcp.pop %v653
        %v655 = vmul.f32 1.0, %v654
        %v656 = vtanh.pop %v649
        %658 = vrot.lane.b32.xlu0 %v604, 32
        %v659 = vpop.permute.xlu0 %658
        %v661 = vmul.f32 %v655, %v659
        %663 = vrot.lane.b32.xlu0 %v656, 64
        %v664 = vpop.permute.xlu0 %663
        %v666 = vmul.f32 %v655, %v664
        %668 = vrot.lane.b32.xlu0 %v666, 32
        %v669 = vpop.permute.xlu0 %668
        %v671 = vadd.f32 %v661, %v669
        %v672 = vtanh.pop %v671
        %674 = vrot.lane.b32.xlu0 %v672, 64
        %v675 = vpop.permute.xlu0 %674
        %v677 = vmul.f32 %v655, %v675
        %s678 = sadd.s32 %s331, %s599
        %v679 = vstv %s678
        %vm680 = vcmp.lt.s32.totalorder %v679, %v322
        %v681 = vsel %vm680, 1, 0
        %682 = vset.pattern.permute.xlu0 0
        %683 = vperm.xlu0 %682, %v681
        %v684 = vpop.permute.xlu0 %683
        %vm685 = vcmp.eq.s32.totalorder %v684, 1
        %687 = vrot.lane.b32.xlu0 %v603, 96
        %v688 = vpop.permute.xlu0 %687
        %v690 = vsel %vm685, %v677, %v688
        %692 = vrot.lane.b32.xlu0 %v690, 32
        %v693 = vpop.permute.xlu0 %692
        %695 = vst.msk [vmem:[#allocation2] sm:$0x3] %vm441, %v693
        %v696 = vsel %vm685, %v671, %v659
        %698 = vrot.lane.b32.xlu0 %v696, 96
        %v699 = vpop.permute.xlu0 %698
        %701 = vst.msk [vmem:[#allocation3] sm:$0x3] %vm441, %v699
        %v702 = vsel %vm685, %v677, 0.0
        %v703 = vpack.c.bf16 %v702, %v702
        %v706 = vunpack.c.l.s4 1966171168
        %v707 = vunpack.c.0.s8 %v706
        %v708 = vlaneseq
        %v709 = vshrl.u32 %v708, 7
        %v710 = vsub.s32 %v707, %v709
        %v711 = vrot.slane %v703, %v710
        %v713 = vunpack.c.l.s4 1966171168
        %v714 = vunpack.c.0.s8 %v713
        %v715 = vlaneseq
        %v716 = vshrl.u32 %v715, 7
        %v717 = vsub.s32 %v714, %v716
        %v718 = vrot.slane %v711, %v717
        %719 = vrot.lane.b32.xlu0 %v718, 32
        %v720 = vpop.permute.xlu0 %719
        %s722 = scalar_lea.vmem %s308, %s599
        %723 = vst.msk [vmem:[%s722] sm:$0x1] %vm470, %v720
        %s724 = sadd.s32 %s23, 3
        %s725 = smul.u32 %s724, 2
        %s726 = scalar_lea.vmem %s286, %s725
        %v727 = vld [vmem:[%s726] sm:$0x3]
        %v728 = vld [vmem:[#allocation2] sm:$0x3]
        %v729 = vld [vmem:[#allocation3] sm:$0x3]
        %v730 = vpack.c.bf16 %v728, %v728
        %v732 = vsel %vm351, %v730, 0
        %734 = vmatprep.subr.bf16.mxu0 0
        %735 = vmatpush1.bf16.msra.mxu0 %v347
        %736 = vmatprep.subr.bf16.mxu0 0
        %737 = vmatpush1.bf16.msra.mxu0 %v348
        %738 = vmatprep.subr.bf16.mxu0 0
        %739 = vmatpush1.bf16.msra.mxu0 0
        %740 = vmatprep.subr.bf16.mxu0 0
        %741 = vmatpush1.bf16.msra.mxu0 0
        %742 = vmatprep.subr.bf16.mxu0 0
        %743 = vmatpush1.bf16.msra.mxu0 0
        %744 = vmatprep.subr.bf16.mxu0 0
        %745 = vmatpush1.bf16.msra.mxu0 0
        %746 = vmatprep.subr.bf16.mxu0 0
        %747 = vmatpush1.bf16.msra.mxu0 0
        %748 = vmatprep.subr.bf16.mxu0 0
        %749 = vmatpush1.bf16.msra.mxu0 0
        %750 = vmatprep.subr.bf16.mxu0 0
        %751 = vmatpush1.bf16.msra.mxu0 0
        %752 = vmatprep.subr.bf16.mxu0 0
        %753 = vmatpush1.bf16.msra.mxu0 0
        %754 = vmatprep.subr.bf16.mxu0 0
        %755 = vmatpush1.bf16.msra.mxu0 0
        %756 = vmatprep.subr.bf16.mxu0 0
        %757 = vmatpush1.bf16.msra.mxu0 0
        %758 = vmatprep.subr.bf16.mxu0 0
        %759 = vmatpush1.bf16.msra.mxu0 0
        %760 = vmatprep.subr.bf16.mxu0 0
        %761 = vmatpush1.bf16.msra.mxu0 0
        %762 = vmatprep.subr.bf16.mxu0 0
        %763 = vmatpush1.bf16.msra.mxu0 0
        %764 = vmatprep.subr.bf16.mxu0 0
        %765 = vmatpush1.bf16.msra.mxu0 0
        %766 = vmatprep.mubr.bf16.mxu0 0
        %767 = vmatmul.mubr.bf16.gmra.mrb[0].mxu0 %v732
        %v768 = vpop.f32.mrb[0].mxu0
        %v769 = vadd.f32 0.0, %v768
        %v770 = vpop.f32.mrb[0].mxu0
        %v771 = vpop.f32.mrb[0].mxu0
        %v772 = vpop.f32.mrb[0].mxu0
        %773 = vdwg.mxu0
        %v774 = vadd.f32 %v727, %v769
        %v775 = vxor.u32 %v774, 2147483648
        %v776 = vmul.f32 %v775, 1.442695
        %v777 = vpow.pop %v776
        %v778 = vadd.f32 %v777, 1.0
        %v779 = vrcp.pop %v778
        %v780 = vmul.f32 1.0, %v779
        %v781 = vtanh.pop %v774
        %783 = vrot.lane.b32.xlu0 %v729, 32
        %v784 = vpop.permute.xlu0 %783
        %v786 = vmul.f32 %v780, %v784
        %788 = vrot.lane.b32.xlu0 %v781, 64
        %v789 = vpop.permute.xlu0 %788
        %v791 = vmul.f32 %v780, %v789
        %793 = vrot.lane.b32.xlu0 %v791, 32
        %v794 = vpop.permute.xlu0 %793
        %v796 = vadd.f32 %v786, %v794
        %v797 = vtanh.pop %v796
        %799 = vrot.lane.b32.xlu0 %v797, 64
        %v800 = vpop.permute.xlu0 %799
        %v802 = vmul.f32 %v780, %v800
        %s803 = sadd.s32 %s331, %s724
        %v804 = vstv %s803
        %vm805 = vcmp.lt.s32.totalorder %v804, %v322
        %v806 = vsel %vm805, 1, 0
        %807 = vset.pattern.permute.xlu0 0
        %808 = vperm.xlu0 %807, %v806
        %v809 = vpop.permute.xlu0 %808
        %vm810 = vcmp.eq.s32.totalorder %v809, 1
        %812 = vrot.lane.b32.xlu0 %v728, 96
        %v813 = vpop.permute.xlu0 %812
        %v815 = vsel %vm810, %v802, %v813
        %817 = vrot.lane.b32.xlu0 %v815, 32
        %v818 = vpop.permute.xlu0 %817
        %820 = vst.msk [vmem:[#allocation2] sm:$0x3] %vm441, %v818
        %v821 = vsel %vm810, %v796, %v784
        %823 = vrot.lane.b32.xlu0 %v821, 96
        %v824 = vpop.permute.xlu0 %823
        %826 = vst.msk [vmem:[#allocation3] sm:$0x3] %vm441, %v824
        %v827 = vsel %vm810, %v802, 0.0
        %v828 = vpack.c.bf16 %v827, %v827
        %v831 = vunpack.c.l.s4 1966171168
        %v832 = vunpack.c.0.s8 %v831
        %v833 = vlaneseq
        %v834 = vshrl.u32 %v833, 7
        %v835 = vsub.s32 %v832, %v834
        %v836 = vrot.slane %v828, %v835
        %v838 = vunpack.c.l.s4 1966171168
        %v839 = vunpack.c.0.s8 %v838
        %v840 = vlaneseq
        %v841 = vshrl.u32 %v840, 7
        %v842 = vsub.s32 %v839, %v841
        %v843 = vrot.slane %v836, %v842
        %844 = vrot.lane.b32.xlu0 %v843, 32
        %v845 = vpop.permute.xlu0 %844
        %s847 = scalar_lea.vmem %s308, %s724
        %848 = vst.msk [vmem:[%s847] sm:$0x1] %vm470, %v845
        %s849 = ssub.s32 4, %s23
        %s850 = smul.u32 %s849, 2
        %s851 = scalar_lea.vmem %s286, %s850
        %v852 = vld [vmem:[%s851] sm:$0x3]
        %v853 = vld [vmem:[#allocation2] sm:$0x3]
        %v854 = vld [vmem:[#allocation3] sm:$0x3]
        %v855 = vpack.c.bf16 %v853, %v853
        %v857 = vsel %vm351, %v855, 0
        %859 = vmatprep.subr.bf16.mxu0 0
        %860 = vmatpush1.bf16.msra.mxu0 %v347
        %861 = vmatprep.subr.bf16.mxu0 0
        %862 = vmatpush1.bf16.msra.mxu0 %v348
        %863 = vmatprep.subr.bf16.mxu0 0
        %864 = vmatpush1.bf16.msra.mxu0 0
        %865 = vmatprep.subr.bf16.mxu0 0
        %866 = vmatpush1.bf16.msra.mxu0 0
        %867 = vmatprep.subr.bf16.mxu0 0
        %868 = vmatpush1.bf16.msra.mxu0 0
        %869 = vmatprep.subr.bf16.mxu0 0
        %870 = vmatpush1.bf16.msra.mxu0 0
        %871 = vmatprep.subr.bf16.mxu0 0
        %872 = vmatpush1.bf16.msra.mxu0 0
        %873 = vmatprep.subr.bf16.mxu0 0
        %874 = vmatpush1.bf16.msra.mxu0 0
        %875 = vmatprep.subr.bf16.mxu0 0
        %876 = vmatpush1.bf16.msra.mxu0 0
        %877 = vmatprep.subr.bf16.mxu0 0
        %878 = vmatpush1.bf16.msra.mxu0 0
        %879 = vmatprep.subr.bf16.mxu0 0
        %880 = vmatpush1.bf16.msra.mxu0 0
        %881 = vmatprep.subr.bf16.mxu0 0
        %882 = vmatpush1.bf16.msra.mxu0 0
        %883 = vmatprep.subr.bf16.mxu0 0
        %884 = vmatpush1.bf16.msra.mxu0 0
        %885 = vmatprep.subr.bf16.mxu0 0
        %886 = vmatpush1.bf16.msra.mxu0 0
        %887 = vmatprep.subr.bf16.mxu0 0
        %888 = vmatpush1.bf16.msra.mxu0 0
        %889 = vmatprep.subr.bf16.mxu0 0
        %890 = vmatpush1.bf16.msra.mxu0 0
        %891 = vmatprep.mubr.bf16.mxu0 0
        %892 = vmatmul.mubr.bf16.gmra.mrb[0].mxu0 %v857
        %v893 = vpop.f32.mrb[0].mxu0
        %v894 = vadd.f32 0.0, %v893
        %v895 = vpop.f32.mrb[0].mxu0
        %v896 = vpop.f32.mrb[0].mxu0
        %v897 = vpop.f32.mrb[0].mxu0
        %898 = vdwg.mxu0
        %v899 = vadd.f32 %v852, %v894
        %v900 = vxor.u32 %v899, 2147483648
        %v901 = vmul.f32 %v900, 1.442695
        %v902 = vpow.pop %v901
        %v903 = vadd.f32 %v902, 1.0
        %v904 = vrcp.pop %v903
        %v905 = vmul.f32 1.0, %v904
        %v906 = vtanh.pop %v899
        %908 = vrot.lane.b32.xlu0 %v854, 32
        %v909 = vpop.permute.xlu0 %908
        %v911 = vmul.f32 %v905, %v909
        %913 = vrot.lane.b32.xlu0 %v906, 64
        %v914 = vpop.permute.xlu0 %913
        %v916 = vmul.f32 %v905, %v914
        %918 = vrot.lane.b32.xlu0 %v916, 32
        %v919 = vpop.permute.xlu0 %918
        %v921 = vadd.f32 %v911, %v919
        %v922 = vtanh.pop %v921
        %924 = vrot.lane.b32.xlu0 %v922, 64
        %v925 = vpop.permute.xlu0 %924
        %v927 = vmul.f32 %v905, %v925
        %s928 = sadd.s32 %s331, %s849
        %v929 = vstv %s928
        %vm930 = vcmp.lt.s32.totalorder %v929, %v322
        %v931 = vsel %vm930, 1, 0
        %932 = vset.pattern.permute.xlu0 0
        %933 = vperm.xlu0 %932, %v931
        %v934 = vpop.permute.xlu0 %933
        %vm935 = vcmp.eq.s32.totalorder %v934, 1
        %937 = vrot.lane.b32.xlu0 %v853, 96
        %v938 = vpop.permute.xlu0 %937
        %v940 = vsel %vm935, %v927, %v938
        %942 = vrot.lane.b32.xlu0 %v940, 32
        %v943 = vpop.permute.xlu0 %942
        %945 = vst.msk [vmem:[#allocation2] sm:$0x3] %vm441, %v943
        %v946 = vsel %vm935, %v921, %v909
        %948 = vrot.lane.b32.xlu0 %v946, 96
        %v949 = vpop.permute.xlu0 %948
        %951 = vst.msk [vmem:[#allocation3] sm:$0x3] %vm441, %v949
        %v952 = vsel %vm935, %v927, 0.0
        %v953 = vpack.c.bf16 %v952, %v952
        %v956 = vunpack.c.l.s4 1966171168
        %v957 = vunpack.c.0.s8 %v956
        %v958 = vlaneseq
        %v959 = vshrl.u32 %v958, 7
        %v960 = vsub.s32 %v957, %v959
        %v961 = vrot.slane %v953, %v960
        %v963 = vunpack.c.l.s4 1966171168
        %v964 = vunpack.c.0.s8 %v963
        %v965 = vlaneseq
        %v966 = vshrl.u32 %v965, 7
        %v967 = vsub.s32 %v964, %v966
        %v968 = vrot.slane %v961, %v967
        %969 = vrot.lane.b32.xlu0 %v968, 32
        %v970 = vpop.permute.xlu0 %969
        %s972 = scalar_lea.vmem %s308, %s849
        %973 = vst.msk [vmem:[%s972] sm:$0x1] %vm470, %v970
        %s974 = smul.u32 %s23, 4294967293
        %s975 = sadd.s32 %s974, 5
        %s976 = smul.u32 %s975, 2
        %s977 = scalar_lea.vmem %s286, %s976
        %v978 = vld [vmem:[%s977] sm:$0x3]
        %v979 = vld [vmem:[#allocation2] sm:$0x3]
        %v980 = vld [vmem:[#allocation3] sm:$0x3]
        %v981 = vpack.c.bf16 %v979, %v979
        %v983 = vsel %vm351, %v981, 0
        %985 = vmatprep.subr.bf16.mxu0 0
        %986 = vmatpush1.bf16.msra.mxu0 %v347
        %987 = vmatprep.subr.bf16.mxu0 0
        %988 = vmatpush1.bf16.msra.mxu0 %v348
        %989 = vmatprep.subr.bf16.mxu0 0
        %990 = vmatpush1.bf16.msra.mxu0 0
        %991 = vmatprep.subr.bf16.mxu0 0
        %992 = vmatpush1.bf16.msra.mxu0 0
        %993 = vmatprep.subr.bf16.mxu0 0
        %994 = vmatpush1.bf16.msra.mxu0 0
        %995 = vmatprep.subr.bf16.mxu0 0
        %996 = vmatpush1.bf16.msra.mxu0 0
        %997 = vmatprep.subr.bf16.mxu0 0
        %998 = vmatpush1.bf16.msra.mxu0 0
        %999 = vmatprep.subr.bf16.mxu0 0
        %1000 = vmatpush1.bf16.msra.mxu0 0
        %1001 = vmatprep.subr.bf16.mxu0 0
        %1002 = vmatpush1.bf16.msra.mxu0 0
        %1003 = vmatprep.subr.bf16.mxu0 0
        %1004 = vmatpush1.bf16.msra.mxu0 0
        %1005 = vmatprep.subr.bf16.mxu0 0
        %1006 = vmatpush1.bf16.msra.mxu0 0
        %1007 = vmatprep.subr.bf16.mxu0 0
        %1008 = vmatpush1.bf16.msra.mxu0 0
        %1009 = vmatprep.subr.bf16.mxu0 0
        %1010 = vmatpush1.bf16.msra.mxu0 0
        %1011 = vmatprep.subr.bf16.mxu0 0
        %1012 = vmatpush1.bf16.msra.mxu0 0
        %1013 = vmatprep.subr.bf16.mxu0 0
        %1014 = vmatpush1.bf16.msra.mxu0 0
        %1015 = vmatprep.subr.bf16.mxu0 0
        %1016 = vmatpush1.bf16.msra.mxu0 0
        %1017 = vmatprep.mubr.bf16.mxu0 0
        %1018 = vmatmul.mubr.bf16.gmra.mrb[0].mxu0 %v983
        %v1019 = vpop.f32.mrb[0].mxu0
        %v1020 = vadd.f32 0.0, %v1019
        %v1021 = vpop.f32.mrb[0].mxu0
        %v1022 = vpop.f32.mrb[0].mxu0
        %v1023 = vpop.f32.mrb[0].mxu0
        %1024 = vdwg.mxu0
        %v1025 = vadd.f32 %v978, %v1020
        %v1026 = vxor.u32 %v1025, 2147483648
        %v1027 = vmul.f32 %v1026, 1.442695
        %v1028 = vpow.pop %v1027
        %v1029 = vadd.f32 %v1028, 1.0
        %v1030 = vrcp.pop %v1029
        %v1031 = vmul.f32 1.0, %v1030
        %v1032 = vtanh.pop %v1025
        %1034 = vrot.lane.b32.xlu0 %v980, 32
        %v1035 = vpop.permute.xlu0 %1034
        %v1037 = vmul.f32 %v1031, %v1035
        %1039 = vrot.lane.b32.xlu0 %v1032, 64
        %v1040 = vpop.permute.xlu0 %1039
        %v1042 = vmul.f32 %v1031, %v1040
        %1044 = vrot.lane.b32.xlu0 %v1042, 32
        %v1045 = vpop.permute.xlu0 %1044
        %v1047 = vadd.f32 %v1037, %v1045
        %v1048 = vtanh.pop %v1047
        %1050 = vrot.lane.b32.xlu0 %v1048, 64
        %v1051 = vpop.permute.xlu0 %1050
        %v1053 = vmul.f32 %v1031, %v1051
        %s1054 = sadd.s32 %s331, %s975
        %v1055 = vstv %s1054
        %vm1056 = vcmp.lt.s32.totalorder %v1055, %v322
        %v1057 = vsel %vm1056, 1, 0
        %1058 = vset.pattern.permute.xlu0 0
        %1059 = vperm.xlu0 %1058, %v1057
        %v1060 = vpop.permute.xlu0 %1059
        %vm1061 = vcmp.eq.s32.totalorder %v1060, 1
        %1063 = vrot.lane.b32.xlu0 %v979, 96
        %v1064 = vpop.permute.xlu0 %1063
        %v1066 = vsel %vm1061, %v1053, %v1064
        %1068 = vrot.lane.b32.xlu0 %v1066, 32
        %v1069 = vpop.permute.xlu0 %1068
        %1071 = vst.msk [vmem:[#allocation2] sm:$0x3] %vm441, %v1069
        %v1072 = vsel %vm1061, %v1047, %v1035
        %1074 = vrot.lane.b32.xlu0 %v1072, 96
        %v1075 = vpop.permute.xlu0 %1074
        %1077 = vst.msk [vmem:[#allocation3] sm:$0x3] %vm441, %v1075
        %v1078 = vsel %vm1061, %v1053, 0.0
        %v1079 = vpack.c.bf16 %v1078, %v1078
        %v1082 = vunpack.c.l.s4 1966171168
        %v1083 = vunpack.c.0.s8 %v1082
        %v1084 = vlaneseq
        %v1085 = vshrl.u32 %v1084, 7
        %v1086 = vsub.s32 %v1083, %v1085
        %v1087 = vrot.slane %v1079, %v1086
        %v1089 = vunpack.c.l.s4 1966171168
        %v1090 = vunpack.c.0.s8 %v1089
        %v1091 = vlaneseq
        %v1092 = vshrl.u32 %v1091, 7
        %v1093 = vsub.s32 %v1090, %v1092
        %v1094 = vrot.slane %v1087, %v1093
        %1095 = vrot.lane.b32.xlu0 %v1094, 32
        %v1096 = vpop.permute.xlu0 %1095
        %s1098 = scalar_lea.vmem %s308, %s975
        %1099 = vst.msk [vmem:[%s1098] sm:$0x1] %vm470, %v1096
        %s1100 = smul.u32 %s23, 4294967291
        %s1101 = sadd.s32 %s1100, 6
        %s1102 = smul.u32 %s1101, 2
        %s1103 = scalar_lea.vmem %s286, %s1102
        %v1104 = vld [vmem:[%s1103] sm:$0x3]
        %v1105 = vld [vmem:[#allocation2] sm:$0x3]
        %v1106 = vld [vmem:[#allocation3] sm:$0x3]
        %v1107 = vpack.c.bf16 %v1105, %v1105
        %v1109 = vsel %vm351, %v1107, 0
        %1111 = vmatprep.subr.bf16.mxu0 0
        %1112 = vmatpush1.bf16.msra.mxu0 %v347
        %1113 = vmatprep.subr.bf16.mxu0 0
        %1114 = vmatpush1.bf16.msra.mxu0 %v348
        %1115 = vmatprep.subr.bf16.mxu0 0
        %1116 = vmatpush1.bf16.msra.mxu0 0
        %1117 = vmatprep.subr.bf16.mxu0 0
        %1118 = vmatpush1.bf16.msra.mxu0 0
        %1119 = vmatprep.subr.bf16.mxu0 0
        %1120 = vmatpush1.bf16.msra.mxu0 0
        %1121 = vmatprep.subr.bf16.mxu0 0
        %1122 = vmatpush1.bf16.msra.mxu0 0
        %1123 = vmatprep.subr.bf16.mxu0 0
        %1124 = vmatpush1.bf16.msra.mxu0 0
        %1125 = vmatprep.subr.bf16.mxu0 0
        %1126 = vmatpush1.bf16.msra.mxu0 0
        %1127 = vmatprep.subr.bf16.mxu0 0
        %1128 = vmatpush1.bf16.msra.mxu0 0
        %1129 = vmatprep.subr.bf16.mxu0 0
        %1130 = vmatpush1.bf16.msra.mxu0 0
        %1131 = vmatprep.subr.bf16.mxu0 0
        %1132 = vmatpush1.bf16.msra.mxu0 0
        %1133 = vmatprep.subr.bf16.mxu0 0
        %1134 = vmatpush1.bf16.msra.mxu0 0
        %1135 = vmatprep.subr.bf16.mxu0 0
        %1136 = vmatpush1.bf16.msra.mxu0 0
        %1137 = vmatprep.subr.bf16.mxu0 0
        %1138 = vmatpush1.bf16.msra.mxu0 0
        %1139 = vmatprep.subr.bf16.mxu0 0
        %1140 = vmatpush1.bf16.msra.mxu0 0
        %1141 = vmatprep.subr.bf16.mxu0 0
        %1142 = vmatpush1.bf16.msra.mxu0 0
        %1143 = vmatprep.mubr.bf16.mxu0 0
        %1144 = vmatmul.mubr.bf16.gmra.mrb[0].mxu0 %v1109
        %v1145 = vpop.f32.mrb[0].mxu0
        %v1146 = vadd.f32 0.0, %v1145
        %v1147 = vpop.f32.mrb[0].mxu0
        %v1148 = vpop.f32.mrb[0].mxu0
        %v1149 = vpop.f32.mrb[0].mxu0
        %1150 = vdwg.mxu0
        %v1151 = vadd.f32 %v1104, %v1146
        %v1152 = vxor.u32 %v1151, 2147483648
        %v1153 = vmul.f32 %v1152, 1.442695
        %v1154 = vpow.pop %v1153
        %v1155 = vadd.f32 %v1154, 1.0
        %v1156 = vrcp.pop %v1155
        %v1157 = vmul.f32 1.0, %v1156
        %v1158 = vtanh.pop %v1151
        %1160 = vrot.lane.b32.xlu0 %v1106, 32
        %v1161 = vpop.permute.xlu0 %1160
        %v1163 = vmul.f32 %v1157, %v1161
        %1165 = vrot.lane.b32.xlu0 %v1158, 64
        %v1166 = vpop.permute.xlu0 %1165
        %v1168 = vmul.f32 %v1157, %v1166
        %1170 = vrot.lane.b32.xlu0 %v1168, 32
        %v1171 = vpop.permute.xlu0 %1170
        %v1173 = vadd.f32 %v1163, %v1171
        %v1174 = vtanh.pop %v1173
        %1176 = vrot.lane.b32.xlu0 %v1174, 64
        %v1177 = vpop.permute.xlu0 %1176
        %v1179 = vmul.f32 %v1157, %v1177
        %s1180 = sadd.s32 %s331, %s1101
        %v1181 = vstv %s1180
        %vm1182 = vcmp.lt.s32.totalorder %v1181, %v322
        %v1183 = vsel %vm1182, 1, 0
        %1184 = vset.pattern.permute.xlu0 0
        %1185 = vperm.xlu0 %1184, %v1183
        %v1186 = vpop.permute.xlu0 %1185
        %vm1187 = vcmp.eq.s32.totalorder %v1186, 1
        %1189 = vrot.lane.b32.xlu0 %v1105, 96
        %v1190 = vpop.permute.xlu0 %1189
        %v1192 = vsel %vm1187, %v1179, %v1190
        %1194 = vrot.lane.b32.xlu0 %v1192, 32
        %v1195 = vpop.permute.xlu0 %1194
        %1197 = vst.msk [vmem:[#allocation2] sm:$0x3] %vm441, %v1195
        %v1198 = vsel %vm1187, %v1173, %v1161
        %1200 = vrot.lane.b32.xlu0 %v1198, 96
        %v1201 = vpop.permute.xlu0 %1200
        %1203 = vst.msk [vmem:[#allocation3] sm:$0x3] %vm441, %v1201
        %v1204 = vsel %vm1187, %v1179, 0.0
        %v1205 = vpack.c.bf16 %v1204, %v1204
        %v1208 = vunpack.c.l.s4 1966171168
        %v1209 = vunpack.c.0.s8 %v1208
        %v1210 = vlaneseq
        %v1211 = vshrl.u32 %v1210, 7
        %v1212 = vsub.s32 %v1209, %v1211
        %v1213 = vrot.slane %v1205, %v1212
        %v1215 = vunpack.c.l.s4 1966171168
        %v1216 = vunpack.c.0.s8 %v1215
        %v1217 = vlaneseq
        %v1218 = vshrl.u32 %v1217, 7
        %v1219 = vsub.s32 %v1216, %v1218
        %v1220 = vrot.slane %v1213, %v1219
        %1221 = vrot.lane.b32.xlu0 %v1220, 32
        %v1222 = vpop.permute.xlu0 %1221
        %s1224 = scalar_lea.vmem %s308, %s1101
        %1225 = vst.msk [vmem:[%s1224] sm:$0x1] %vm470, %v1222
        %s1226 = smul.u32 %s23, 4294967289
        %s1227 = sadd.s32 %s1226, 7
        %s1228 = smul.u32 %s1227, 2
        %s1229 = scalar_lea.vmem %s286, %s1228
        %v1230 = vld [vmem:[%s1229] sm:$0x3]
        %v1231 = vld [vmem:[#allocation2] sm:$0x3]
        %v1232 = vld [vmem:[#allocation3] sm:$0x3]
        %v1233 = vpack.c.bf16 %v1231, %v1231
        %v1235 = vsel %vm351, %v1233, 0
        %1237 = vmatprep.subr.bf16.mxu0 0
        %1238 = vmatpush1.bf16.msra.mxu0 %v347
        %1239 = vmatprep.subr.bf16.mxu0 0
        %1240 = vmatpush1.bf16.msra.mxu0 %v348
        %1241 = vmatprep.subr.bf16.mxu0 0
        %1242 = vmatpush1.bf16.msra.mxu0 0
        %1243 = vmatprep.subr.bf16.mxu0 0
        %1244 = vmatpush1.bf16.msra.mxu0 0
        %1245 = vmatprep.subr.bf16.mxu0 0
        %1246 = vmatpush1.bf16.msra.mxu0 0
        %1247 = vmatprep.subr.bf16.mxu0 0
        %1248 = vmatpush1.bf16.msra.mxu0 0
        %1249 = vmatprep.subr.bf16.mxu0 0
        %1250 = vmatpush1.bf16.msra.mxu0 0
        %1251 = vmatprep.subr.bf16.mxu0 0
        %1252 = vmatpush1.bf16.msra.mxu0 0
        %1253 = vmatprep.subr.bf16.mxu0 0
        %1254 = vmatpush1.bf16.msra.mxu0 0
        %1255 = vmatprep.subr.bf16.mxu0 0
        %1256 = vmatpush1.bf16.msra.mxu0 0
        %1257 = vmatprep.subr.bf16.mxu0 0
        %1258 = vmatpush1.bf16.msra.mxu0 0
        %1259 = vmatprep.subr.bf16.mxu0 0
        %1260 = vmatpush1.bf16.msra.mxu0 0
        %1261 = vmatprep.subr.bf16.mxu0 0
        %1262 = vmatpush1.bf16.msra.mxu0 0
        %1263 = vmatprep.subr.bf16.mxu0 0
        %1264 = vmatpush1.bf16.msra.mxu0 0
        %1265 = vmatprep.subr.bf16.mxu0 0
        %1266 = vmatpush1.bf16.msra.mxu0 0
        %1267 = vmatprep.subr.bf16.mxu0 0
        %1268 = vmatpush1.bf16.msra.mxu0 0
        %1269 = vmatprep.mubr.bf16.mxu0 0
        %1270 = vmatmul.mubr.bf16.gmra.mrb[0].mxu0 %v1235
        %v1271 = vpop.f32.mrb[0].mxu0
        %v1272 = vadd.f32 0.0, %v1271
        %v1273 = vpop.f32.mrb[0].mxu0
        %v1274 = vpop.f32.mrb[0].mxu0
        %v1275 = vpop.f32.mrb[0].mxu0
        %1276 = vdwg.mxu0
        %v1277 = vadd.f32 %v1230, %v1272
        %v1278 = vxor.u32 %v1277, 2147483648
        %v1279 = vmul.f32 %v1278, 1.442695
        %v1280 = vpow.pop %v1279
        %v1281 = vadd.f32 %v1280, 1.0
        %v1282 = vrcp.pop %v1281
        %v1283 = vmul.f32 1.0, %v1282
        %v1284 = vtanh.pop %v1277
        %1286 = vrot.lane.b32.xlu0 %v1232, 32
        %v1287 = vpop.permute.xlu0 %1286
        %v1289 = vmul.f32 %v1283, %v1287
        %1291 = vrot.lane.b32.xlu0 %v1284, 64
        %v1292 = vpop.permute.xlu0 %1291
        %v1294 = vmul.f32 %v1283, %v1292
        %1296 = vrot.lane.b32.xlu0 %v1294, 32
        %v1297 = vpop.permute.xlu0 %1296
        %v1299 = vadd.f32 %v1289, %v1297
        %v1300 = vtanh.pop %v1299
        %1302 = vrot.lane.b32.xlu0 %v1300, 64
        %v1303 = vpop.permute.xlu0 %1302
        %v1305 = vmul.f32 %v1283, %v1303
        %s1306 = sadd.s32 %s331, %s1227
        %v1307 = vstv %s1306
        %vm1308 = vcmp.lt.s32.totalorder %v1307, %v322
        %v1309 = vsel %vm1308, 1, 0
        %1310 = vset.pattern.permute.xlu0 0
        %1311 = vperm.xlu0 %1310, %v1309
        %v1312 = vpop.permute.xlu0 %1311
        %vm1313 = vcmp.eq.s32.totalorder %v1312, 1
        %1315 = vrot.lane.b32.xlu0 %v1231, 96
        %v1316 = vpop.permute.xlu0 %1315
        %v1318 = vsel %vm1313, %v1305, %v1316
        %1320 = vrot.lane.b32.xlu0 %v1318, 32
        %v1321 = vpop.permute.xlu0 %1320
        %1323 = vst.msk [vmem:[#allocation2] sm:$0x3] %vm441, %v1321
        %v1324 = vsel %vm1313, %v1299, %v1287
        %1326 = vrot.lane.b32.xlu0 %v1324, 96
        %v1327 = vpop.permute.xlu0 %1326
        %1329 = vst.msk [vmem:[#allocation3] sm:$0x3] %vm441, %v1327
        %v1330 = vsel %vm1313, %v1305, 0.0
        %v1331 = vpack.c.bf16 %v1330, %v1330
        %v1334 = vunpack.c.l.s4 1966171168
        %v1335 = vunpack.c.0.s8 %v1334
        %v1336 = vlaneseq
        %v1337 = vshrl.u32 %v1336, 7
        %v1338 = vsub.s32 %v1335, %v1337
        %v1339 = vrot.slane %v1331, %v1338
        %v1341 = vunpack.c.l.s4 1966171168
        %v1342 = vunpack.c.0.s8 %v1341
        %v1343 = vlaneseq
        %v1344 = vshrl.u32 %v1343, 7
        %v1345 = vsub.s32 %v1342, %v1344
        %v1346 = vrot.slane %v1339, %v1345
        %1347 = vrot.lane.b32.xlu0 %v1346, 32
        %v1348 = vpop.permute.xlu0 %1347
        %s1350 = scalar_lea.vmem %s308, %s1227
        %1351 = vst.msk [vmem:[%s1350] sm:$0x1] %vm470, %v1348
        // Predicated region
        $region37: #{bidirectional_lstm_forward.6} parent=31 // pred_check
          %p1352 = pneg %p315
        $region38: #{bidirectional_lstm_forward.6} parent=31 // pred_check_branch
          %1354 = sbr.rel (%p1352) target = $region40
        $region39: #{bidirectional_lstm_forward.6} parent=31 // pred_region
          %v1355 = vld [vmem:[#allocation2] sm:$0x3]
          %1356 = vst.msk [vmem:[%s273] sm:$0x3] %vm441, %v1355
        $region40: #{bidirectional_lstm_forward.6} parent=31 // pred_fallthru
          _
        %s1357 = smul.u32 %s24, 2
        %s1358 = ssub.s32 0, %s1357
        %s1359 = smul.u32 %s23, %s1358
        %s1360 = sadd.s32 %s24, %s1359
        %s1361 = smul.u32 8, %s1360
        %p1362 = scmp.lt.s32.totalorder %s23, 1
        %s1363 = scalar_select %p1362, %s23, 1
        %p1364 = scmp.lt.s32.totalorder %s1361, 7
        %s1365 = scalar_select %p1364, %s1361, 7
        %s1366 = smul.addr %s1363, 8
        %s1367 = sadd.s32 %s1365, %s1366
        %s1368 = scalar_lea.vmem %s3, %s1367
        %s1369 = sand.u32 %s158, 1
        %s1370 = scalar_lea.sflag [#allocation5], %s1369
        %s1371 = sand.u32 %s158, 1
        %s1372 = smul.addr %s1371, 2
        %s1373 = scalar_lea.vmem [#allocation4], %s1372
        // Predicated region
        $region41: #{bidirectional_lstm_forward.6} parent=31 // pred_check
          %p1374 = pneg %p142
        $region42: #{bidirectional_lstm_forward.6} parent=31 // pred_check_branch
          %1376 = sbr.rel (%p1374) target = $region44
        $region43: #{bidirectional_lstm_forward.6} parent=31 // pred_region
          %s1377 = smul.u32 %s24, 2
          %s1378 = ssub.s32 0, %s1377
          %s1379 = smul.u32 %s23, %s1378
          %s1380 = sadd.s32 %s24, %s1379
          %s1381 = smul.u32 8, %s1380
        $region44: #{bidirectional_lstm_forward.6} parent=31 // pred_fallthru
          _
        // Predicated region
        $region45: #{bidirectional_lstm_forward.6} parent=31 // pred_check
          %p1382 = pneg %p168
        $region46: #{bidirectional_lstm_forward.6} parent=31 // pred_check_branch
          %1384 = sbr.rel (%p1382) target = $region48
        $region47: #{bidirectional_lstm_forward.6} parent=31 // pred_region
          %s1386 = ssub.s32 32, 32
          %1387 = vsyncadd %s1370, %s1386
          %s1388 = smul.addr %s23, 32
          %s1389 = scalar_lea.hbm %s4, %s1388
          %s1391 = sshll.u32 %s1373, 4
          %s1392 = int_to_ptr.vmem [resolvable:$true] %s1391
          %1394 = dma.vmem_to_hbm [thread:$0]  %s1392, 32, %s1389, %s1370
        $region48: #{bidirectional_lstm_forward.6} parent=31 // pred_fallthru
          _
      $region32: #{bidirectional_lstm_forward.6} parent=5 // pred_fallthru
        _
      %p1395 = scmp.le.s32.totalorder 2, %s14
      // Predicated region
      $region49: #{bidirectional_lstm_forward.6} parent=5 // pred_check
        %p1396 = pneg %p1395
      $region50: #{bidirectional_lstm_forward.6} parent=5 // pred_check_branch
        %1398 = sbr.rel (%p1396) target = $region52
      $region51: #{bidirectional_lstm_forward.6} parent=5 // pred_region
        %s1399 = ssub.s32 %s14, 2
        // Predicated region
        $region53: #{bidirectional_lstm_forward.6} parent=51 // pred_check
          %p1400 = pneg %p148
        $region54: #{bidirectional_lstm_forward.6} parent=51 // pred_check_branch
          %1402 = sbr.rel (%p1400) target = $region56
        $region55: #{bidirectional_lstm_forward.6} parent=51 // pred_region
          %s1403 = smul.u32 %s26, 2
          %s1404 = ssub.s32 0, %s1403
          %s1405 = smul.u32 %s25, %s1404
          %s1406 = sadd.s32 %s26, %s1405
          %s1407 = smul.u32 8, %s1406
          %p1408 = scmp.lt.s32.totalorder %s25, 1
          %s1409 = scalar_select %p1408, %s25, 1
          %p1410 = scmp.lt.s32.totalorder %s1407, 7
          %s1411 = scalar_select %p1410, %s1407, 7
          %s1412 = smul.addr %s1409, 8
          %s1413 = sadd.s32 %s1411, %s1412
          %s1414 = scalar_lea.vmem %s3, %s1413
        $region56: #{bidirectional_lstm_forward.6} parent=51 // pred_fallthru
          _
        // Predicated region
        $region57: #{bidirectional_lstm_forward.6} parent=51 // pred_check
          %p1415 = pneg %p174
        $region58: #{bidirectional_lstm_forward.6} parent=51 // pred_check_branch
          %1417 = sbr.rel (%p1415) target = $region60
        $region59: #{bidirectional_lstm_forward.6} parent=51 // pred_region
          %s1418 = sand.u32 %s159, 1
          %s1419 = scalar_lea.sflag [#allocation5], %s1418
          %s1420 = sand.u32 %s159, 1
          %s1421 = smul.addr %s1420, 2
          %s1422 = scalar_lea.vmem [#allocation4], %s1421
          %1423 = dma.done %s1419, 32
        $region60: #{bidirectional_lstm_forward.6} parent=51 // pred_fallthru
          _
      $region52: #{bidirectional_lstm_forward.6} parent=5 // pred_fallthru
        _
    $region6: #{bidirectional_lstm_forward.6} parent=1 // loop_footer
      %s18 = sadd.s32 1, %s14
    $region7: #{bidirectional_lstm_forward.6} parent=1 // loop_footer_branch
      %13 = sbr.rel target = $region3
    $region8: #{bidirectional_lstm_forward.6} parent=1 // loop_exit
      _
    %1424 = vsyncpa [#allocation5], 1
    %s1425 = scalar_lea.sflag [#allocation5], 1
    %1426 = vsyncpa %s1425, 1

// kernel: bidirectional_lstm_forward.8
$region0: #{bidirectional_lstm_forward.8}
  #allocation0 [shape = 'u32[]', space=smem, size = 0x4, offset = 0x4, fixed_abs, tag = 'smem constant byte address 0x4 - core index']
  #allocation1 [shape = 'u32[144,128]{1,0:T(1,128)}', space=vmem, size = 0x12000, scoped, tag = 'internal scratch']
  #allocation2 [shape = 'f32[2,32]{1,0:T(2,128)}', space=vmem, size = 0x400, scoped, tag = 'scratch operand']
  #allocation3 [shape = 'f32[2,32]{1,0:T(2,128)}', space=vmem, size = 0x400, scoped, tag = 'scratch operand']
  %s0 = inlined_call_operand.vmem [shape: s32[2,1], index: 0, kind: input, shape index: {}]
  %s1 = inlined_call_operand.vmem [shape: f32[2,8,2,128], index: 1, kind: input, shape index: {}]
  %s2 = inlined_call_operand.vmem [shape: bf16[2,32,128], index: 2, kind: input, shape index: {}]
  %s3 = inlined_call_operand.hbm [shape: bf16[2,8,2,32], index: 3, kind: output, shape index: {0}]
  %s4 = inlined_call_operand.vmem [shape: f32[2,2,32], index: 4, kind: output, shape index: {1}]
  %5 = xla_tuple %s3, %s4
  %s6 = sld [smem:[#allocation0]]
  $region61: #{bidirectional_lstm_forward.8} parent=0
    _
  %s8 = ssub.s32 1, %s6
  %s9 = scalar_select 0, %s8, %s6
  $region1: #{bidirectional_lstm_forward.8} parent=0
    #allocation4 [shape = 'u8[8192]{0}', space=vmem, size = 0x2000, scoped, tag = 'output window, operand 0']
    #allocation5 [shape = 's32[2]{0}', space=sflag, size = 0x8, scoped, tag = 'scoped memory for bidirectional_lstm_forward.8']
    %10 = vsyncpa [#allocation5], 0
    %s11 = scalar_lea.sflag [#allocation5], 1
    %12 = vsyncpa %s11, 0
    loop: start=0, step=1, limit=4
    $region2: #{bidirectional_lstm_forward.8} parent=1 // loop_pre_header
      _
    $region3: #{bidirectional_lstm_forward.8} parent=1 // loop_header
      %s14 = sphi 0, %s18
      %p15 = scmp.ge.s32.totalorder %s14, 4
      %s21 = sphi 0, %s33
      %s22 = sphi 0, %s29
      %s23 = sphi 0, %s21
      %s24 = sphi 0, %s22
      %s25 = sphi 0, %s23
      %s26 = sphi 0, %s24
      %s34 = sphi 0, %s34
      %s36 = sphi 0, %s34
      %s37 = sphi 0, %s36
      %s51 = sphi 0, %s37
      %s67 = sphi 0, %s69
      %s70 = sphi 0, %s67
      %s71 = sphi 0, %s70
      %s87 = sphi 0, %s71
      %s93 = sphi 0, %s95
      %s96 = sphi 0, %s93
      %s97 = sphi 0, %s96
      %s113 = sphi 0, %s97
      %s129 = sphi 0, %s131
      %s132 = sphi 0, %s129
      %s133 = sphi 0, %s132
      %s149 = sphi 0, %s133
      %s155 = sphi 0, %s157
      %s158 = sphi 0, %s155
      %s159 = sphi 0, %s158
      %s175 = sphi 0, %s159
    $region4: #{bidirectional_lstm_forward.8} parent=1 // loop_header_branch
      %17 = sbr.rel (%p15) target = $region8
    $region5: #{bidirectional_lstm_forward.8} parent=1 // loop_body
      %s19 = ssub.s32 %s14, 1
      %s20 = ssub.s32 %s14, 2
      %s27 = sadd.s32 1, %s22
      %p28 = scmp.ge.s32.totalorder %s27, 1
      %s29 = scalar_select %p28, 0, %s27
      %s30 = sadd.s32 1, %s21
      %s31 = scalar_select %p28, %s30, %s21
      %p32 = scmp.ge.s32.totalorder %s31, 2
      %s33 = scalar_select %p32, 0, %s31
      %s35 = sadd.s32 %s34, 1
      %p38 = scmp.eq.s32.totalorder %s14, 1
      %p39 = scmp.ne.s32.totalorder %s34, %s36
      %p40 = scmp.eq.s32.totalorder %s14, 0
      %p41 = por %p39, %p40
      %p42 = scmp.ne.s32.totalorder %s34, %s36
      %p43 = scmp.eq.s32.totalorder %s19, 1
      %p44 = por %p42, %p43
      %p45 = scmp.ne.s32.totalorder %s36, %s37
      %p46 = scmp.eq.s32.totalorder %s19, 0
      %p47 = por %p45, %p46
      %p48 = scmp.ne.s32.totalorder %s36, %s37
      %p49 = scmp.eq.s32.totalorder %s20, 1
      %p50 = por %p48, %p49
      %p52 = scmp.ne.s32.totalorder %s37, %s51
      %p53 = scmp.eq.s32.totalorder %s20, 0
      %p54 = por %p52, %p53
      %s55 = smul.u32 %s22, 2
      %s56 = ssub.s32 0, %s55
      %s57 = smul.u32 %s21, %s56
      %s58 = sadd.s32 %s22, %s57
      %s59 = smul.u32 %s29, 2
      %s60 = ssub.s32 0, %s59
      %s61 = smul.u32 %s33, %s60
      %s62 = sadd.s32 %s29, %s61
      %s63 = ssub.s32 %s21, %s33
      %s64 = ssub.s32 %s58, %s62
      %s65 = sor.u32 %s63, %s64
      %p66 = scmp.eq.s32.totalorder %s65, 0
      %s68 = sadd.s32 %s67, 1
      %s69 = scalar_select %p66, %s67, %s68
      %p72 = pneg %p66
      %p73 = scmp.eq.s32.totalorder %s14, 1
      %p74 = por %p72, %p73
      %p75 = scmp.ne.s32.totalorder %s67, %s70
      %p76 = scmp.eq.s32.totalorder %s14, 0
      %p77 = por %p75, %p76
      %p78 = scmp.ne.s32.totalorder %s67, %s70
      %p79 = scmp.eq.s32.totalorder %s19, 1
      %p80 = por %p78, %p79
      %p81 = scmp.ne.s32.totalorder %s70, %s71
      %p82 = scmp.eq.s32.totalorder %s19, 0
      %p83 = por %p81, %p82
      %p84 = scmp.ne.s32.totalorder %s70, %s71
      %p85 = scmp.eq.s32.totalorder %s20, 1
      %p86 = por %p84, %p85
      %p88 = scmp.ne.s32.totalorder %s71, %s87
      %p89 = scmp.eq.s32.totalorder %s20, 0
      %p90 = por %p88, %p89
      %s91 = ssub.s32 %s21, %s33
      %p92 = scmp.eq.s32.totalorder %s91, 0
      %s94 = sadd.s32 %s93, 1
      %s95 = scalar_select %p92, %s93, %s94
      %p98 = pneg %p92
      %p99 = scmp.eq.s32.totalorder %s14, 1
      %p100 = por %p98, %p99
      %p101 = scmp.ne.s32.totalorder %s93, %s96
      %p102 = scmp.eq.s32.totalorder %s14, 0
      %p103 = por %p101, %p102
      %p104 = scmp.ne.s32.totalorder %s93, %s96
      %p105 = scmp.eq.s32.totalorder %s19, 1
      %p106 = por %p104, %p105
      %p107 = scmp.ne.s32.totalorder %s96, %s97
      %p108 = scmp.eq.s32.totalorder %s19, 0
      %p109 = por %p107, %p108
      %p110 = scmp.ne.s32.totalorder %s96, %s97
      %p111 = scmp.eq.s32.totalorder %s20, 1
      %p112 = por %p110, %p111
      %p114 = scmp.ne.s32.totalorder %s97, %s113
      %p115 = scmp.eq.s32.totalorder %s20, 0
      %p116 = por %p114, %p115
      %s117 = smul.u32 %s22, 2
      %s118 = ssub.s32 0, %s117
      %s119 = smul.u32 %s21, %s118
      %s120 = sadd.s32 %s22, %s119
      %s121 = smul.u32 %s29, 2
      %s122 = ssub.s32 0, %s121
      %s123 = smul.u32 %s33, %s122
      %s124 = sadd.s32 %s29, %s123
      %s125 = ssub.s32 %s21, %s33
      %s126 = ssub.s32 %s120, %s124
      %s127 = sor.u32 %s125, %s126
      %p128 = scmp.eq.s32.totalorder %s127, 0
      %s130 = sadd.s32 %s129, 1
      %s131 = scalar_select %p128, %s129, %s130
      %p134 = pneg %p128
      %p135 = scmp.eq.s32.totalorder %s14, 1
      %p136 = por %p134, %p135
      %p137 = scmp.ne.s32.totalorder %s129, %s132
      %p138 = scmp.eq.s32.totalorder %s14, 0
      %p139 = por %p137, %p138
      %p140 = scmp.ne.s32.totalorder %s129, %s132
      %p141 = scmp.eq.s32.totalorder %s19, 1
      %p142 = por %p140, %p141
      %p143 = scmp.ne.s32.totalorder %s132, %s133
      %p144 = scmp.eq.s32.totalorder %s19, 0
      %p145 = por %p143, %p144
      %p146 = scmp.ne.s32.totalorder %s132, %s133
      %p147 = scmp.eq.s32.totalorder %s20, 1
      %p148 = por %p146, %p147
      %p150 = scmp.ne.s32.totalorder %s133, %s149
      %p151 = scmp.eq.s32.totalorder %s20, 0
      %p152 = por %p150, %p151
      %s153 = ssub.s32 %s21, %s33
      %p154 = scmp.eq.s32.totalorder %s153, 0
      %s156 = sadd.s32 %s155, 1
      %s157 = scalar_select %p154, %s155, %s156
      %p160 = pneg %p154
      %p161 = scmp.eq.s32.totalorder %s14, 1
      %p162 = por %p160, %p161
      %p163 = scmp.ne.s32.totalorder %s155, %s158
      %p164 = scmp.eq.s32.totalorder %s14, 0
      %p165 = por %p163, %p164
      %p166 = scmp.ne.s32.totalorder %s155, %s158
      %p167 = scmp.eq.s32.totalorder %s19, 1
      %p168 = por %p166, %p167
      %p169 = scmp.ne.s32.totalorder %s158, %s159
      %p170 = scmp.eq.s32.totalorder %s19, 0
      %p171 = por %p169, %p170
      %p172 = scmp.ne.s32.totalorder %s158, %s159
      %p173 = scmp.eq.s32.totalorder %s20, 1
      %p174 = por %p172, %p173
      %p176 = scmp.ne.s32.totalorder %s159, %s175
      %p177 = scmp.eq.s32.totalorder %s20, 0
      %p178 = por %p176, %p177
      %p179 = scmp.le.s32.totalorder 1, %s14
      %p180 = scmp.lt.s32.totalorder %s14, 3
      %p181 = pnand %p179, %p180
      %p182 = pneg %p181
      // Predicated region
      $region9: #{bidirectional_lstm_forward.8} parent=5 // pred_check
        _
      $region10: #{bidirectional_lstm_forward.8} parent=5 // pred_check_branch
        %184 = sbr.rel (%p181) target = $region12
      $region11: #{bidirectional_lstm_forward.8} parent=5 // pred_region
        %s185 = ssub.s32 %s14, 1
        // Predicated region
        $region13: #{bidirectional_lstm_forward.8} parent=11 // pred_check
          %p186 = pneg %p47
        $region14: #{bidirectional_lstm_forward.8} parent=11 // pred_check_branch
          %188 = sbr.rel (%p186) target = $region16
        $region15: #{bidirectional_lstm_forward.8} parent=11 // pred_region
          _
        $region16: #{bidirectional_lstm_forward.8} parent=11 // pred_fallthru
          _
      $region12: #{bidirectional_lstm_forward.8} parent=5 // pred_fallthru
        _
      %p189 = scmp.lt.s32.totalorder %s14, 2
      // Predicated region
      $region17: #{bidirectional_lstm_forward.8} parent=5 // pred_check
        %p190 = pneg %p189
      $region18: #{bidirectional_lstm_forward.8} parent=5 // pred_check_branch
        %192 = sbr.rel (%p190) target = $region20
      $region19: #{bidirectional_lstm_forward.8} parent=5 // pred_region
        // Predicated region
        $region21: #{bidirectional_lstm_forward.8} parent=19 // pred_check
          %p193 = pneg %p77
        $region22: #{bidirectional_lstm_forward.8} parent=19 // pred_check_branch
          %195 = sbr.rel (%p193) target = $region24
        $region23: #{bidirectional_lstm_forward.8} parent=19 // pred_region
          %s196 = smul.u32 %s22, 2
          %s197 = ssub.s32 0, %s196
          %s198 = smul.u32 %s21, %s197
          %s199 = sadd.s32 %s22, %s198
          %s200 = smul.u32 8, %s199
          %p201 = scmp.lt.s32.totalorder %s21, 1
          %s202 = scalar_select %p201, %s21, 1
          %p203 = scmp.lt.s32.totalorder %s200, 7
          %s204 = scalar_select %p203, %s200, 7
          %s205 = smul.addr %s202, 8
          %s206 = sadd.s32 %s204, %s205
          %s207 = smul.addr %s206, 2
          %s208 = scalar_lea.vmem %s1, %s207
          %s209 = smul.u32 %s22, 2
          %s210 = ssub.s32 0, %s209
          %s211 = smul.u32 %s21, %s210
          %s212 = sadd.s32 %s22, %s211
          %s213 = smul.u32 8, %s212
        $region24: #{bidirectional_lstm_forward.8} parent=19 // pred_fallthru
          _
        // Predicated region
        $region25: #{bidirectional_lstm_forward.8} parent=19 // pred_check
          %p214 = pneg %p103
        $region26: #{bidirectional_lstm_forward.8} parent=19 // pred_check_branch
          %216 = sbr.rel (%p214) target = $region28
        $region27: #{bidirectional_lstm_forward.8} parent=19 // pred_region
          %p217 = scmp.lt.s32.totalorder %s21, 1
          %s218 = scalar_select %p217, %s21, 1
          %s219 = smul.addr %s218, 4
          %s220 = smul.addr %s219, 4
          %s221 = scalar_lea.vmem %s2, %s220
        $region28: #{bidirectional_lstm_forward.8} parent=19 // pred_fallthru
          _
      $region20: #{bidirectional_lstm_forward.8} parent=5 // pred_fallthru
        _
      %p222 = scmp.le.s32.totalorder 1, %s14
      %p223 = scmp.lt.s32.totalorder %s14, 3
      %p224 = pnand %p222, %p223
      %p225 = pneg %p224
      // Predicated region
      $region29: #{bidirectional_lstm_forward.8} parent=5 // pred_check
        _
      $region30: #{bidirectional_lstm_forward.8} parent=5 // pred_check_branch
        %227 = sbr.rel (%p224) target = $region32
      $region31: #{bidirectional_lstm_forward.8} parent=5 // pred_region
        %s228 = ssub.s32 %s14, 1
        %p229 = pneg %p47
        %p230 = pneg %p44
        %s231 = smul.u32 %s24, 2
        %s232 = ssub.s32 0, %s231
        %s233 = smul.u32 %s23, %s232
        %s234 = sadd.s32 %s24, %s233
        %s235 = smul.u32 8, %s234
        %p236 = scmp.lt.s32.totalorder %s23, 1
        %s237 = scalar_select %p236, %s23, 1
        %p238 = scmp.lt.s32.totalorder %s235, 7
        %s239 = scalar_select %p238, %s235, 7
        %s240 = smul.addr %s237, 8
        %s241 = sadd.s32 %s239, %s240
        %s242 = smul.addr %s241, 2
        %s243 = scalar_lea.vmem %s1, %s242
        %p244 = pneg %p83
        %p245 = pneg %p80
        %p246 = scmp.lt.s32.totalorder %s23, 1
        %s247 = scalar_select %p246, %s23, 1
        %s248 = smul.addr %s247, 4
        %s249 = smul.addr %s248, 4
        %s250 = scalar_lea.vmem %s2, %s249
        %p251 = pneg %p109
        %p252 = pneg %p106
        %p253 = pneg %p145
        %p254 = pneg %p142
        %s255 = sand.u32 %s132, 1
        %s256 = scalar_lea.sflag [#allocation5], %s255
        %s257 = sand.u32 %s132, 1
        %s258 = smul.addr %s257, 8
        %s259 = scalar_lea.vmem [#allocation4], %s258
        %p260 = pneg %p171
        %p261 = pneg %p168
        %p262 = scmp.lt.s32.totalorder %s23, 1
        %s263 = scalar_select %p262, %s23, 1
        %s264 = smul.addr %s263, 2
        %s265 = scalar_lea.vmem %s4, %s264
        %s266 = smul.u32 %s24, 2
        %s267 = ssub.s32 0, %s266
        %s268 = smul.u32 %s23, %s267
        %s269 = sadd.s32 %s24, %s268
        %s270 = smul.u32 8, %s269
        %p271 = scmp.lt.s32.totalorder %s23, 1
        %s272 = scalar_select %p271, %s23, 1
        %p273 = scmp.lt.s32.totalorder %s270, 7
        %s274 = scalar_select %p273, %s270, 7
        %s275 = smul.addr %s272, 8
        %s276 = sadd.s32 %s274, %s275
        %s277 = smul.addr %s276, 2
        %s278 = scalar_lea.vmem %s1, %s277
        %s279 = smul.u32 %s24, 2
        %s280 = ssub.s32 0, %s279
        %s281 = smul.u32 %s23, %s280
        %s282 = sadd.s32 %s24, %s281
        %s283 = smul.u32 8, %s282
        %p284 = scmp.lt.s32.totalorder %s23, 1
        %s285 = scalar_select %p284, %s23, 1
        %s286 = smul.addr %s285, 4
        %s287 = smul.addr %s286, 4
        %s288 = scalar_lea.vmem %s2, %s287
        %s289 = smul.u32 %s24, 2
        %s290 = ssub.s32 0, %s289
        %s291 = smul.u32 %s23, %s290
        %s292 = sadd.s32 %s24, %s291
        %s293 = smul.u32 8, %s292
        %p294 = scmp.lt.s32.totalorder %s23, 1
        %s295 = scalar_select %p294, %s23, 1
        %s296 = smul.addr %s295, 2
        %s297 = scalar_lea.vmem %s4, %s296
        %p299 = scmp.eq.s32.totalorder %s24, 0
        // Predicated region
        $region33: #{bidirectional_lstm_forward.8} parent=31 // pred_check
          %p300 = pneg %p299
        $region34: #{bidirectional_lstm_forward.8} parent=31 // pred_check_branch
          %302 = sbr.rel (%p300) target = $region36
        $region35: #{bidirectional_lstm_forward.8} parent=31 // pred_region
          %vm303 = vcmask 254976
          %304 = vst.msk [vmem:[#allocation2] sm:$0x3] %vm303, 0.0
          %305 = vst.msk [vmem:[#allocation3] sm:$0x3] %vm303, 0.0
        $region36: #{bidirectional_lstm_forward.8} parent=31 // pred_fallthru
          _
        %v306 = vld [vmem:[%s0] sm:$0x3]
        %v307 = vld [vmem:[%s288] sm:$0xf]
        %v308 = vld [vmem:[%s288 + $0x4] sm:$0xf]
        %v309 = vld [vmem:[%s288 + $0x8] sm:$0xf]
        %v310 = vld [vmem:[%s288 + $0xc] sm:$0xf]
        %s311 = smul.u32 %s24, 2
        %s312 = ssub.s32 0, %s311
        %s313 = smul.u32 %s23, %s312
        %s314 = sadd.s32 %s24, %s313
        %s315 = smul.u32 %s314, 8
        %s316 = smul.u32 %s23, 7
        %s317 = smul.u32 %s316, 2
        %s318 = scalar_lea.vmem %s278, %s317
        %v319 = vld [vmem:[%s318] sm:$0x3]
        %v320 = vld [vmem:[#allocation2] sm:$0x3]
        %v321 = vld [vmem:[#allocation3] sm:$0x3]
        %v322 = vpack.c.bf16 %v320, %v320
        %v327 = vunpack.c.l.b16 %v307
        %v328 = vunpack.c.l.b16 %v308
        %v329 = vunpack.c.l.b16 %v309
        %v330 = vunpack.c.l.b16 %v310
        %v331 = vpack.c.b16 %v328, %v327
        %v332 = vpack.c.b16 %v330, %v329
        %vm335 = vcmask 261120
        %v337 = vsel %vm335, %v322, 0
        %339 = vmatprep.subr.bf16.mxu0 0
        %340 = vmatpush1.bf16.msra.mxu0 %v331
        %341 = vmatprep.subr.bf16.mxu0 0
        %342 = vmatpush1.bf16.msra.mxu0 %v332
        %343 = vmatprep.subr.bf16.mxu0 0
        %344 = vmatpush1.bf16.msra.mxu0 0
        %345 = vmatprep.subr.bf16.mxu0 0
        %346 = vmatpush1.bf16.msra.mxu0 0
        %347 = vmatprep.subr.bf16.mxu0 0
        %348 = vmatpush1.bf16.msra.mxu0 0
        %349 = vmatprep.subr.bf16.mxu0 0
        %350 = vmatpush1.bf16.msra.mxu0 0
        %351 = vmatprep.subr.bf16.mxu0 0
        %352 = vmatpush1.bf16.msra.mxu0 0
        %353 = vmatprep.subr.bf16.mxu0 0
        %354 = vmatpush1.bf16.msra.mxu0 0
        %355 = vmatprep.subr.bf16.mxu0 0
        %356 = vmatpush1.bf16.msra.mxu0 0
        %357 = vmatprep.subr.bf16.mxu0 0
        %358 = vmatpush1.bf16.msra.mxu0 0
        %359 = vmatprep.subr.bf16.mxu0 0
        %360 = vmatpush1.bf16.msra.mxu0 0
        %361 = vmatprep.subr.bf16.mxu0 0
        %362 = vmatpush1.bf16.msra.mxu0 0
        %363 = vmatprep.subr.bf16.mxu0 0
        %364 = vmatpush1.bf16.msra.mxu0 0
        %365 = vmatprep.subr.bf16.mxu0 0
        %366 = vmatpush1.bf16.msra.mxu0 0
        %367 = vmatprep.subr.bf16.mxu0 0
        %368 = vmatpush1.bf16.msra.mxu0 0
        %369 = vmatprep.subr.bf16.mxu0 0
        %370 = vmatpush1.bf16.msra.mxu0 0
        %371 = vmatprep.mubr.bf16.mxu0 0
        %372 = vmatmul.mubr.bf16.gmra.mrb[0].mxu0 %v337
        %v373 = vpop.f32.mrb[0].mxu0
        %v374 = vadd.f32 0.0, %v373
        %v375 = vpop.f32.mrb[0].mxu0
        %v376 = vpop.f32.mrb[0].mxu0
        %v377 = vpop.f32.mrb[0].mxu0
        %378 = vdwg.mxu0
        %v379 = vadd.f32 %v319, %v374
        %v380 = vxor.u32 %v379, 2147483648
        %v381 = vmul.f32 %v380, 1.442695
        %v382 = vpow.pop %v381
        %v383 = vadd.f32 %v382, 1.0
        %v384 = vrcp.pop %v383
        %v385 = vmul.f32 1.0, %v384
        %v386 = vtanh.pop %v379
        %388 = vrot.lane.b32.xlu0 %v321, 32
        %v389 = vpop.permute.xlu0 %388
        %v391 = vmul.f32 %v385, %v389
        %393 = vrot.lane.b32.xlu0 %v386, 64
        %v394 = vpop.permute.xlu0 %393
        %v396 = vmul.f32 %v385, %v394
        %398 = vrot.lane.b32.xlu0 %v396, 32
        %v399 = vpop.permute.xlu0 %398
        %v401 = vadd.f32 %v391, %v399
        %v402 = vtanh.pop %v401
        %404 = vrot.lane.b32.xlu0 %v402, 64
        %v405 = vpop.permute.xlu0 %404
        %v407 = vmul.f32 %v385, %v405
        %s408 = sadd.s32 %s315, %s316
        %v409 = vstv %s408
        %vm410 = vcmp.lt.s32.totalorder %v409, %v306
        %v411 = vsel %vm410, 1, 0
        %412 = vset.pattern.permute.xlu0 0
        %413 = vperm.xlu0 %412, %v411
        %v414 = vpop.permute.xlu0 %413
        %vm415 = vcmp.eq.s32.totalorder %v414, 1
        %417 = vrot.lane.b32.xlu0 %v320, 96
        %v418 = vpop.permute.xlu0 %417
        %v420 = vsel %vm415, %v407, %v418
        %422 = vrot.lane.b32.xlu0 %v420, 32
        %v423 = vpop.permute.xlu0 %422
        %vm425 = vcmask 254976
        %426 = vst.msk [vmem:[#allocation2] sm:$0x3] %vm425, %v423
        %v427 = vsel %vm415, %v401, %v389
        %429 = vrot.lane.b32.xlu0 %v427, 96
        %v430 = vpop.permute.xlu0 %429
        %432 = vst.msk [vmem:[#allocation3] sm:$0x3] %vm425, %v430
        %v433 = vsel %vm415, %v407, 0.0
        %v434 = vpack.c.bf16 %v433, %v433
        %v437 = vunpack.c.l.s4 1966171168
        %v438 = vunpack.c.0.s8 %v437
        %v439 = vlaneseq
        %v440 = vshrl.u32 %v439, 7
        %v441 = vsub.s32 %v438, %v440
        %v442 = vrot.slane %v434, %v441
        %v444 = vunpack.c.l.s4 1966171168
        %v445 = vunpack.c.0.s8 %v444
        %v446 = vlaneseq
        %v447 = vshrl.u32 %v446, 7
        %v448 = vsub.s32 %v445, %v447
        %v449 = vrot.slane %v442, %v448
        %450 = vrot.lane.b32.xlu0 %v449, 32
        %v451 = vpop.permute.xlu0 %450
        %s453 = scalar_lea.vmem %s259, %s316 [#allocation4]
        %vm454 = vcmask 253952
        %455 = vst.msk [vmem:[%s453] sm:$0x1] %vm454, %v451
        %s456 = smul.u32 %s23, 5
        %s457 = sadd.s32 %s456, 1
        %s458 = smul.u32 %s457, 2
        %s459 = scalar_lea.vmem %s278, %s458
        %v460 = vld [vmem:[%s459] sm:$0x3]
        %v461 = vld [vmem:[#allocation2] sm:$0x3]
        %v462 = vld [vmem:[#allocation3] sm:$0x3]
        %v463 = vpack.c.bf16 %v461, %v461
        %v465 = vsel %vm335, %v463, 0
        %467 = vmatprep.subr.bf16.mxu0 0
        %468 = vmatpush1.bf16.msra.mxu0 %v331
        %469 = vmatprep.subr.bf16.mxu0 0
        %470 = vmatpush1.bf16.msra.mxu0 %v332
        %471 = vmatprep.subr.bf16.mxu0 0
        %472 = vmatpush1.bf16.msra.mxu0 0
        %473 = vmatprep.subr.bf16.mxu0 0
        %474 = vmatpush1.bf16.msra.mxu0 0
        %475 = vmatprep.subr.bf16.mxu0 0
        %476 = vmatpush1.bf16.msra.mxu0 0
        %477 = vmatprep.subr.bf16.mxu0 0
        %478 = vmatpush1.bf16.msra.mxu0 0
        %479 = vmatprep.subr.bf16.mxu0 0
        %480 = vmatpush1.bf16.msra.mxu0 0
        %481 = vmatprep.subr.bf16.mxu0 0
        %482 = vmatpush1.bf16.msra.mxu0 0
        %483 = vmatprep.subr.bf16.mxu0 0
        %484 = vmatpush1.bf16.msra.mxu0 0
        %485 = vmatprep.subr.bf16.mxu0 0
        %486 = vmatpush1.bf16.msra.mxu0 0
        %487 = vmatprep.subr.bf16.mxu0 0
        %488 = vmatpush1.bf16.msra.mxu0 0
        %489 = vmatprep.subr.bf16.mxu0 0
        %490 = vmatpush1.bf16.msra.mxu0 0
        %491 = vmatprep.subr.bf16.mxu0 0
        %492 = vmatpush1.bf16.msra.mxu0 0
        %493 = vmatprep.subr.bf16.mxu0 0
        %494 = vmatpush1.bf16.msra.mxu0 0
        %495 = vmatprep.subr.bf16.mxu0 0
        %496 = vmatpush1.bf16.msra.mxu0 0
        %497 = vmatprep.subr.bf16.mxu0 0
        %498 = vmatpush1.bf16.msra.mxu0 0
        %499 = vmatprep.mubr.bf16.mxu0 0
        %500 = vmatmul.mubr.bf16.gmra.mrb[0].mxu0 %v465
        %v501 = vpop.f32.mrb[0].mxu0
        %v502 = vadd.f32 0.0, %v501
        %v503 = vpop.f32.mrb[0].mxu0
        %v504 = vpop.f32.mrb[0].mxu0
        %v505 = vpop.f32.mrb[0].mxu0
        %506 = vdwg.mxu0
        %v507 = vadd.f32 %v460, %v502
        %v508 = vxor.u32 %v507, 2147483648
        %v509 = vmul.f32 %v508, 1.442695
        %v510 = vpow.pop %v509
        %v511 = vadd.f32 %v510, 1.0
        %v512 = vrcp.pop %v511
        %v513 = vmul.f32 1.0, %v512
        %v514 = vtanh.pop %v507
        %516 = vrot.lane.b32.xlu0 %v462, 32
        %v517 = vpop.permute.xlu0 %516
        %v519 = vmul.f32 %v513, %v517
        %521 = vrot.lane.b32.xlu0 %v514, 64
        %v522 = vpop.permute.xlu0 %521
        %v524 = vmul.f32 %v513, %v522
        %526 = vrot.lane.b32.xlu0 %v524, 32
        %v527 = vpop.permute.xlu0 %526
        %v529 = vadd.f32 %v519, %v527
        %v530 = vtanh.pop %v529
        %532 = vrot.lane.b32.xlu0 %v530, 64
        %v533 = vpop.permute.xlu0 %532
        %v535 = vmul.f32 %v513, %v533
        %s536 = sadd.s32 %s315, %s457
        %v537 = vstv %s536
        %vm538 = vcmp.lt.s32.totalorder %v537, %v306
        %v539 = vsel %vm538, 1, 0
        %540 = vset.pattern.permute.xlu0 0
        %541 = vperm.xlu0 %540, %v539
        %v542 = vpop.permute.xlu0 %541
        %vm543 = vcmp.eq.s32.totalorder %v542, 1
        %545 = vrot.lane.b32.xlu0 %v461, 96
        %v546 = vpop.permute.xlu0 %545
        %v548 = vsel %vm543, %v535, %v546
        %550 = vrot.lane.b32.xlu0 %v548, 32
        %v551 = vpop.permute.xlu0 %550
        %553 = vst.msk [vmem:[#allocation2] sm:$0x3] %vm425, %v551
        %v554 = vsel %vm543, %v529, %v517
        %556 = vrot.lane.b32.xlu0 %v554, 96
        %v557 = vpop.permute.xlu0 %556
        %559 = vst.msk [vmem:[#allocation3] sm:$0x3] %vm425, %v557
        %v560 = vsel %vm543, %v535, 0.0
        %v561 = vpack.c.bf16 %v560, %v560
        %v564 = vunpack.c.l.s4 1966171168
        %v565 = vunpack.c.0.s8 %v564
        %v566 = vlaneseq
        %v567 = vshrl.u32 %v566, 7
        %v568 = vsub.s32 %v565, %v567
        %v569 = vrot.slane %v561, %v568
        %v571 = vunpack.c.l.s4 1966171168
        %v572 = vunpack.c.0.s8 %v571
        %v573 = vlaneseq
        %v574 = vshrl.u32 %v573, 7
        %v575 = vsub.s32 %v572, %v574
        %v576 = vrot.slane %v569, %v575
        %577 = vrot.lane.b32.xlu0 %v576, 32
        %v578 = vpop.permute.xlu0 %577
        %s580 = scalar_lea.vmem %s259, %s457 [#allocation4]
        %581 = vst.msk [vmem:[%s580] sm:$0x1] %vm454, %v578
        %s582 = smul.u32 %s23, 3
        %s583 = sadd.s32 %s582, 2
        %s584 = smul.u32 %s583, 2
        %s585 = scalar_lea.vmem %s278, %s584
        %v586 = vld [vmem:[%s585] sm:$0x3]
        %v587 = vld [vmem:[#allocation2] sm:$0x3]
        %v588 = vld [vmem:[#allocation3] sm:$0x3]
        %v589 = vpack.c.bf16 %v587, %v587
        %v591 = vsel %vm335, %v589, 0
        %593 = vmatprep.subr.bf16.mxu0 0
        %594 = vmatpush1.bf16.msra.mxu0 %v331
        %595 = vmatprep.subr.bf16.mxu0 0
        %596 = vmatpush1.bf16.msra.mxu0 %v332
        %597 = vmatprep.subr.bf16.mxu0 0
        %598 = vmatpush1.bf16.msra.mxu0 0
        %599 = vmatprep.subr.bf16.mxu0 0
        %600 = vmatpush1.bf16.msra.mxu0 0
        %601 = vmatprep.subr.bf16.mxu0 0
        %602 = vmatpush1.bf16.msra.mxu0 0
        %603 = vmatprep.subr.bf16.mxu0 0
        %604 = vmatpush1.bf16.msra.mxu0 0
        %605 = vmatprep.subr.bf16.mxu0 0
        %606 = vmatpush1.bf16.msra.mxu0 0
        %607 = vmatprep.subr.bf16.mxu0 0
        %608 = vmatpush1.bf16.msra.mxu0 0
        %609 = vmatprep.subr.bf16.mxu0 0
        %610 = vmatpush1.bf16.msra.mxu0 0
        %611 = vmatprep.subr.bf16.mxu0 0
        %612 = vmatpush1.bf16.msra.mxu0 0
        %613 = vmatprep.subr.bf16.mxu0 0
        %614 = vmatpush1.bf16.msra.mxu0 0
        %615 = vmatprep.subr.bf16.mxu0 0
        %616 = vmatpush1.bf16.msra.mxu0 0
        %617 = vmatprep.subr.bf16.mxu0 0
        %618 = vmatpush1.bf16.msra.mxu0 0
        %619 = vmatprep.subr.bf16.mxu0 0
        %620 = vmatpush1.bf16.msra.mxu0 0
        %621 = vmatprep.subr.bf16.mxu0 0
        %622 = vmatpush1.bf16.msra.mxu0 0
        %623 = vmatprep.subr.bf16.mxu0 0
        %624 = vmatpush1.bf16.msra.mxu0 0
        %625 = vmatprep.mubr.bf16.mxu0 0
        %626 = vmatmul.mubr.bf16.gmra.mrb[0].mxu0 %v591
        %v627 = vpop.f32.mrb[0].mxu0
        %v628 = vadd.f32 0.0, %v627
        %v629 = vpop.f32.mrb[0].mxu0
        %v630 = vpop.f32.mrb[0].mxu0
        %v631 = vpop.f32.mrb[0].mxu0
        %632 = vdwg.mxu0
        %v633 = vadd.f32 %v586, %v628
        %v634 = vxor.u32 %v633, 2147483648
        %v635 = vmul.f32 %v634, 1.442695
        %v636 = vpow.pop %v635
        %v637 = vadd.f32 %v636, 1.0
        %v638 = vrcp.pop %v637
        %v639 = vmul.f32 1.0, %v638
        %v640 = vtanh.pop %v633
        %642 = vrot.lane.b32.xlu0 %v588, 32
        %v643 = vpop.permute.xlu0 %642
        %v645 = vmul.f32 %v639, %v643
        %647 = vrot.lane.b32.xlu0 %v640, 64
        %v648 = vpop.permute.xlu0 %647
        %v650 = vmul.f32 %v639, %v648
        %652 = vrot.lane.b32.xlu0 %v650, 32
        %v653 = vpop.permute.xlu0 %652
        %v655 = vadd.f32 %v645, %v653
        %v656 = vtanh.pop %v655
        %658 = vrot.lane.b32.xlu0 %v656, 64
        %v659 = vpop.permute.xlu0 %658
        %v661 = vmul.f32 %v639, %v659
        %s662 = sadd.s32 %s315, %s583
        %v663 = vstv %s662
        %vm664 = vcmp.lt.s32.totalorder %v663, %v306
        %v665 = vsel %vm664, 1, 0
        %666 = vset.pattern.permute.xlu0 0
        %667 = vperm.xlu0 %666, %v665
        %v668 = vpop.permute.xlu0 %667
        %vm669 = vcmp.eq.s32.totalorder %v668, 1
        %671 = vrot.lane.b32.xlu0 %v587, 96
        %v672 = vpop.permute.xlu0 %671
        %v674 = vsel %vm669, %v661, %v672
        %676 = vrot.lane.b32.xlu0 %v674, 32
        %v677 = vpop.permute.xlu0 %676
        %679 = vst.msk [vmem:[#allocation2] sm:$0x3] %vm425, %v677
        %v680 = vsel %vm669, %v655, %v643
        %682 = vrot.lane.b32.xlu0 %v680, 96
        %v683 = vpop.permute.xlu0 %682
        %685 = vst.msk [vmem:[#allocation3] sm:$0x3] %vm425, %v683
        %v686 = vsel %vm669, %v661, 0.0
        %v687 = vpack.c.bf16 %v686, %v686
        %v690 = vunpack.c.l.s4 1966171168
        %v691 = vunpack.c.0.s8 %v690
        %v692 = vlaneseq
        %v693 = vshrl.u32 %v692, 7
        %v694 = vsub.s32 %v691, %v693
        %v695 = vrot.slane %v687, %v694
        %v697 = vunpack.c.l.s4 1966171168
        %v698 = vunpack.c.0.s8 %v697
        %v699 = vlaneseq
        %v700 = vshrl.u32 %v699, 7
        %v701 = vsub.s32 %v698, %v700
        %v702 = vrot.slane %v695, %v701
        %703 = vrot.lane.b32.xlu0 %v702, 32
        %v704 = vpop.permute.xlu0 %703
        %s706 = scalar_lea.vmem %s259, %s583 [#allocation4]
        %707 = vst.msk [vmem:[%s706] sm:$0x1] %vm454, %v704
        %s708 = sadd.s32 %s23, 3
        %s709 = smul.u32 %s708, 2
        %s710 = scalar_lea.vmem %s278, %s709
        %v711 = vld [vmem:[%s710] sm:$0x3]
        %v712 = vld [vmem:[#allocation2] sm:$0x3]
        %v713 = vld [vmem:[#allocation3] sm:$0x3]
        %v714 = vpack.c.bf16 %v712, %v712
        %v716 = vsel %vm335, %v714, 0
        %718 = vmatprep.subr.bf16.mxu0 0
        %719 = vmatpush1.bf16.msra.mxu0 %v331
        %720 = vmatprep.subr.bf16.mxu0 0
        %721 = vmatpush1.bf16.msra.mxu0 %v332
        %722 = vmatprep.subr.bf16.mxu0 0
        %723 = vmatpush1.bf16.msra.mxu0 0
        %724 = vmatprep.subr.bf16.mxu0 0
        %725 = vmatpush1.bf16.msra.mxu0 0
        %726 = vmatprep.subr.bf16.mxu0 0
        %727 = vmatpush1.bf16.msra.mxu0 0
        %728 = vmatprep.subr.bf16.mxu0 0
        %729 = vmatpush1.bf16.msra.mxu0 0
        %730 = vmatprep.subr.bf16.mxu0 0
        %731 = vmatpush1.bf16.msra.mxu0 0
        %732 = vmatprep.subr.bf16.mxu0 0
        %733 = vmatpush1.bf16.msra.mxu0 0
        %734 = vmatprep.subr.bf16.mxu0 0
        %735 = vmatpush1.bf16.msra.mxu0 0
        %736 = vmatprep.subr.bf16.mxu0 0
        %737 = vmatpush1.bf16.msra.mxu0 0
        %738 = vmatprep.subr.bf16.mxu0 0
        %739 = vmatpush1.bf16.msra.mxu0 0
        %740 = vmatprep.subr.bf16.mxu0 0
        %741 = vmatpush1.bf16.msra.mxu0 0
        %742 = vmatprep.subr.bf16.mxu0 0
        %743 = vmatpush1.bf16.msra.mxu0 0
        %744 = vmatprep.subr.bf16.mxu0 0
        %745 = vmatpush1.bf16.msra.mxu0 0
        %746 = vmatprep.subr.bf16.mxu0 0
        %747 = vmatpush1.bf16.msra.mxu0 0
        %748 = vmatprep.subr.bf16.mxu0 0
        %749 = vmatpush1.bf16.msra.mxu0 0
        %750 = vmatprep.mubr.bf16.mxu0 0
        %751 = vmatmul.mubr.bf16.gmra.mrb[0].mxu0 %v716
        %v752 = vpop.f32.mrb[0].mxu0
        %v753 = vadd.f32 0.0, %v752
        %v754 = vpop.f32.mrb[0].mxu0
        %v755 = vpop.f32.mrb[0].mxu0
        %v756 = vpop.f32.mrb[0].mxu0
        %757 = vdwg.mxu0
        %v758 = vadd.f32 %v711, %v753
        %v759 = vxor.u32 %v758, 2147483648
        %v760 = vmul.f32 %v759, 1.442695
        %v761 = vpow.pop %v760
        %v762 = vadd.f32 %v761, 1.0
        %v763 = vrcp.pop %v762
        %v764 = vmul.f32 1.0, %v763
        %v765 = vtanh.pop %v758
        %767 = vrot.lane.b32.xlu0 %v713, 32
        %v768 = vpop.permute.xlu0 %767
        %v770 = vmul.f32 %v764, %v768
        %772 = vrot.lane.b32.xlu0 %v765, 64
        %v773 = vpop.permute.xlu0 %772
        %v775 = vmul.f32 %v764, %v773
        %777 = vrot.lane.b32.xlu0 %v775, 32
        %v778 = vpop.permute.xlu0 %777
        %v780 = vadd.f32 %v770, %v778
        %v781 = vtanh.pop %v780
        %783 = vrot.lane.b32.xlu0 %v781, 64
        %v784 = vpop.permute.xlu0 %783
        %v786 = vmul.f32 %v764, %v784
        %s787 = sadd.s32 %s315, %s708
        %v788 = vstv %s787
        %vm789 = vcmp.lt.s32.totalorder %v788, %v306
        %v790 = vsel %vm789, 1, 0
        %791 = vset.pattern.permute.xlu0 0
        %792 = vperm.xlu0 %791, %v790
        %v793 = vpop.permute.xlu0 %792
        %vm794 = vcmp.eq.s32.totalorder %v793, 1
        %796 = vrot.lane.b32.xlu0 %v712, 96
        %v797 = vpop.permute.xlu0 %796
        %v799 = vsel %vm794, %v786, %v797
        %801 = vrot.lane.b32.xlu0 %v799, 32
        %v802 = vpop.permute.xlu0 %801
        %804 = vst.msk [vmem:[#allocation2] sm:$0x3] %vm425, %v802
        %v805 = vsel %vm794, %v780, %v768
        %807 = vrot.lane.b32.xlu0 %v805, 96
        %v808 = vpop.permute.xlu0 %807
        %810 = vst.msk [vmem:[#allocation3] sm:$0x3] %vm425, %v808
        %v811 = vsel %vm794, %v786, 0.0
        %v812 = vpack.c.bf16 %v811, %v811
        %v815 = vunpack.c.l.s4 1966171168
        %v816 = vunpack.c.0.s8 %v815
        %v817 = vlaneseq
        %v818 = vshrl.u32 %v817, 7
        %v819 = vsub.s32 %v816, %v818
        %v820 = vrot.slane %v812, %v819
        %v822 = vunpack.c.l.s4 1966171168
        %v823 = vunpack.c.0.s8 %v822
        %v824 = vlaneseq
        %v825 = vshrl.u32 %v824, 7
        %v826 = vsub.s32 %v823, %v825
        %v827 = vrot.slane %v820, %v826
        %828 = vrot.lane.b32.xlu0 %v827, 32
        %v829 = vpop.permute.xlu0 %828
        %s831 = scalar_lea.vmem %s259, %s708 [#allocation4]
        %832 = vst.msk [vmem:[%s831] sm:$0x1] %vm454, %v829
        %s833 = ssub.s32 4, %s23
        %s834 = smul.u32 %s833, 2
        %s835 = scalar_lea.vmem %s278, %s834
        %v836 = vld [vmem:[%s835] sm:$0x3]
        %v837 = vld [vmem:[#allocation2] sm:$0x3]
        %v838 = vld [vmem:[#allocation3] sm:$0x3]
        %v839 = vpack.c.bf16 %v837, %v837
        %v841 = vsel %vm335, %v839, 0
        %843 = vmatprep.subr.bf16.mxu0 0
        %844 = vmatpush1.bf16.msra.mxu0 %v331
        %845 = vmatprep.subr.bf16.mxu0 0
        %846 = vmatpush1.bf16.msra.mxu0 %v332
        %847 = vmatprep.subr.bf16.mxu0 0
        %848 = vmatpush1.bf16.msra.mxu0 0
        %849 = vmatprep.subr.bf16.mxu0 0
        %850 = vmatpush1.bf16.msra.mxu0 0
        %851 = vmatprep.subr.bf16.mxu0 0
        %852 = vmatpush1.bf16.msra.mxu0 0
        %853 = vmatprep.subr.bf16.mxu0 0
        %854 = vmatpush1.bf16.msra.mxu0 0
        %855 = vmatprep.subr.bf16.mxu0 0
        %856 = vmatpush1.bf16.msra.mxu0 0
        %857 = vmatprep.subr.bf16.mxu0 0
        %858 = vmatpush1.bf16.msra.mxu0 0
        %859 = vmatprep.subr.bf16.mxu0 0
        %860 = vmatpush1.bf16.msra.mxu0 0
        %861 = vmatprep.subr.bf16.mxu0 0
        %862 = vmatpush1.bf16.msra.mxu0 0
        %863 = vmatprep.subr.bf16.mxu0 0
        %864 = vmatpush1.bf16.msra.mxu0 0
        %865 = vmatprep.subr.bf16.mxu0 0
        %866 = vmatpush1.bf16.msra.mxu0 0
        %867 = vmatprep.subr.bf16.mxu0 0
        %868 = vmatpush1.bf16.msra.mxu0 0
        %869 = vmatprep.subr.bf16.mxu0 0
        %870 = vmatpush1.bf16.msra.mxu0 0
        %871 = vmatprep.subr.bf16.mxu0 0
        %872 = vmatpush1.bf16.msra.mxu0 0
        %873 = vmatprep.subr.bf16.mxu0 0
        %874 = vmatpush1.bf16.msra.mxu0 0
        %875 = vmatprep.mubr.bf16.mxu0 0
        %876 = vmatmul.mubr.bf16.gmra.mrb[0].mxu0 %v841
        %v877 = vpop.f32.mrb[0].mxu0
        %v878 = vadd.f32 0.0, %v877
        %v879 = vpop.f32.mrb[0].mxu0
        %v880 = vpop.f32.mrb[0].mxu0
        %v881 = vpop.f32.mrb[0].mxu0
        %882 = vdwg.mxu0
        %v883 = vadd.f32 %v836, %v878
        %v884 = vxor.u32 %v883, 2147483648
        %v885 = vmul.f32 %v884, 1.442695
        %v886 = vpow.pop %v885
        %v887 = vadd.f32 %v886, 1.0
        %v888 = vrcp.pop %v887
        %v889 = vmul.f32 1.0, %v888
        %v890 = vtanh.pop %v883
        %892 = vrot.lane.b32.xlu0 %v838, 32
        %v893 = vpop.permute.xlu0 %892
        %v895 = vmul.f32 %v889, %v893
        %897 = vrot.lane.b32.xlu0 %v890, 64
        %v898 = vpop.permute.xlu0 %897
        %v900 = vmul.f32 %v889, %v898
        %902 = vrot.lane.b32.xlu0 %v900, 32
        %v903 = vpop.permute.xlu0 %902
        %v905 = vadd.f32 %v895, %v903
        %v906 = vtanh.pop %v905
        %908 = vrot.lane.b32.xlu0 %v906, 64
        %v909 = vpop.permute.xlu0 %908
        %v911 = vmul.f32 %v889, %v909
        %s912 = sadd.s32 %s315, %s833
        %v913 = vstv %s912
        %vm914 = vcmp.lt.s32.totalorder %v913, %v306
        %v915 = vsel %vm914, 1, 0
        %916 = vset.pattern.permute.xlu0 0
        %917 = vperm.xlu0 %916, %v915
        %v918 = vpop.permute.xlu0 %917
        %vm919 = vcmp.eq.s32.totalorder %v918, 1
        %921 = vrot.lane.b32.xlu0 %v837, 96
        %v922 = vpop.permute.xlu0 %921
        %v924 = vsel %vm919, %v911, %v922
        %926 = vrot.lane.b32.xlu0 %v924, 32
        %v927 = vpop.permute.xlu0 %926
        %929 = vst.msk [vmem:[#allocation2] sm:$0x3] %vm425, %v927
        %v930 = vsel %vm919, %v905, %v893
        %932 = vrot.lane.b32.xlu0 %v930, 96
        %v933 = vpop.permute.xlu0 %932
        %935 = vst.msk [vmem:[#allocation3] sm:$0x3] %vm425, %v933
        %v936 = vsel %vm919, %v911, 0.0
        %v937 = vpack.c.bf16 %v936, %v936
        %v940 = vunpack.c.l.s4 1966171168
        %v941 = vunpack.c.0.s8 %v940
        %v942 = vlaneseq
        %v943 = vshrl.u32 %v942, 7
        %v944 = vsub.s32 %v941, %v943
        %v945 = vrot.slane %v937, %v944
        %v947 = vunpack.c.l.s4 1966171168
        %v948 = vunpack.c.0.s8 %v947
        %v949 = vlaneseq
        %v950 = vshrl.u32 %v949, 7
        %v951 = vsub.s32 %v948, %v950
        %v952 = vrot.slane %v945, %v951
        %953 = vrot.lane.b32.xlu0 %v952, 32
        %v954 = vpop.permute.xlu0 %953
        %s956 = scalar_lea.vmem %s259, %s833 [#allocation4]
        %957 = vst.msk [vmem:[%s956] sm:$0x1] %vm454, %v954
        %s958 = smul.u32 %s23, 4294967293
        %s959 = sadd.s32 %s958, 5
        %s960 = smul.u32 %s959, 2
        %s961 = scalar_lea.vmem %s278, %s960
        %v962 = vld [vmem:[%s961] sm:$0x3]
        %v963 = vld [vmem:[#allocation2] sm:$0x3]
        %v964 = vld [vmem:[#allocation3] sm:$0x3]
        %v965 = vpack.c.bf16 %v963, %v963
        %v967 = vsel %vm335, %v965, 0
        %969 = vmatprep.subr.bf16.mxu0 0
        %970 = vmatpush1.bf16.msra.mxu0 %v331
        %971 = vmatprep.subr.bf16.mxu0 0
        %972 = vmatpush1.bf16.msra.mxu0 %v332
        %973 = vmatprep.subr.bf16.mxu0 0
        %974 = vmatpush1.bf16.msra.mxu0 0
        %975 = vmatprep.subr.bf16.mxu0 0
        %976 = vmatpush1.bf16.msra.mxu0 0
        %977 = vmatprep.subr.bf16.mxu0 0
        %978 = vmatpush1.bf16.msra.mxu0 0
        %979 = vmatprep.subr.bf16.mxu0 0
        %980 = vmatpush1.bf16.msra.mxu0 0
        %981 = vmatprep.subr.bf16.mxu0 0
        %982 = vmatpush1.bf16.msra.mxu0 0
        %983 = vmatprep.subr.bf16.mxu0 0
        %984 = vmatpush1.bf16.msra.mxu0 0
        %985 = vmatprep.subr.bf16.mxu0 0
        %986 = vmatpush1.bf16.msra.mxu0 0
        %987 = vmatprep.subr.bf16.mxu0 0
        %988 = vmatpush1.bf16.msra.mxu0 0
        %989 = vmatprep.subr.bf16.mxu0 0
        %990 = vmatpush1.bf16.msra.mxu0 0
        %991 = vmatprep.subr.bf16.mxu0 0
        %992 = vmatpush1.bf16.msra.mxu0 0
        %993 = vmatprep.subr.bf16.mxu0 0
        %994 = vmatpush1.bf16.msra.mxu0 0
        %995 = vmatprep.subr.bf16.mxu0 0
        %996 = vmatpush1.bf16.msra.mxu0 0
        %997 = vmatprep.subr.bf16.mxu0 0
        %998 = vmatpush1.bf16.msra.mxu0 0
        %999 = vmatprep.subr.bf16.mxu0 0
        %1000 = vmatpush1.bf16.msra.mxu0 0
        %1001 = vmatprep.mubr.bf16.mxu0 0
        %1002 = vmatmul.mubr.bf16.gmra.mrb[0].mxu0 %v967
        %v1003 = vpop.f32.mrb[0].mxu0
        %v1004 = vadd.f32 0.0, %v1003
        %v1005 = vpop.f32.mrb[0].mxu0
        %v1006 = vpop.f32.mrb[0].mxu0
        %v1007 = vpop.f32.mrb[0].mxu0
        %1008 = vdwg.mxu0
        %v1009 = vadd.f32 %v962, %v1004
        %v1010 = vxor.u32 %v1009, 2147483648
        %v1011 = vmul.f32 %v1010, 1.442695
        %v1012 = vpow.pop %v1011
        %v1013 = vadd.f32 %v1012, 1.0
        %v1014 = vrcp.pop %v1013
        %v1015 = vmul.f32 1.0, %v1014
        %v1016 = vtanh.pop %v1009
        %1018 = vrot.lane.b32.xlu0 %v964, 32
        %v1019 = vpop.permute.xlu0 %1018
        %v1021 = vmul.f32 %v1015, %v1019
        %1023 = vrot.lane.b32.xlu0 %v1016, 64
        %v1024 = vpop.permute.xlu0 %1023
        %v1026 = vmul.f32 %v1015, %v1024
        %1028 = vrot.lane.b32.xlu0 %v1026, 32
        %v1029 = vpop.permute.xlu0 %1028
        %v1031 = vadd.f32 %v1021, %v1029
        %v1032 = vtanh.pop %v1031
        %1034 = vrot.lane.b32.xlu0 %v1032, 64
        %v1035 = vpop.permute.xlu0 %1034
        %v1037 = vmul.f32 %v1015, %v1035
        %s1038 = sadd.s32 %s315, %s959
        %v1039 = vstv %s1038
        %vm1040 = vcmp.lt.s32.totalorder %v1039, %v306
        %v1041 = vsel %vm1040, 1, 0
        %1042 = vset.pattern.permute.xlu0 0
        %1043 = vperm.xlu0 %1042, %v1041
        %v1044 = vpop.permute.xlu0 %1043
        %vm1045 = vcmp.eq.s32.totalorder %v1044, 1
        %1047 = vrot.lane.b32.xlu0 %v963, 96
        %v1048 = vpop.permute.xlu0 %1047
        %v1050 = vsel %vm1045, %v1037, %v1048
        %1052 = vrot.lane.b32.xlu0 %v1050, 32
        %v1053 = vpop.permute.xlu0 %1052
        %1055 = vst.msk [vmem:[#allocation2] sm:$0x3] %vm425, %v1053
        %v1056 = vsel %vm1045, %v1031, %v1019
        %1058 = vrot.lane.b32.xlu0 %v1056, 96
        %v1059 = vpop.permute.xlu0 %1058
        %1061 = vst.msk [vmem:[#allocation3] sm:$0x3] %vm425, %v1059
        %v1062 = vsel %vm1045, %v1037, 0.0
        %v1063 = vpack.c.bf16 %v1062, %v1062
        %v1066 = vunpack.c.l.s4 1966171168
        %v1067 = vunpack.c.0.s8 %v1066
        %v1068 = vlaneseq
        %v1069 = vshrl.u32 %v1068, 7
        %v1070 = vsub.s32 %v1067, %v1069
        %v1071 = vrot.slane %v1063, %v1070
        %v1073 = vunpack.c.l.s4 1966171168
        %v1074 = vunpack.c.0.s8 %v1073
        %v1075 = vlaneseq
        %v1076 = vshrl.u32 %v1075, 7
        %v1077 = vsub.s32 %v1074, %v1076
        %v1078 = vrot.slane %v1071, %v1077
        %1079 = vrot.lane.b32.xlu0 %v1078, 32
        %v1080 = vpop.permute.xlu0 %1079
        %s1082 = scalar_lea.vmem %s259, %s959 [#allocation4]
        %1083 = vst.msk [vmem:[%s1082] sm:$0x1] %vm454, %v1080
        %s1084 = smul.u32 %s23, 4294967291
        %s1085 = sadd.s32 %s1084, 6
        %s1086 = smul.u32 %s1085, 2
        %s1087 = scalar_lea.vmem %s278, %s1086
        %v1088 = vld [vmem:[%s1087] sm:$0x3]
        %v1089 = vld [vmem:[#allocation2] sm:$0x3]
        %v1090 = vld [vmem:[#allocation3] sm:$0x3]
        %v1091 = vpack.c.bf16 %v1089, %v1089
        %v1093 = vsel %vm335, %v1091, 0
        %1095 = vmatprep.subr.bf16.mxu0 0
        %1096 = vmatpush1.bf16.msra.mxu0 %v331
        %1097 = vmatprep.subr.bf16.mxu0 0
        %1098 = vmatpush1.bf16.msra.mxu0 %v332
        %1099 = vmatprep.subr.bf16.mxu0 0
        %1100 = vmatpush1.bf16.msra.mxu0 0
        %1101 = vmatprep.subr.bf16.mxu0 0
        %1102 = vmatpush1.bf16.msra.mxu0 0
        %1103 = vmatprep.subr.bf16.mxu0 0
        %1104 = vmatpush1.bf16.msra.mxu0 0
        %1105 = vmatprep.subr.bf16.mxu0 0
        %1106 = vmatpush1.bf16.msra.mxu0 0
        %1107 = vmatprep.subr.bf16.mxu0 0
        %1108 = vmatpush1.bf16.msra.mxu0 0
        %1109 = vmatprep.subr.bf16.mxu0 0
        %1110 = vmatpush1.bf16.msra.mxu0 0
        %1111 = vmatprep.subr.bf16.mxu0 0
        %1112 = vmatpush1.bf16.msra.mxu0 0
        %1113 = vmatprep.subr.bf16.mxu0 0
        %1114 = vmatpush1.bf16.msra.mxu0 0
        %1115 = vmatprep.subr.bf16.mxu0 0
        %1116 = vmatpush1.bf16.msra.mxu0 0
        %1117 = vmatprep.subr.bf16.mxu0 0
        %1118 = vmatpush1.bf16.msra.mxu0 0
        %1119 = vmatprep.subr.bf16.mxu0 0
        %1120 = vmatpush1.bf16.msra.mxu0 0
        %1121 = vmatprep.subr.bf16.mxu0 0
        %1122 = vmatpush1.bf16.msra.mxu0 0
        %1123 = vmatprep.subr.bf16.mxu0 0
        %1124 = vmatpush1.bf16.msra.mxu0 0
        %1125 = vmatprep.subr.bf16.mxu0 0
        %1126 = vmatpush1.bf16.msra.mxu0 0
        %1127 = vmatprep.mubr.bf16.mxu0 0
        %1128 = vmatmul.mubr.bf16.gmra.mrb[0].mxu0 %v1093
        %v1129 = vpop.f32.mrb[0].mxu0
        %v1130 = vadd.f32 0.0, %v1129
        %v1131 = vpop.f32.mrb[0].mxu0
        %v1132 = vpop.f32.mrb[0].mxu0
        %v1133 = vpop.f32.mrb[0].mxu0
        %1134 = vdwg.mxu0
        %v1135 = vadd.f32 %v1088, %v1130
        %v1136 = vxor.u32 %v1135, 2147483648
        %v1137 = vmul.f32 %v1136, 1.442695
        %v1138 = vpow.pop %v1137
        %v1139 = vadd.f32 %v1138, 1.0
        %v1140 = vrcp.pop %v1139
        %v1141 = vmul.f32 1.0, %v1140
        %v1142 = vtanh.pop %v1135
        %1144 = vrot.lane.b32.xlu0 %v1090, 32
        %v1145 = vpop.permute.xlu0 %1144
        %v1147 = vmul.f32 %v1141, %v1145
        %1149 = vrot.lane.b32.xlu0 %v1142, 64
        %v1150 = vpop.permute.xlu0 %1149
        %v1152 = vmul.f32 %v1141, %v1150
        %1154 = vrot.lane.b32.xlu0 %v1152, 32
        %v1155 = vpop.permute.xlu0 %1154
        %v1157 = vadd.f32 %v1147, %v1155
        %v1158 = vtanh.pop %v1157
        %1160 = vrot.lane.b32.xlu0 %v1158, 64
        %v1161 = vpop.permute.xlu0 %1160
        %v1163 = vmul.f32 %v1141, %v1161
        %s1164 = sadd.s32 %s315, %s1085
        %v1165 = vstv %s1164
        %vm1166 = vcmp.lt.s32.totalorder %v1165, %v306
        %v1167 = vsel %vm1166, 1, 0
        %1168 = vset.pattern.permute.xlu0 0
        %1169 = vperm.xlu0 %1168, %v1167
        %v1170 = vpop.permute.xlu0 %1169
        %vm1171 = vcmp.eq.s32.totalorder %v1170, 1
        %1173 = vrot.lane.b32.xlu0 %v1089, 96
        %v1174 = vpop.permute.xlu0 %1173
        %v1176 = vsel %vm1171, %v1163, %v1174
        %1178 = vrot.lane.b32.xlu0 %v1176, 32
        %v1179 = vpop.permute.xlu0 %1178
        %1181 = vst.msk [vmem:[#allocation2] sm:$0x3] %vm425, %v1179
        %v1182 = vsel %vm1171, %v1157, %v1145
        %1184 = vrot.lane.b32.xlu0 %v1182, 96
        %v1185 = vpop.permute.xlu0 %1184
        %1187 = vst.msk [vmem:[#allocation3] sm:$0x3] %vm425, %v1185
        %v1188 = vsel %vm1171, %v1163, 0.0
        %v1189 = vpack.c.bf16 %v1188, %v1188
        %v1192 = vunpack.c.l.s4 1966171168
        %v1193 = vunpack.c.0.s8 %v1192
        %v1194 = vlaneseq
        %v1195 = vshrl.u32 %v1194, 7
        %v1196 = vsub.s32 %v1193, %v1195
        %v1197 = vrot.slane %v1189, %v1196
        %v1199 = vunpack.c.l.s4 1966171168
        %v1200 = vunpack.c.0.s8 %v1199
        %v1201 = vlaneseq
        %v1202 = vshrl.u32 %v1201, 7
        %v1203 = vsub.s32 %v1200, %v1202
        %v1204 = vrot.slane %v1197, %v1203
        %1205 = vrot.lane.b32.xlu0 %v1204, 32
        %v1206 = vpop.permute.xlu0 %1205
        %s1208 = scalar_lea.vmem %s259, %s1085 [#allocation4]
        %1209 = vst.msk [vmem:[%s1208] sm:$0x1] %vm454, %v1206
        %s1210 = smul.u32 %s23, 4294967289
        %s1211 = sadd.s32 %s1210, 7
        %s1212 = smul.u32 %s1211, 2
        %s1213 = scalar_lea.vmem %s278, %s1212
        %v1214 = vld [vmem:[%s1213] sm:$0x3]
        %v1215 = vld [vmem:[#allocation2] sm:$0x3]
        %v1216 = vld [vmem:[#allocation3] sm:$0x3]
        %v1217 = vpack.c.bf16 %v1215, %v1215
        %v1219 = vsel %vm335, %v1217, 0
        %1221 = vmatprep.subr.bf16.mxu0 0
        %1222 = vmatpush1.bf16.msra.mxu0 %v331
        %1223 = vmatprep.subr.bf16.mxu0 0
        %1224 = vmatpush1.bf16.msra.mxu0 %v332
        %1225 = vmatprep.subr.bf16.mxu0 0
        %1226 = vmatpush1.bf16.msra.mxu0 0
        %1227 = vmatprep.subr.bf16.mxu0 0
        %1228 = vmatpush1.bf16.msra.mxu0 0
        %1229 = vmatprep.subr.bf16.mxu0 0
        %1230 = vmatpush1.bf16.msra.mxu0 0
        %1231 = vmatprep.subr.bf16.mxu0 0
        %1232 = vmatpush1.bf16.msra.mxu0 0
        %1233 = vmatprep.subr.bf16.mxu0 0
        %1234 = vmatpush1.bf16.msra.mxu0 0
        %1235 = vmatprep.subr.bf16.mxu0 0
        %1236 = vmatpush1.bf16.msra.mxu0 0
        %1237 = vmatprep.subr.bf16.mxu0 0
        %1238 = vmatpush1.bf16.msra.mxu0 0
        %1239 = vmatprep.subr.bf16.mxu0 0
        %1240 = vmatpush1.bf16.msra.mxu0 0
        %1241 = vmatprep.subr.bf16.mxu0 0
        %1242 = vmatpush1.bf16.msra.mxu0 0
        %1243 = vmatprep.subr.bf16.mxu0 0
        %1244 = vmatpush1.bf16.msra.mxu0 0
        %1245 = vmatprep.subr.bf16.mxu0 0
        %1246 = vmatpush1.bf16.msra.mxu0 0
        %1247 = vmatprep.subr.bf16.mxu0 0
        %1248 = vmatpush1.bf16.msra.mxu0 0
        %1249 = vmatprep.subr.bf16.mxu0 0
        %1250 = vmatpush1.bf16.msra.mxu0 0
        %1251 = vmatprep.subr.bf16.mxu0 0
        %1252 = vmatpush1.bf16.msra.mxu0 0
        %1253 = vmatprep.mubr.bf16.mxu0 0
        %1254 = vmatmul.mubr.bf16.gmra.mrb[0].mxu0 %v1219
        %v1255 = vpop.f32.mrb[0].mxu0
        %v1256 = vadd.f32 0.0, %v1255
        %v1257 = vpop.f32.mrb[0].mxu0
        %v1258 = vpop.f32.mrb[0].mxu0
        %v1259 = vpop.f32.mrb[0].mxu0
        %1260 = vdwg.mxu0
        %v1261 = vadd.f32 %v1214, %v1256
        %v1262 = vxor.u32 %v1261, 2147483648
        %v1263 = vmul.f32 %v1262, 1.442695
        %v1264 = vpow.pop %v1263
        %v1265 = vadd.f32 %v1264, 1.0
        %v1266 = vrcp.pop %v1265
        %v1267 = vmul.f32 1.0, %v1266
        %v1268 = vtanh.pop %v1261
        %1270 = vrot.lane.b32.xlu0 %v1216, 32
        %v1271 = vpop.permute.xlu0 %1270
        %v1273 = vmul.f32 %v1267, %v1271
        %1275 = vrot.lane.b32.xlu0 %v1268, 64
        %v1276 = vpop.permute.xlu0 %1275
        %v1278 = vmul.f32 %v1267, %v1276
        %1280 = vrot.lane.b32.xlu0 %v1278, 32
        %v1281 = vpop.permute.xlu0 %1280
        %v1283 = vadd.f32 %v1273, %v1281
        %v1284 = vtanh.pop %v1283
        %1286 = vrot.lane.b32.xlu0 %v1284, 64
        %v1287 = vpop.permute.xlu0 %1286
        %v1289 = vmul.f32 %v1267, %v1287
        %s1290 = sadd.s32 %s315, %s1211
        %v1291 = vstv %s1290
        %vm1292 = vcmp.lt.s32.totalorder %v1291, %v306
        %v1293 = vsel %vm1292, 1, 0
        %1294 = vset.pattern.permute.xlu0 0
        %1295 = vperm.xlu0 %1294, %v1293
        %v1296 = vpop.permute.xlu0 %1295
        %vm1297 = vcmp.eq.s32.totalorder %v1296, 1
        %1299 = vrot.lane.b32.xlu0 %v1215, 96
        %v1300 = vpop.permute.xlu0 %1299
        %v1302 = vsel %vm1297, %v1289, %v1300
        %1304 = vrot.lane.b32.xlu0 %v1302, 32
        %v1305 = vpop.permute.xlu0 %1304
        %1307 = vst.msk [vmem:[#allocation2] sm:$0x3] %vm425, %v1305
        %v1308 = vsel %vm1297, %v1283, %v1271
        %1310 = vrot.lane.b32.xlu0 %v1308, 96
        %v1311 = vpop.permute.xlu0 %1310
        %1313 = vst.msk [vmem:[#allocation3] sm:$0x3] %vm425, %v1311
        %v1314 = vsel %vm1297, %v1289, 0.0
        %v1315 = vpack.c.bf16 %v1314, %v1314
        %v1318 = vunpack.c.l.s4 1966171168
        %v1319 = vunpack.c.0.s8 %v1318
        %v1320 = vlaneseq
        %v1321 = vshrl.u32 %v1320, 7
        %v1322 = vsub.s32 %v1319, %v1321
        %v1323 = vrot.slane %v1315, %v1322
        %v1325 = vunpack.c.l.s4 1966171168
        %v1326 = vunpack.c.0.s8 %v1325
        %v1327 = vlaneseq
        %v1328 = vshrl.u32 %v1327, 7
        %v1329 = vsub.s32 %v1326, %v1328
        %v1330 = vrot.slane %v1323, %v1329
        %1331 = vrot.lane.b32.xlu0 %v1330, 32
        %v1332 = vpop.permute.xlu0 %1331
        %s1334 = scalar_lea.vmem %s259, %s1211 [#allocation4]
        %1335 = vst.msk [vmem:[%s1334] sm:$0x1] %vm454, %v1332
        // Predicated region
        $region37: #{bidirectional_lstm_forward.8} parent=31 // pred_check
          %p1336 = pneg %p299
        $region38: #{bidirectional_lstm_forward.8} parent=31 // pred_check_branch
          %1338 = sbr.rel (%p1336) target = $region40
        $region39: #{bidirectional_lstm_forward.8} parent=31 // pred_region
          %v1339 = vld [vmem:[#allocation2] sm:$0x3]
          %1340 = vst.msk [vmem:[%s297] sm:$0x3] %vm425, %v1339
        $region40: #{bidirectional_lstm_forward.8} parent=31 // pred_fallthru
          _
        %s1341 = sand.u32 %s132, 1
        %s1342 = scalar_lea.sflag [#allocation5], %s1341
        %s1343 = sand.u32 %s132, 1
        %s1344 = smul.addr %s1343, 8
        %s1345 = scalar_lea.vmem [#allocation4], %s1344
        %p1346 = scmp.lt.s32.totalorder %s23, 1
        %s1347 = scalar_select %p1346, %s23, 1
        %s1348 = smul.addr %s1347, 2
        %s1349 = scalar_lea.vmem %s4, %s1348
        // Predicated region
        $region41: #{bidirectional_lstm_forward.8} parent=31 // pred_check
          %p1350 = pneg %p142
        $region42: #{bidirectional_lstm_forward.8} parent=31 // pred_check_branch
          %1352 = sbr.rel (%p1350) target = $region44
        $region43: #{bidirectional_lstm_forward.8} parent=31 // pred_region
          %s1353 = smul.u32 %s24, 2
          %s1354 = ssub.s32 0, %s1353
          %s1355 = smul.u32 %s23, %s1354
          %s1356 = sadd.s32 %s24, %s1355
          %s1357 = smul.u32 8, %s1356
          %s1359 = ssub.s32 128, 128
          %1360 = vsyncadd %s1342, %s1359
          %s1361 = smul.addr %s23, 8
          %s1362 = sadd.s32 %s1357, %s1361
          %s1363 = smul.addr %s1362, 16
          %s1364 = scalar_lea.hbm %s3, %s1363
          %s1365 = sshll.u32 %s1345, 4
          %s1366 = int_to_ptr.vmem [resolvable:$true] %s1365
          %1371 = dma.vmem_to_hbm [thread:$0]  %s1366, 128, %s1364, %s1342, 16, 16, 1
        $region44: #{bidirectional_lstm_forward.8} parent=31 // pred_fallthru
          _
        // Predicated region
        $region45: #{bidirectional_lstm_forward.8} parent=31 // pred_check
          %p1372 = pneg %p168
        $region46: #{bidirectional_lstm_forward.8} parent=31 // pred_check_branch
          %1374 = sbr.rel (%p1372) target = $region48
        $region47: #{bidirectional_lstm_forward.8} parent=31 // pred_region
          _
        $region48: #{bidirectional_lstm_forward.8} parent=31 // pred_fallthru
          _
      $region32: #{bidirectional_lstm_forward.8} parent=5 // pred_fallthru
        _
      %p1375 = scmp.le.s32.totalorder 2, %s14
      // Predicated region
      $region49: #{bidirectional_lstm_forward.8} parent=5 // pred_check
        %p1376 = pneg %p1375
      $region50: #{bidirectional_lstm_forward.8} parent=5 // pred_check_branch
        %1378 = sbr.rel (%p1376) target = $region52
      $region51: #{bidirectional_lstm_forward.8} parent=5 // pred_region
        %s1379 = ssub.s32 %s14, 2
        // Predicated region
        $region53: #{bidirectional_lstm_forward.8} parent=51 // pred_check
          %p1380 = pneg %p148
        $region54: #{bidirectional_lstm_forward.8} parent=51 // pred_check_branch
          %1382 = sbr.rel (%p1380) target = $region56
        $region55: #{bidirectional_lstm_forward.8} parent=51 // pred_region
          %s1383 = sand.u32 %s133, 1
          %s1384 = scalar_lea.sflag [#allocation5], %s1383
          %s1385 = sand.u32 %s133, 1
          %s1386 = smul.addr %s1385, 8
          %s1387 = scalar_lea.vmem [#allocation4], %s1386
          %1388 = dma.done %s1384, 128
        $region56: #{bidirectional_lstm_forward.8} parent=51 // pred_fallthru
          _
        // Predicated region
        $region57: #{bidirectional_lstm_forward.8} parent=51 // pred_check
          %p1389 = pneg %p174
        $region58: #{bidirectional_lstm_forward.8} parent=51 // pred_check_branch
          %1391 = sbr.rel (%p1389) target = $region60
        $region59: #{bidirectional_lstm_forward.8} parent=51 // pred_region
          %p1392 = scmp.lt.s32.totalorder %s25, 1
          %s1393 = scalar_select %p1392, %s25, 1
          %s1394 = smul.addr %s1393, 2
          %s1395 = scalar_lea.vmem %s4, %s1394
        $region60: #{bidirectional_lstm_forward.8} parent=51 // pred_fallthru
          _
      $region52: #{bidirectional_lstm_forward.8} parent=5 // pred_fallthru
        _
    $region6: #{bidirectional_lstm_forward.8} parent=1 // loop_footer
      %s18 = sadd.s32 1, %s14
    $region7: #{bidirectional_lstm_forward.8} parent=1 // loop_footer_branch
      %13 = sbr.rel target = $region3
    $region8: #{bidirectional_lstm_forward.8} parent=1 // loop_exit
      _
    %1396 = vsyncpa [#allocation5], 1
    %s1397 = scalar_lea.sflag [#allocation5], 1
    %1398 = vsyncpa %s1397, 1

</llo_original>
